<compile_context>
chip_gen: v7x
topology: tpu7x:2x2x1
jax: 0.10.0
libtpu: 0.0.40
codegen_flags: <defaults>
</compile_context>

<pallas_src>
import functools

import jax
import jax.numpy as jnp
from jax.experimental import pallas as pl
from jax.experimental.pallas import tpu as pltpu

LANE = 128


def _round_up(v, m):
    return (v + m - 1) // m * m


# --------------------------------- kernel --------------------------------------
def bottleneck_kernel(x_ref, w1_ref, ws_ref, b1_ref, w2_ref, b2_ref,
                      w3_ref, b3_ref, o_ref, h1_ref, *,
                      Th, H, W, pad, dilation):
    """One (batch, row-tile) grid step.

    x_ref  : (1, H+2p, Wp, Cin_p)  bf16   padded image (resident per batch elem)
    w1_ref : (Cin_p, Cb_p)         bf16   conv1 weights   (BN1 scale folded)
    ws_ref : (Cin_p, Cout_p)       bf16   shortcut weights(BN_s scale folded)
    w2_ref : (3, 3*Cb_p, Cb_p)     bf16   conv2 weights, kx taps fused along K
    w3_ref : (Cb_p, Cout_p)        bf16   conv3 weights   (BN3 scale folded)
    b1/b2  : (1, Cb_p) f32; b3_ref: (1, Cout_p) f32 (= conv3 bias + shortcut bias)
    o_ref  : (1, Th, W, Cout_p)    bf16
    h1_ref : (Te, Wp, Cb_p)        bf16   VMEM scratch for the conv2 input slab
    """
    ri = pl.program_id(1)
    Te = Th + 2 * pad                       # rows needed by this tile (conv2 halo)
    Wp = x_ref.shape[2]
    cb_p = h1_ref.shape[-1]
    row0 = ri * Th                          # tile start row, padded coordinates

    # ---- conv1 over the halo-extended row slab (halo feeds conv2) --------------
    x_ext = x_ref[0, pl.ds(row0, Te), :, :]                     # (Te, Wp, Cin_p) bf16
    y1 = jnp.dot(x_ext.reshape(Te * Wp, -1), w1_ref[...],
                 preferred_element_type=jnp.float32)
    h1 = jnp.maximum(y1 + b1_ref[...], 0.0).reshape(Te, Wp, cb_p)

    # Zero the conv2 padding ring (halo must be 0, not relu(b1), to match the
    # zero-padded conv2). 2-D mask (Te, Wp, 1) broadcast over the channel lanes.
    rows = jax.lax.broadcasted_iota(jnp.int32, (Te, Wp, 1), 0) + row0
    cols = jax.lax.broadcasted_iota(jnp.int32, (Te, Wp, 1), 1)
    interior = ((rows >= pad) & (rows < pad + H) &
                (cols >= pad) & (cols < pad + W)).astype(jnp.float32)
    h1_ref[...] = (h1 * interior).astype(jnp.bfloat16)

    # ---- projection shortcut: interior window only (no halo overcompute) -------
    xs = x_ext[pad:pad + Th, pad:pad + W, :]                    # (Th, W, Cin_p)
    sc = jnp.dot(xs.reshape(Th * W, -1), ws_ref[...],
                 preferred_element_type=jnp.float32)

    # ---- conv2: dilated 3x3; the 3 kx taps per ky fused into one K=3*Cb_p dot --
    d = dilation
    acc = None
    for ky in range(3):                                         # static, unrolled
        slab = h1_ref[ky * d:ky * d + Th, :, :]                 # aligned ref read
        taps = jnp.concatenate(
            [slab[:, kx * d:kx * d + W, :] for kx in range(3)], axis=-1)
        part = jnp.dot(taps.reshape(Th * W, 3 * cb_p), w2_ref[ky],
                       preferred_element_type=jnp.float32)
        acc = part if acc is None else acc + part
    h2 = jnp.maximum(acc + b2_ref[...], 0.0).astype(jnp.bfloat16)

    # ---- conv3 + shortcut + fused bias + ReLU -----------------------------------
    h3 = jnp.dot(h2, w3_ref[...], preferred_element_type=jnp.float32)
    out = jnp.maximum(h3 + sc + b3_ref[...], 0.0)
    o_ref[...] = out.reshape(1, Th, W, -1).astype(o_ref.dtype)


# --------------------------------- wrappers -------------------------------------
def bottleneck_forward_nhwc(x_nhwc, p, *, dilation=1, row_tile=None,
                            vmem_limit_bytes=64 * 1024 * 1024):
    """Channels-last entry point (preferred). Returns bf16 NHWC, channels = Cout."""
    N, H, W, Cin = x_nhwc.shape
    Cb = p["w1"].shape[1]
    Cout = p["w3"].shape[1]
    pad = dilation

    Cin_p = _round_up(Cin, LANE)
    Cb_p = _round_up(Cb, LANE)
    Cout_p = _round_up(Cout, LANE)
    Wp = _round_up(W + 2 * pad, 8)          # sublane-aligned width (cheap reshapes)
    Hp = H + 2 * pad

    # bf16 BEFORE the pad: the pre-kernel pad pass runs at half width.
    xp = jnp.pad(x_nhwc.astype(jnp.bfloat16),
                 ((0, 0), (pad, pad), (pad, Wp - W - pad), (0, Cin_p - Cin)))

    # Fold BN scales into conv weights; pad channels to lane multiples; bf16.
    w1p = jnp.zeros((Cin_p, Cb_p), jnp.float32).at[:Cin, :Cb].set(p["w1"] * p["s1"])
    wsp = jnp.zeros((Cin_p, Cout_p), jnp.float32).at[:Cin, :Cout].set(p["ws"] * p["ss"])
    w2p = (jnp.zeros((3, 3, Cb_p, Cb_p), jnp.float32)
           .at[:, :, :Cb, :Cb].set(p["w2"] * p["s2"])
           .reshape(3, 3 * Cb_p, Cb_p))                         # kx taps fused along K
    w3p = jnp.zeros((Cb_p, Cout_p), jnp.float32).at[:Cb, :Cout].set(p["w3"] * p["s3"])
    w1p, wsp, w2p, w3p = (w.astype(jnp.bfloat16) for w in (w1p, wsp, w2p, w3p))

    b1 = jnp.zeros((1, Cb_p), jnp.float32).at[:, :Cb].set(p["b1"])
    b2 = jnp.zeros((1, Cb_p), jnp.float32).at[:, :Cb].set(p["b2"])
    b3s = jnp.zeros((1, Cout_p), jnp.float32).at[:, :Cout].set(p["b3"] + p["bs"])

    # ---- row tile: largest divisor of H whose VMEM footprint estimate fits -----
    weight_bytes = 2 * 2 * (w1p.size + wsp.size + w2p.size + w3p.size)  # bf16, 2 bufs
    x_block_bytes = 2 * 2 * Hp * Wp * Cin_p                             # bf16, 2 bufs
    if row_tile is None:
        budget = int(0.55 * vmem_limit_bytes)   # headroom for pipeline/live values
        divisors = [t for t in range(H, 0, -1) if H % t == 0]
        row_tile = divisors[-1]                 # fallback: 1
        for t in divisors:
            te = t + 2 * pad
            per_tile = (te * Wp * Cb_p * 2                       # h1 scratch (bf16)
                        + 2 * 2 * t * W * Cout_p                 # out block (bf16 x2)
                        + 4 * te * Wp * max(Cin_p, Cb_p)         # conv1 f32 result
                        + 4 * t * W * (3 * Cb_p + 2 * Cout_p))   # conv2/3/shortcut
            if weight_bytes + x_block_bytes + per_tile <= budget:
                row_tile = t
                break
        if N * (H // row_tile) < 2:             # keep both v7x TensorCores busy
            smaller = [t for t in divisors if t < row_tile]
            if smaller:
                row_tile = smaller[0]
    Th = int(row_tile)
    assert H % Th == 0, "row_tile must divide H"
    n_rows = H // Th
    Te = Th + 2 * pad

    # ---- grid / specs (rows innermost: x is DMA'd once per image) --------------
    grid = (N, n_rows)

    def resident(arr):
        nd = arr.ndim
        return pl.BlockSpec(arr.shape, lambda n, r: (0,) * nd)

    in_specs = [
        pl.BlockSpec((1, Hp, Wp, Cin_p), lambda n, r: (n, 0, 0, 0)),
        resident(w1p), resident(wsp), resident(b1),
        resident(w2p), resident(b2), resident(w3p), resident(b3s),
    ]
    out_specs = pl.BlockSpec((1, Th, W, Cout_p), lambda n, r: (n, r, 0, 0))

    flops = 2 * N * (n_rows * Te * Wp * Cin_p * Cb_p
                     + H * W * (Cin_p * Cout_p + 9 * Cb_p * Cb_p + Cb_p * Cout_p))
    bytes_accessed = (N * Hp * Wp * Cin_p * 2            # x (bf16, once per image)
                      + N * H * W * Cout_p * 2           # output (bf16)
                      + (w1p.size + wsp.size + w2p.size + w3p.size) * 2
                      + (b1.size + b2.size + b3s.size) * 4)

    out_full = pl.pallas_call(
        functools.partial(bottleneck_kernel, Th=Th, H=H, W=W, pad=pad,
                          dilation=dilation),
        out_shape=jax.ShapeDtypeStruct((N, H, W, Cout_p), jnp.bfloat16),
        grid=grid,
        in_specs=in_specs,
        out_specs=out_specs,
        scratch_shapes=[pltpu.VMEM((Te, Wp, Cb_p), jnp.bfloat16)],
        compiler_params=pltpu.CompilerParams(
            dimension_semantics=("parallel", "parallel"),
            vmem_limit_bytes=int(vmem_limit_bytes)),
        cost_estimate=pl.CostEstimate(flops=flops, transcendentals=0,
                                      bytes_accessed=bytes_accessed),
    )(xp, w1p, wsp, b1, w2p, b2, w3p, b3s)

    # Skip the channel slice entirely when Cout is already lane-aligned.
    return out_full if Cout == Cout_p else out_full[..., :Cout]


@functools.partial(jax.jit,
                   static_argnames=("dilation", "row_tile", "vmem_limit_bytes"))
def bottleneck_forward(x_nchw, p, *, dilation=1, row_tile=None,
                       vmem_limit_bytes=64 * 1024 * 1024):
    """NCHW (PyTorch-convention) wrapper. x_nchw: (N, C_in, H, W)."""
    x = jnp.transpose(x_nchw, (0, 2, 3, 1))
    out = bottleneck_forward_nhwc(x, p, dilation=dilation, row_tile=row_tile,
                                  vmem_limit_bytes=vmem_limit_bytes)
    # NCHW + f32 output to match the PyTorch module's convention.
    return jnp.transpose(out, (0, 3, 1, 2)).astype(jnp.float32)


# ----------------------- parameter construction (deterministic) -----------------
def make_params(key, in_ch, out_ch, bneck_ch):
    keys = jax.random.split(key, 8)

    def kaiming(k, shape, fan_in):          # kaiming_normal_, nonlinearity='relu'
        return jax.random.normal(k, shape, jnp.float32) * jnp.sqrt(2.0 / fan_in)

    eps = 1e-5

    # Eval-mode BN folded to per-channel (scale, bias). Mildly non-trivial stats
    # (instead of the identity init) so the bias / halo-masking paths are tested.
    def bn_fold(k, c):
        kg, kb, km, kv = jax.random.split(k, 4)
        gamma = 1.0 + 0.1 * jax.random.normal(kg, (1, c), jnp.float32)
        beta = 0.1 * jax.random.normal(kb, (1, c), jnp.float32)
        mean = 0.1 * jax.random.normal(km, (1, c), jnp.float32)
        var = 1.0 + 0.1 * jnp.abs(jax.random.normal(kv, (1, c), jnp.float32))
        scale = gamma / jnp.sqrt(var + eps)
        bias = beta - mean * scale
        return scale, bias

    params = {
        # channels-last friendly weights: 1x1 -> (Cin, Cout); 3x3 -> (kh, kw, Cin, Cout)
        "w1": kaiming(keys[0], (in_ch, bneck_ch), in_ch),
        "w2": kaiming(keys[1], (3, 3, bneck_ch, bneck_ch), bneck_ch * 9),
        "w3": kaiming(keys[2], (bneck_ch, out_ch), bneck_ch),
        "ws": kaiming(keys[3], (in_ch, out_ch), in_ch),          # projection shortcut
    }
    params["s1"], params["b1"] = bn_fold(keys[4], bneck_ch)
    params["s2"], params["b2"] = bn_fold(keys[5], bneck_ch)
    params["s3"], params["b3"] = bn_fold(keys[6], out_ch)
    params["ss"], params["bs"] = bn_fold(keys[7], out_ch)
    return params


# ----------------------- plain-JAX reference for verification -------------------
def bottleneck_reference(x_nchw, p, *, dilation=1):
    x = jnp.transpose(x_nchw, (0, 2, 3, 1)).astype(jnp.float32)
    dn = ("NHWC", "HWIO", "NHWC")

    def conv1x1(v, w):
        return jax.lax.conv_general_dilated(
            v, w.reshape(1, 1, *w.shape), (1, 1), "VALID", dimension_numbers=dn)

    h = jax.nn.relu(conv1x1(x, p["w1"]) * p["s1"] + p["b1"])
    h = jax.lax.conv_general_dilated(
        h, p["w2"], (1, 1), ((dilation, dilation), (dilation, dilation)),
        rhs_dilation=(dilation, dilation), dimension_numbers=dn)
    h = jax.nn.relu(h * p["s2"] + p["b2"])
    h = conv1x1(h, p["w3"]) * p["s3"] + p["b3"]
    sc = conv1x1(x, p["ws"]) * p["ss"] + p["bs"]
    out = jax.nn.relu(h + sc)
    return jnp.transpose(out, (0, 3, 1, 2))


if __name__ == "__main__":
    key = jax.random.PRNGKey(0)
    kx, kp = jax.random.split(key)

    N, Cin, H, W = 2, 4, 16, 16
    Cout, Cb = 8, 4              # in_channels != out_channels -> projection shortcut
    dilation = 1

    x = jax.random.normal(kx, (N, Cin, H, W), jnp.float32)
    params = make_params(kp, Cin, Cout, Cb)

    y_ref = jax.block_until_ready(bottleneck_reference(x, params, dilation=dilation))

    # Run with the automatic row tile (single tile per image) and with an explicit
    # row_tile=8 (grid = (2, 2)) to exercise the halo / multi-tile pipeline path.
    for rt in (None, 8):
        y = jax.block_until_ready(
            bottleneck_forward(x, params, dilation=dilation, row_tile=rt))
        assert y.shape == (N, Cout, H, W)
        # bf16 matmul operands + bf16 output -> bf16-level tolerance vs f32 reference.
        assert jnp.allclose(y, y_ref, rtol=5e-2, atol=5e-2), \
            f"mismatch vs reference (row_tile={rt})"

    print("KERNEL_OK")
</pallas_src>

<mosaic_0001>
module attributes {stable_mosaic.version = 11 : i64} {
  func.func @bottleneck_kernel(%arg0: i32, %arg1: i32, %arg2: memref<1x18x24x128xbf16, #tpu.memory_space<vmem>>, %arg3: memref<128x128xbf16, #tpu.memory_space<vmem>>, %arg4: memref<128x128xbf16, #tpu.memory_space<vmem>>, %arg5: memref<1x128xf32, #tpu.memory_space<vmem>>, %arg6: memref<3x384x128xbf16, #tpu.memory_space<vmem>>, %arg7: memref<1x128xf32, #tpu.memory_space<vmem>>, %arg8: memref<128x128xbf16, #tpu.memory_space<vmem>>, %arg9: memref<1x128xf32, #tpu.memory_space<vmem>>, %arg10: memref<1x16x16x128xbf16, #tpu.memory_space<vmem>>, %arg11: memref<18x24x128xbf16, #tpu.memory_space<vmem>>) attributes {dimension_semantics = [#tpu.dimension_semantics<parallel>, #tpu.dimension_semantics<parallel>], iteration_bounds = array<i64: 2, 1>, scalar_prefetch = 0 : i64, scratch_operands = 1 : i64, tpu.core_type = #tpu.core_type<tc>, window_params = [{transform_indices = @transform_0, window_bounds = array<i64: 1, 18, 24, 128>}, {pipeline_mode = #tpu.pipeline_mode<synchronous>, transform_indices = @transform_1, window_bounds = array<i64: 128, 128>}, {pipeline_mode = #tpu.pipeline_mode<synchronous>, transform_indices = @transform_2, window_bounds = array<i64: 128, 128>}, {pipeline_mode = #tpu.pipeline_mode<synchronous>, transform_indices = @transform_3, window_bounds = array<i64: 1, 128>}, {pipeline_mode = #tpu.pipeline_mode<synchronous>, transform_indices = @transform_4, window_bounds = array<i64: 3, 384, 128>}, {pipeline_mode = #tpu.pipeline_mode<synchronous>, transform_indices = @transform_5, window_bounds = array<i64: 1, 128>}, {pipeline_mode = #tpu.pipeline_mode<synchronous>, transform_indices = @transform_6, window_bounds = array<i64: 128, 128>}, {pipeline_mode = #tpu.pipeline_mode<synchronous>, transform_indices = @transform_7, window_bounds = array<i64: 1, 128>}, {transform_indices = @transform_8, window_bounds = array<i64: 1, 16, 16, 128>}]} {
    %c16_i32 = arith.constant 16 : i32
    %0 = arith.muli %arg1, %c16_i32 : i32
    %c0 = arith.constant 0 : index
    %1 = arith.index_cast %0 : i32 to index
    %c0_0 = arith.constant 0 : index
    %c0_1 = arith.constant 0 : index
    %2 = vector.load %arg2[%c0, %1, %c0_0, %c0_1] : memref<1x18x24x128xbf16, #tpu.memory_space<vmem>>, vector<1x18x24x128xbf16>
    %3 = vector.shape_cast %2 : vector<1x18x24x128xbf16> to vector<18x24x128xbf16>
    %4 = vector.shape_cast %3 : vector<18x24x128xbf16> to vector<432x128xbf16>
    %c0_2 = arith.constant 0 : index
    %c0_3 = arith.constant 0 : index
    %5 = vector.load %arg3[%c0_2, %c0_3] : memref<128x128xbf16, #tpu.memory_space<vmem>>, vector<128x128xbf16>
    %cst = arith.constant dense<0.000000e+00> : vector<432x128xf32>
    %6 = tpu.matmul %4, %5, %cst {dimension_numbers = #tpu.dot_dimension_numbers<[1], [0], [0], [1], [0, 0, 1, 1], [], []>} : vector<432x128xbf16>, vector<128x128xbf16>, vector<432x128xf32> -> vector<432x128xf32>
    %c0_4 = arith.constant 0 : index
    %c0_5 = arith.constant 0 : index
    %7 = vector.load %arg5[%c0_4, %c0_5] : memref<1x128xf32, #tpu.memory_space<vmem>>, vector<1x128xf32>
    %8 = vector.broadcast %7 : vector<1x128xf32> to vector<432x128xf32>
    %9 = arith.addf %6, %8 : vector<432x128xf32>
    %cst_6 = arith.constant 0.000000e+00 : f32
    %10 = vector.broadcast %cst_6 : f32 to vector<432x128xf32>
    %11 = arith.maximumf %9, %10 : vector<432x128xf32>
    %12 = vector.shape_cast %11 : vector<432x128xf32> to vector<18x24x128xf32>
    %13 = tpu.iota {dimensions = array<i32: 0>} : vector<18x24x1xi32>
    %14 = vector.broadcast %0 : i32 to vector<18x24x1xi32>
    %15 = arith.addi %13, %14 : vector<18x24x1xi32>
    %16 = tpu.iota {dimensions = array<i32: 1>} : vector<18x24x1xi32>
    %c1_i32 = arith.constant 1 : i32
    %17 = vector.broadcast %c1_i32 : i32 to vector<18x24x1xi32>
    %18 = arith.cmpi sge, %15, %17 : vector<18x24x1xi32>
    %c17_i32 = arith.constant 17 : i32
    %19 = vector.broadcast %c17_i32 : i32 to vector<18x24x1xi32>
    %20 = arith.cmpi slt, %15, %19 : vector<18x24x1xi32>
    %21 = arith.andi %18, %20 : vector<18x24x1xi1>
    %c1_i32_7 = arith.constant 1 : i32
    %22 = vector.broadcast %c1_i32_7 : i32 to vector<18x24x1xi32>
    %23 = arith.cmpi sge, %16, %22 : vector<18x24x1xi32>
    %24 = arith.andi %21, %23 : vector<18x24x1xi1>
    %c17_i32_8 = arith.constant 17 : i32
    %25 = vector.broadcast %c17_i32_8 : i32 to vector<18x24x1xi32>
    %26 = arith.cmpi slt, %16, %25 : vector<18x24x1xi32>
    %27 = arith.andi %24, %26 : vector<18x24x1xi1>
    %28 = arith.extui %27 : vector<18x24x1xi1> to vector<18x24x1xi32>
    %29 = arith.sitofp %28 : vector<18x24x1xi32> to vector<18x24x1xf32>
    %30 = vector.broadcast %29 : vector<18x24x1xf32> to vector<18x24x128xf32>
    %31 = arith.mulf %12, %30 : vector<18x24x128xf32>
    %32 = arith.truncf %31 : vector<18x24x128xf32> to vector<18x24x128xbf16>
    %c0_9 = arith.constant 0 : index
    %c0_10 = arith.constant 0 : index
    %c0_11 = arith.constant 0 : index
    %33 = vector.load %arg11[%c0_9, %c0_10, %c0_11] : memref<18x24x128xbf16, #tpu.memory_space<vmem>>, vector<18x24x128xbf16>
    tpu.vector_store %arg11[%c0_9, %c0_10, %c0_11], %32 {strides = array<i32>} : memref<18x24x128xbf16, #tpu.memory_space<vmem>>, vector<18x24x128xbf16>,
    %34 = vector.extract_strided_slice %3 {offsets = [1, 1, 0], sizes = [16, 16, 128], strides = [1, 1, 1]} : vector<18x24x128xbf16> to vector<16x16x128xbf16>
    %35 = vector.shape_cast %34 : vector<16x16x128xbf16> to vector<256x128xbf16>
    %c0_12 = arith.constant 0 : index
    %c0_13 = arith.constant 0 : index
    %36 = vector.load %arg4[%c0_12, %c0_13] : memref<128x128xbf16, #tpu.memory_space<vmem>>, vector<128x128xbf16>
    %cst_14 = arith.constant dense<0.000000e+00> : vector<256x128xf32>
    %37 = tpu.matmul %35, %36, %cst_14 {dimension_numbers = #tpu.dot_dimension_numbers<[1], [0], [0], [1], [0, 0, 1, 1], [], []>} : vector<256x128xbf16>, vector<128x128xbf16>, vector<256x128xf32> -> vector<256x128xf32>
    %c0_15 = arith.constant 0 : index
    %c0_16 = arith.constant 0 : index
    %c0_17 = arith.constant 0 : index
    %38 = vector.load %arg11[%c0_15, %c0_16, %c0_17] : memref<18x24x128xbf16, #tpu.memory_space<vmem>>, vector<16x24x128xbf16>
    %39 = vector.extract_strided_slice %38 {offsets = [0, 0, 0], sizes = [16, 16, 128], strides = [1, 1, 1]} : vector<16x24x128xbf16> to vector<16x16x128xbf16>
    %40 = vector.extract_strided_slice %38 {offsets = [0, 1, 0], sizes = [16, 16, 128], strides = [1, 1, 1]} : vector<16x24x128xbf16> to vector<16x16x128xbf16>
    %41 = vector.extract_strided_slice %38 {offsets = [0, 2, 0], sizes = [16, 16, 128], strides = [1, 1, 1]} : vector<16x24x128xbf16> to vector<16x16x128xbf16>
    %42 = tpu.concatenate %39, %40, %41 in 2 : vector<16x16x128xbf16>, vector<16x16x128xbf16>, vector<16x16x128xbf16> -> vector<16x16x384xbf16>
    %43 = vector.shape_cast %42 : vector<16x16x384xbf16> to vector<256x384xbf16>
    %c0_18 = arith.constant 0 : index
    %c0_19 = arith.constant 0 : index
    %c0_20 = arith.constant 0 : index
    %44 = vector.load %arg6[%c0_18, %c0_19, %c0_20] : memref<3x384x128xbf16, #tpu.memory_space<vmem>>, vector<1x384x128xbf16>
    %45 = vector.shape_cast %44 : vector<1x384x128xbf16> to vector<384x128xbf16>
    %cst_21 = arith.constant dense<0.000000e+00> : vector<256x128xf32>
    %46 = tpu.matmul %43, %45, %cst_21 {dimension_numbers = #tpu.dot_dimension_numbers<[1], [0], [0], [1], [0, 0, 1, 1], [], []>} : vector<256x384xbf16>, vector<384x128xbf16>, vector<256x128xf32> -> vector<256x128xf32>
    %c1 = arith.constant 1 : index
    %c0_22 = arith.constant 0 : index
    %c0_23 = arith.constant 0 : index
    %47 = vector.load %arg11[%c1, %c0_22, %c0_23] : memref<18x24x128xbf16, #tpu.memory_space<vmem>>, vector<16x24x128xbf16>
    %48 = vector.extract_strided_slice %47 {offsets = [0, 0, 0], sizes = [16, 16, 128], strides = [1, 1, 1]} : vector<16x24x128xbf16> to vector<16x16x128xbf16>
    %49 = vector.extract_strided_slice %47 {offsets = [0, 1, 0], sizes = [16, 16, 128], strides = [1, 1, 1]} : vector<16x24x128xbf16> to vector<16x16x128xbf16>
    %50 = vector.extract_strided_slice %47 {offsets = [0, 2, 0], sizes = [16, 16, 128], strides = [1, 1, 1]} : vector<16x24x128xbf16> to vector<16x16x128xbf16>
    %51 = tpu.concatenate %48, %49, %50 in 2 : vector<16x16x128xbf16>, vector<16x16x128xbf16>, vector<16x16x128xbf16> -> vector<16x16x384xbf16>
    %52 = vector.shape_cast %51 : vector<16x16x384xbf16> to vector<256x384xbf16>
    %c1_24 = arith.constant 1 : index
    %c0_25 = arith.constant 0 : index
    %c0_26 = arith.constant 0 : index
    %53 = vector.load %arg6[%c1_24, %c0_25, %c0_26] : memref<3x384x128xbf16, #tpu.memory_space<vmem>>, vector<1x384x128xbf16>
    %54 = vector.shape_cast %53 : vector<1x384x128xbf16> to vector<384x128xbf16>
    %cst_27 = arith.constant dense<0.000000e+00> : vector<256x128xf32>
    %55 = tpu.matmul %52, %54, %cst_27 {dimension_numbers = #tpu.dot_dimension_numbers<[1], [0], [0], [1], [0, 0, 1, 1], [], []>} : vector<256x384xbf16>, vector<384x128xbf16>, vector<256x128xf32> -> vector<256x128xf32>
    %56 = arith.addf %46, %55 : vector<256x128xf32>
    %c2 = arith.constant 2 : index
    %c0_28 = arith.constant 0 : index
    %c0_29 = arith.constant 0 : index
    %57 = vector.load %arg11[%c2, %c0_28, %c0_29] : memref<18x24x128xbf16, #tpu.memory_space<vmem>>, vector<16x24x128xbf16>
    %58 = vector.extract_strided_slice %57 {offsets = [0, 0, 0], sizes = [16, 16, 128], strides = [1, 1, 1]} : vector<16x24x128xbf16> to vector<16x16x128xbf16>
    %59 = vector.extract_strided_slice %57 {offsets = [0, 1, 0], sizes = [16, 16, 128], strides = [1, 1, 1]} : vector<16x24x128xbf16> to vector<16x16x128xbf16>
    %60 = vector.extract_strided_slice %57 {offsets = [0, 2, 0], sizes = [16, 16, 128], strides = [1, 1, 1]} : vector<16x24x128xbf16> to vector<16x16x128xbf16>
    %61 = tpu.concatenate %58, %59, %60 in 2 : vector<16x16x128xbf16>, vector<16x16x128xbf16>, vector<16x16x128xbf16> -> vector<16x16x384xbf16>
    %62 = vector.shape_cast %61 : vector<16x16x384xbf16> to vector<256x384xbf16>
    %c2_30 = arith.constant 2 : index
    %c0_31 = arith.constant 0 : index
    %c0_32 = arith.constant 0 : index
    %63 = vector.load %arg6[%c2_30, %c0_31, %c0_32] : memref<3x384x128xbf16, #tpu.memory_space<vmem>>, vector<1x384x128xbf16>
    %64 = vector.shape_cast %63 : vector<1x384x128xbf16> to vector<384x128xbf16>
    %cst_33 = arith.constant dense<0.000000e+00> : vector<256x128xf32>
    %65 = tpu.matmul %62, %64, %cst_33 {dimension_numbers = #tpu.dot_dimension_numbers<[1], [0], [0], [1], [0, 0, 1, 1], [], []>} : vector<256x384xbf16>, vector<384x128xbf16>, vector<256x128xf32> -> vector<256x128xf32>
    %66 = arith.addf %56, %65 : vector<256x128xf32>
    %c0_34 = arith.constant 0 : index
    %c0_35 = arith.constant 0 : index
    %67 = vector.load %arg7[%c0_34, %c0_35] : memref<1x128xf32, #tpu.memory_space<vmem>>, vector<1x128xf32>
    %68 = vector.broadcast %67 : vector<1x128xf32> to vector<256x128xf32>
    %69 = arith.addf %66, %68 : vector<256x128xf32>
    %cst_36 = arith.constant 0.000000e+00 : f32
    %70 = vector.broadcast %cst_36 : f32 to vector<256x128xf32>
    %71 = arith.maximumf %69, %70 : vector<256x128xf32>
    %72 = arith.truncf %71 : vector<256x128xf32> to vector<256x128xbf16>
    %c0_37 = arith.constant 0 : index
    %c0_38 = arith.constant 0 : index
    %73 = vector.load %arg8[%c0_37, %c0_38] : memref<128x128xbf16, #tpu.memory_space<vmem>>, vector<128x128xbf16>
    %cst_39 = arith.constant dense<0.000000e+00> : vector<256x128xf32>
    %74 = tpu.matmul %72, %73, %cst_39 {dimension_numbers = #tpu.dot_dimension_numbers<[1], [0], [0], [1], [0, 0, 1, 1], [], []>} : vector<256x128xbf16>, vector<128x128xbf16>, vector<256x128xf32> -> vector<256x128xf32>
    %75 = arith.addf %74, %37 : vector<256x128xf32>
    %c0_40 = arith.constant 0 : index
    %c0_41 = arith.constant 0 : index
    %76 = vector.load %arg9[%c0_40, %c0_41] : memref<1x128xf32, #tpu.memory_space<vmem>>, vector<1x128xf32>
    %77 = vector.broadcast %76 : vector<1x128xf32> to vector<256x128xf32>
    %78 = arith.addf %75, %77 : vector<256x128xf32>
    %cst_42 = arith.constant 0.000000e+00 : f32
    %79 = vector.broadcast %cst_42 : f32 to vector<256x128xf32>
    %80 = arith.maximumf %78, %79 : vector<256x128xf32>
    %81 = vector.shape_cast %80 : vector<256x128xf32> to vector<1x16x16x128xf32>
    %82 = arith.truncf %81 : vector<1x16x16x128xf32> to vector<1x16x16x128xbf16>
    %c0_43 = arith.constant 0 : index
    %c0_44 = arith.constant 0 : index
    %c0_45 = arith.constant 0 : index
    %c0_46 = arith.constant 0 : index
    %83 = vector.load %arg10[%c0_43, %c0_44, %c0_45, %c0_46] : memref<1x16x16x128xbf16, #tpu.memory_space<vmem>>, vector<1x16x16x128xbf16>
    tpu.vector_store %arg10[%c0_43, %c0_44, %c0_45, %c0_46], %82 {strides = array<i32>} : memref<1x16x16x128xbf16, #tpu.memory_space<vmem>>, vector<1x16x16x128xbf16>,
    return
  }
  func.func @transform_0(%arg0: i32, %arg1: i32) -> (i32, i32, i32, i32) {
    %c0_i32 = arith.constant 0 : i32
    %c0_i32_0 = arith.constant 0 : i32
    %c0_i32_1 = arith.constant 0 : i32
    %c0_i32_2 = arith.constant 0 : i32
    return %arg0, %c0_i32, %c0_i32_0, %c0_i32_1 : i32, i32, i32, i32
  }
  func.func @transform_1(%arg0: i32, %arg1: i32) -> (i32, i32) {
    %c0_i32 = arith.constant 0 : i32
    %c0_i32_0 = arith.constant 0 : i32
    %c0_i32_1 = arith.constant 0 : i32
    return %c0_i32, %c0_i32_0 : i32, i32
  }
  func.func @transform_2(%arg0: i32, %arg1: i32) -> (i32, i32) {
    %c0_i32 = arith.constant 0 : i32
    %c0_i32_0 = arith.constant 0 : i32
    %c0_i32_1 = arith.constant 0 : i32
    return %c0_i32, %c0_i32_0 : i32, i32
  }
  func.func @transform_3(%arg0: i32, %arg1: i32) -> (i32, i32) {
    %c0_i32 = arith.constant 0 : i32
    %c0_i32_0 = arith.constant 0 : i32
    %c0_i32_1 = arith.constant 0 : i32
    return %c0_i32, %c0_i32_0 : i32, i32
  }
  func.func @transform_4(%arg0: i32, %arg1: i32) -> (i32, i32, i32) {
    %c0_i32 = arith.constant 0 : i32
    %c0_i32_0 = arith.constant 0 : i32
    %c0_i32_1 = arith.constant 0 : i32
    %c0_i32_2 = arith.constant 0 : i32
    return %c0_i32, %c0_i32_0, %c0_i32_1 : i32, i32, i32
  }
  func.func @transform_5(%arg0: i32, %arg1: i32) -> (i32, i32) {
    %c0_i32 = arith.constant 0 : i32
    %c0_i32_0 = arith.constant 0 : i32
    %c0_i32_1 = arith.constant 0 : i32
    return %c0_i32, %c0_i32_0 : i32, i32
  }
  func.func @transform_6(%arg0: i32, %arg1: i32) -> (i32, i32) {
    %c0_i32 = arith.constant 0 : i32
    %c0_i32_0 = arith.constant 0 : i32
    %c0_i32_1 = arith.constant 0 : i32
    return %c0_i32, %c0_i32_0 : i32, i32
  }
  func.func @transform_7(%arg0: i32, %arg1: i32) -> (i32, i32) {
    %c0_i32 = arith.constant 0 : i32
    %c0_i32_0 = arith.constant 0 : i32
    %c0_i32_1 = arith.constant 0 : i32
    return %c0_i32, %c0_i32_0 : i32, i32
  }
  func.func @transform_8(%arg0: i32, %arg1: i32) -> (i32, i32, i32, i32) {
    %c0_i32 = arith.constant 0 : i32
    %c0_i32_0 = arith.constant 0 : i32
    %c0_i32_1 = arith.constant 0 : i32
    return %arg0, %arg1, %c0_i32, %c0_i32_0 : i32, i32, i32, i32
  }
}

</mosaic_0001>

<llo_original>
// kernel: bottleneck_forward.1
$region0: #{bottleneck_forward.1}
  #allocation0 [shape = 'u32[]', space=smem, size = 0x4, offset = 0x4, fixed_abs, tag = 'smem constant byte address 0x4 - core index']
  #allocation1 [shape = 'u32[144,128]{1,0:T(1,128)}', space=vmem, size = 0x12000, scoped, tag = 'internal scratch']
  #allocation2 [shape = 'bf16[18,24,128]{2,1,0:T(8,128)(2,1)}', space=vmem, size = 0x1b000, scoped, tag = 'scratch operand']
  %s0 = inlined_call_operand.hbm [shape: bf16[2,18,24,128], index: 0, kind: input, shape index: {}]
  %s1 = inlined_call_operand.hbm [shape: bf16[128,128], index: 1, kind: input, shape index: {}]
  %s2 = inlined_call_operand.hbm [shape: bf16[128,128], index: 2, kind: input, shape index: {}]
  %s3 = inlined_call_operand.hbm [shape: f32[1,128], index: 3, kind: input, shape index: {}]
  %s4 = inlined_call_operand.hbm [shape: bf16[3,384,128], index: 4, kind: input, shape index: {}]
  %s5 = inlined_call_operand.hbm [shape: f32[1,128], index: 5, kind: input, shape index: {}]
  %s6 = inlined_call_operand.hbm [shape: bf16[128,128], index: 6, kind: input, shape index: {}]
  %s7 = inlined_call_operand.hbm [shape: f32[1,128], index: 7, kind: input, shape index: {}]
  %s8 = inlined_call_operand.hbm [shape: bf16[2,16,16,128], index: 8, kind: output, shape index: {}]
  %s9 = sld [smem:[#allocation0]]
  $region97: #{bottleneck_forward.1} parent=0
    _
  %s11 = ssub.s32 1, %s9
  %s12 = scalar_select 0, %s11, %s9
  $region1: #{bottleneck_forward.1} parent=0
    #allocation3 [shape = 'u8[221184]{0}', space=vmem, size = 0x36000, scoped, tag = 'input window, operand 0']
    #allocation4 [shape = 's32[2]{0}', space=sflag, size = 0x8, scoped, tag = 'scoped memory for bottleneck_forward.1']
    #allocation5 [shape = 's32[2]{0}', space=sflag, size = 0x8, scoped, tag = 'scoped memory for bottleneck_forward.1']
    #allocation6 [shape = 'u8[32768]{0}', space=vmem, size = 0x8000, scoped, tag = 'input window, operand 1, single buffered']
    #allocation7 [shape = 's32[1]{0}', space=sflag, size = 0x4, scoped, tag = 'scoped memory for bottleneck_forward.1']
    #allocation8 [shape = 'u8[32768]{0}', space=vmem, size = 0x8000, scoped, tag = 'input window, operand 2, single buffered']
    #allocation9 [shape = 'u8[512]{0}', space=vmem, size = 0x400, scoped, tag = 'input window, operand 3, single buffered']
    #allocation10 [shape = 's32[1]{0}', space=sflag, size = 0x4, scoped, tag = 'scoped memory for bottleneck_forward.1']
    #allocation11 [shape = 'u8[294912]{0}', space=vmem, size = 0x48000, scoped, tag = 'input window, operand 4, single buffered']
    #allocation12 [shape = 'u8[512]{0}', space=vmem, size = 0x400, scoped, tag = 'input window, operand 5, single buffered']
    #allocation13 [shape = 's32[1]{0}', space=sflag, size = 0x4, scoped, tag = 'scoped memory for bottleneck_forward.1']
    #allocation14 [shape = 'u8[32768]{0}', space=vmem, size = 0x8000, scoped, tag = 'input window, operand 6, single buffered']
    #allocation15 [shape = 'u8[512]{0}', space=vmem, size = 0x400, scoped, tag = 'input window, operand 7, single buffered']
    #allocation16 [shape = 's32[1]{0}', space=sflag, size = 0x4, scoped, tag = 'scoped memory for bottleneck_forward.1']
    #allocation17 [shape = 'u8[131072]{0}', space=vmem, size = 0x20000, scoped, tag = 'output window, operand 0']
    %13 = vsyncpa [#allocation4], 0
    %s14 = scalar_lea.sflag [#allocation4], 1
    %15 = vsyncpa %s14, 0
    %16 = vsyncpa [#allocation7], 0
    %17 = vsyncpa [#allocation10], 0
    %18 = vsyncpa [#allocation13], 0
    %19 = vsyncpa [#allocation16], 0
    %20 = vsyncpa [#allocation5], 0
    %s21 = scalar_lea.sflag [#allocation5], 1
    %22 = vsyncpa %s21, 0
    loop: start=0, step=1, limit=4
    $region2: #{bottleneck_forward.1} parent=1 // loop_pre_header
      _
    $region3: #{bottleneck_forward.1} parent=1 // loop_header
      %s24 = sphi 0, %s28
      %p25 = scmp.ge.s32.totalorder %s24, 4
      %s31 = sphi 0, %s43
      %s32 = sphi 0, %s39
      %s33 = sphi 0, %s31
      %s34 = sphi 0, %s32
      %s35 = sphi 0, %s33
      %s36 = sphi 0, %s34
      %s46 = sphi 0, %s48
      %s49 = sphi 0, %s46
      %s50 = sphi 0, %s49
      %s66 = sphi 0, %s50
      %s70 = sphi 0, %s70
      %s72 = sphi 0, %s70
      %s73 = sphi 0, %s72
      %s87 = sphi 0, %s73
      %s91 = sphi 0, %s91
      %s93 = sphi 0, %s91
      %s94 = sphi 0, %s93
      %s108 = sphi 0, %s94
      %s112 = sphi 0, %s112
      %s114 = sphi 0, %s112
      %s115 = sphi 0, %s114
      %s129 = sphi 0, %s115
      %s133 = sphi 0, %s133
      %s135 = sphi 0, %s133
      %s136 = sphi 0, %s135
      %s150 = sphi 0, %s136
      %s154 = sphi 0, %s154
      %s156 = sphi 0, %s154
      %s157 = sphi 0, %s156
      %s171 = sphi 0, %s157
      %s175 = sphi 0, %s175
      %s177 = sphi 0, %s175
      %s178 = sphi 0, %s177
      %s192 = sphi 0, %s178
      %s196 = sphi 0, %s196
      %s198 = sphi 0, %s196
      %s199 = sphi 0, %s198
      %s213 = sphi 0, %s199
      %s221 = sphi 0, %s223
      %s224 = sphi 0, %s221
      %s225 = sphi 0, %s224
      %s241 = sphi 0, %s225
    $region4: #{bottleneck_forward.1} parent=1 // loop_header_branch
      %27 = sbr.rel (%p25) target = $region8
    $region5: #{bottleneck_forward.1} parent=1 // loop_body
      %s29 = ssub.s32 %s24, 1
      %s30 = ssub.s32 %s24, 2
      %s37 = sadd.s32 1, %s32
      %p38 = scmp.ge.s32.totalorder %s37, 1
      %s39 = scalar_select %p38, 0, %s37
      %s40 = sadd.s32 1, %s31
      %s41 = scalar_select %p38, %s40, %s31
      %p42 = scmp.ge.s32.totalorder %s41, 2
      %s43 = scalar_select %p42, 0, %s41
      %s44 = ssub.s32 %s31, %s43
      %p45 = scmp.eq.s32.totalorder %s44, 0
      %s47 = sadd.s32 %s46, 1
      %s48 = scalar_select %p45, %s46, %s47
      %p51 = pneg %p45
      %p52 = scmp.eq.s32.totalorder %s24, 1
      %p53 = por %p51, %p52
      %p54 = scmp.ne.s32.totalorder %s46, %s49
      %p55 = scmp.eq.s32.totalorder %s24, 0
      %p56 = por %p54, %p55
      %p57 = scmp.ne.s32.totalorder %s46, %s49
      %p58 = scmp.eq.s32.totalorder %s29, 1
      %p59 = por %p57, %p58
      %p60 = scmp.ne.s32.totalorder %s49, %s50
      %p61 = scmp.eq.s32.totalorder %s29, 0
      %p62 = por %p60, %p61
      %p63 = scmp.ne.s32.totalorder %s49, %s50
      %p64 = scmp.eq.s32.totalorder %s30, 1
      %p65 = por %p63, %p64
      %p67 = scmp.ne.s32.totalorder %s50, %s66
      %p68 = scmp.eq.s32.totalorder %s30, 0
      %p69 = por %p67, %p68
      %s71 = sadd.s32 %s70, 1
      %p74 = scmp.eq.s32.totalorder %s24, 1
      %p75 = scmp.ne.s32.totalorder %s70, %s72
      %p76 = scmp.eq.s32.totalorder %s24, 0
      %p77 = por %p75, %p76
      %p78 = scmp.ne.s32.totalorder %s70, %s72
      %p79 = scmp.eq.s32.totalorder %s29, 1
      %p80 = por %p78, %p79
      %p81 = scmp.ne.s32.totalorder %s72, %s73
      %p82 = scmp.eq.s32.totalorder %s29, 0
      %p83 = por %p81, %p82
      %p84 = scmp.ne.s32.totalorder %s72, %s73
      %p85 = scmp.eq.s32.totalorder %s30, 1
      %p86 = por %p84, %p85
      %p88 = scmp.ne.s32.totalorder %s73, %s87
      %p89 = scmp.eq.s32.totalorder %s30, 0
      %p90 = por %p88, %p89
      %s92 = sadd.s32 %s91, 1
      %p95 = scmp.eq.s32.totalorder %s24, 1
      %p96 = scmp.ne.s32.totalorder %s91, %s93
      %p97 = scmp.eq.s32.totalorder %s24, 0
      %p98 = por %p96, %p97
      %p99 = scmp.ne.s32.totalorder %s91, %s93
      %p100 = scmp.eq.s32.totalorder %s29, 1
      %p101 = por %p99, %p100
      %p102 = scmp.ne.s32.totalorder %s93, %s94
      %p103 = scmp.eq.s32.totalorder %s29, 0
      %p104 = por %p102, %p103
      %p105 = scmp.ne.s32.totalorder %s93, %s94
      %p106 = scmp.eq.s32.totalorder %s30, 1
      %p107 = por %p105, %p106
      %p109 = scmp.ne.s32.totalorder %s94, %s108
      %p110 = scmp.eq.s32.totalorder %s30, 0
      %p111 = por %p109, %p110
      %s113 = sadd.s32 %s112, 1
      %p116 = scmp.eq.s32.totalorder %s24, 1
      %p117 = scmp.ne.s32.totalorder %s112, %s114
      %p118 = scmp.eq.s32.totalorder %s24, 0
      %p119 = por %p117, %p118
      %p120 = scmp.ne.s32.totalorder %s112, %s114
      %p121 = scmp.eq.s32.totalorder %s29, 1
      %p122 = por %p120, %p121
      %p123 = scmp.ne.s32.totalorder %s114, %s115
      %p124 = scmp.eq.s32.totalorder %s29, 0
      %p125 = por %p123, %p124
      %p126 = scmp.ne.s32.totalorder %s114, %s115
      %p127 = scmp.eq.s32.totalorder %s30, 1
      %p128 = por %p126, %p127
      %p130 = scmp.ne.s32.totalorder %s115, %s129
      %p131 = scmp.eq.s32.totalorder %s30, 0
      %p132 = por %p130, %p131
      %s134 = sadd.s32 %s133, 1
      %p137 = scmp.eq.s32.totalorder %s24, 1
      %p138 = scmp.ne.s32.totalorder %s133, %s135
      %p139 = scmp.eq.s32.totalorder %s24, 0
      %p140 = por %p138, %p139
      %p141 = scmp.ne.s32.totalorder %s133, %s135
      %p142 = scmp.eq.s32.totalorder %s29, 1
      %p143 = por %p141, %p142
      %p144 = scmp.ne.s32.totalorder %s135, %s136
      %p145 = scmp.eq.s32.totalorder %s29, 0
      %p146 = por %p144, %p145
      %p147 = scmp.ne.s32.totalorder %s135, %s136
      %p148 = scmp.eq.s32.totalorder %s30, 1
      %p149 = por %p147, %p148
      %p151 = scmp.ne.s32.totalorder %s136, %s150
      %p152 = scmp.eq.s32.totalorder %s30, 0
      %p153 = por %p151, %p152
      %s155 = sadd.s32 %s154, 1
      %p158 = scmp.eq.s32.totalorder %s24, 1
      %p159 = scmp.ne.s32.totalorder %s154, %s156
      %p160 = scmp.eq.s32.totalorder %s24, 0
      %p161 = por %p159, %p160
      %p162 = scmp.ne.s32.totalorder %s154, %s156
      %p163 = scmp.eq.s32.totalorder %s29, 1
      %p164 = por %p162, %p163
      %p165 = scmp.ne.s32.totalorder %s156, %s157
      %p166 = scmp.eq.s32.totalorder %s29, 0
      %p167 = por %p165, %p166
      %p168 = scmp.ne.s32.totalorder %s156, %s157
      %p169 = scmp.eq.s32.totalorder %s30, 1
      %p170 = por %p168, %p169
      %p172 = scmp.ne.s32.totalorder %s157, %s171
      %p173 = scmp.eq.s32.totalorder %s30, 0
      %p174 = por %p172, %p173
      %s176 = sadd.s32 %s175, 1
      %p179 = scmp.eq.s32.totalorder %s24, 1
      %p180 = scmp.ne.s32.totalorder %s175, %s177
      %p181 = scmp.eq.s32.totalorder %s24, 0
      %p182 = por %p180, %p181
      %p183 = scmp.ne.s32.totalorder %s175, %s177
      %p184 = scmp.eq.s32.totalorder %s29, 1
      %p185 = por %p183, %p184
      %p186 = scmp.ne.s32.totalorder %s177, %s178
      %p187 = scmp.eq.s32.totalorder %s29, 0
      %p188 = por %p186, %p187
      %p189 = scmp.ne.s32.totalorder %s177, %s178
      %p190 = scmp.eq.s32.totalorder %s30, 1
      %p191 = por %p189, %p190
      %p193 = scmp.ne.s32.totalorder %s178, %s192
      %p194 = scmp.eq.s32.totalorder %s30, 0
      %p195 = por %p193, %p194
      %s197 = sadd.s32 %s196, 1
      %p200 = scmp.eq.s32.totalorder %s24, 1
      %p201 = scmp.ne.s32.totalorder %s196, %s198
      %p202 = scmp.eq.s32.totalorder %s24, 0
      %p203 = por %p201, %p202
      %p204 = scmp.ne.s32.totalorder %s196, %s198
      %p205 = scmp.eq.s32.totalorder %s29, 1
      %p206 = por %p204, %p205
      %p207 = scmp.ne.s32.totalorder %s198, %s199
      %p208 = scmp.eq.s32.totalorder %s29, 0
      %p209 = por %p207, %p208
      %p210 = scmp.ne.s32.totalorder %s198, %s199
      %p211 = scmp.eq.s32.totalorder %s30, 1
      %p212 = por %p210, %p211
      %p214 = scmp.ne.s32.totalorder %s199, %s213
      %p215 = scmp.eq.s32.totalorder %s30, 0
      %p216 = por %p214, %p215
      %s217 = ssub.s32 %s31, %s43
      %s218 = ssub.s32 %s32, %s39
      %s219 = sor.u32 %s217, %s218
      %p220 = scmp.eq.s32.totalorder %s219, 0
      %s222 = sadd.s32 %s221, 1
      %s223 = scalar_select %p220, %s221, %s222
      %p226 = pneg %p220
      %p227 = scmp.eq.s32.totalorder %s24, 1
      %p228 = por %p226, %p227
      %p229 = scmp.ne.s32.totalorder %s221, %s224
      %p230 = scmp.eq.s32.totalorder %s24, 0
      %p231 = por %p229, %p230
      %p232 = scmp.ne.s32.totalorder %s221, %s224
      %p233 = scmp.eq.s32.totalorder %s29, 1
      %p234 = por %p232, %p233
      %p235 = scmp.ne.s32.totalorder %s224, %s225
      %p236 = scmp.eq.s32.totalorder %s29, 0
      %p237 = por %p235, %p236
      %p238 = scmp.ne.s32.totalorder %s224, %s225
      %p239 = scmp.eq.s32.totalorder %s30, 1
      %p240 = por %p238, %p239
      %p242 = scmp.ne.s32.totalorder %s225, %s241
      %p243 = scmp.eq.s32.totalorder %s30, 0
      %p244 = por %p242, %p243
      %p245 = scmp.le.s32.totalorder 1, %s24
      %p246 = scmp.lt.s32.totalorder %s24, 3
      %p247 = pnand %p245, %p246
      %p248 = pneg %p247
      // Predicated region
      $region9: #{bottleneck_forward.1} parent=5 // pred_check
        _
      $region10: #{bottleneck_forward.1} parent=5 // pred_check_branch
        %250 = sbr.rel (%p247) target = $region12
      $region11: #{bottleneck_forward.1} parent=5 // pred_region
        %s251 = ssub.s32 %s24, 1
        // Predicated region
        $region13: #{bottleneck_forward.1} parent=11 // pred_check
          %p252 = pneg %p83
        $region14: #{bottleneck_forward.1} parent=11 // pred_check_branch
          %254 = sbr.rel (%p252) target = $region16
        $region15: #{bottleneck_forward.1} parent=11 // pred_region
          %s256 = ssub.s32 1024, 1024
          %257 = vsyncadd [#allocation7], %s256
          %s258 = sshll.u32 [#allocation6], 4
          %s259 = int_to_ptr.vmem [resolvable:$true] %s258
          %264 = dma.hbm_to_vmem [thread:$0]  %s1, 1024, %s259, [#allocation7], 64, 64, 4
        $region16: #{bottleneck_forward.1} parent=11 // pred_fallthru
          _
        // Predicated region
        $region17: #{bottleneck_forward.1} parent=11 // pred_check
          %p265 = pneg %p104
        $region18: #{bottleneck_forward.1} parent=11 // pred_check_branch
          %267 = sbr.rel (%p265) target = $region20
        $region19: #{bottleneck_forward.1} parent=11 // pred_region
          %s269 = ssub.s32 1024, 1024
          %270 = vsyncadd [#allocation7], %s269
          %s271 = sshll.u32 [#allocation8], 4
          %s272 = int_to_ptr.vmem [resolvable:$true] %s271
          %277 = dma.hbm_to_vmem [thread:$0]  %s2, 1024, %s272, [#allocation7], 64, 64, 4
        $region20: #{bottleneck_forward.1} parent=11 // pred_fallthru
          _
        // Predicated region
        $region21: #{bottleneck_forward.1} parent=11 // pred_check
          %p278 = pneg %p125
        $region22: #{bottleneck_forward.1} parent=11 // pred_check_branch
          %280 = sbr.rel (%p278) target = $region24
        $region23: #{bottleneck_forward.1} parent=11 // pred_region
          %s282 = ssub.s32 16, 16
          %283 = vsyncadd [#allocation10], %s282
          %s285 = sshll.u32 [#allocation9], 4
          %s286 = int_to_ptr.vmem [resolvable:$true] %s285
          %288 = dma.hbm_to_vmem [thread:$0]  %s3, 16, %s286, [#allocation10]
        $region24: #{bottleneck_forward.1} parent=11 // pred_fallthru
          _
        // Predicated region
        $region25: #{bottleneck_forward.1} parent=11 // pred_check
          %p289 = pneg %p146
        $region26: #{bottleneck_forward.1} parent=11 // pred_check_branch
          %291 = sbr.rel (%p289) target = $region28
        $region27: #{bottleneck_forward.1} parent=11 // pred_region
          %s293 = ssub.s32 9216, 9216
          %294 = vsyncadd [#allocation10], %s293
          %s295 = sshll.u32 [#allocation11], 4
          %s296 = int_to_ptr.vmem [resolvable:$true] %s295
          %301 = dma.hbm_to_vmem [thread:$0]  %s4, 9216, %s296, [#allocation10], 64, 64, 4
        $region28: #{bottleneck_forward.1} parent=11 // pred_fallthru
          _
        // Predicated region
        $region29: #{bottleneck_forward.1} parent=11 // pred_check
          %p302 = pneg %p167
        $region30: #{bottleneck_forward.1} parent=11 // pred_check_branch
          %304 = sbr.rel (%p302) target = $region32
        $region31: #{bottleneck_forward.1} parent=11 // pred_region
          %s306 = ssub.s32 16, 16
          %307 = vsyncadd [#allocation13], %s306
          %s309 = sshll.u32 [#allocation12], 4
          %s310 = int_to_ptr.vmem [resolvable:$true] %s309
          %312 = dma.hbm_to_vmem [thread:$0]  %s5, 16, %s310, [#allocation13]
        $region32: #{bottleneck_forward.1} parent=11 // pred_fallthru
          _
        // Predicated region
        $region33: #{bottleneck_forward.1} parent=11 // pred_check
          %p313 = pneg %p188
        $region34: #{bottleneck_forward.1} parent=11 // pred_check_branch
          %315 = sbr.rel (%p313) target = $region36
        $region35: #{bottleneck_forward.1} parent=11 // pred_region
          %s317 = ssub.s32 1024, 1024
          %318 = vsyncadd [#allocation13], %s317
          %s319 = sshll.u32 [#allocation14], 4
          %s320 = int_to_ptr.vmem [resolvable:$true] %s319
          %325 = dma.hbm_to_vmem [thread:$0]  %s6, 1024, %s320, [#allocation13], 64, 64, 4
        $region36: #{bottleneck_forward.1} parent=11 // pred_fallthru
          _
        // Predicated region
        $region37: #{bottleneck_forward.1} parent=11 // pred_check
          %p326 = pneg %p209
        $region38: #{bottleneck_forward.1} parent=11 // pred_check_branch
          %328 = sbr.rel (%p326) target = $region40
        $region39: #{bottleneck_forward.1} parent=11 // pred_region
          %s330 = ssub.s32 16, 16
          %331 = vsyncadd [#allocation16], %s330
          %s333 = sshll.u32 [#allocation15], 4
          %s334 = int_to_ptr.vmem [resolvable:$true] %s333
          %336 = dma.hbm_to_vmem [thread:$0]  %s7, 16, %s334, [#allocation16]
        $region40: #{bottleneck_forward.1} parent=11 // pred_fallthru
          _
      $region12: #{bottleneck_forward.1} parent=5 // pred_fallthru
        _
      %p337 = scmp.lt.s32.totalorder %s24, 2
      // Predicated region
      $region41: #{bottleneck_forward.1} parent=5 // pred_check
        %p338 = pneg %p337
      $region42: #{bottleneck_forward.1} parent=5 // pred_check_branch
        %340 = sbr.rel (%p338) target = $region44
      $region43: #{bottleneck_forward.1} parent=5 // pred_region
        // Predicated region
        $region45: #{bottleneck_forward.1} parent=43 // pred_check
          %p341 = pneg %p56
        $region46: #{bottleneck_forward.1} parent=43 // pred_check_branch
          %343 = sbr.rel (%p341) target = $region48
        $region47: #{bottleneck_forward.1} parent=43 // pred_region
          %s344 = sand.u32 %s46, 1
          %s345 = scalar_lea.sflag [#allocation4], %s344
          %s346 = sand.u32 %s46, 1
          %s347 = smul.addr %s346, 216
          %s348 = scalar_lea.vmem [#allocation3], %s347
          %s350 = ssub.s32 3456, 3456
          %351 = vsyncadd %s345, %s350
          %s352 = smul.addr %s31, 54
          %s353 = smul.addr %s352, 64
          %s354 = scalar_lea.hbm %s0, %s353
          %s355 = sshll.u32 %s348, 4
          %s356 = int_to_ptr.vmem [resolvable:$true] %s355
          %361 = dma.hbm_to_vmem [thread:$0]  %s354, 3456, %s356, %s345, 64, 64, 4
        $region48: #{bottleneck_forward.1} parent=43 // pred_fallthru
          _
      $region44: #{bottleneck_forward.1} parent=5 // pred_fallthru
        _
      %p362 = scmp.le.s32.totalorder 1, %s24
      %p363 = scmp.lt.s32.totalorder %s24, 3
      %p364 = pnand %p362, %p363
      %p365 = pneg %p364
      // Predicated region
      $region49: #{bottleneck_forward.1} parent=5 // pred_check
        _
      $region50: #{bottleneck_forward.1} parent=5 // pred_check_branch
        %367 = sbr.rel (%p364) target = $region52
      $region51: #{bottleneck_forward.1} parent=5 // pred_region
        %s368 = ssub.s32 %s24, 1
        %s369 = sand.u32 %s49, 1
        %s370 = scalar_lea.sflag [#allocation4], %s369
        %s371 = sand.u32 %s49, 1
        %s372 = smul.addr %s371, 216
        %s373 = scalar_lea.vmem [#allocation3], %s372
        // Predicated region
        $region53: #{bottleneck_forward.1} parent=51 // pred_check
          %p374 = pneg %p62
        $region54: #{bottleneck_forward.1} parent=51 // pred_check_branch
          %376 = sbr.rel (%p374) target = $region56
        $region55: #{bottleneck_forward.1} parent=51 // pred_region
          %377 = dma.done %s370, 3456
        $region56: #{bottleneck_forward.1} parent=51 // pred_fallthru
          _
        // Predicated region
        $region57: #{bottleneck_forward.1} parent=51 // pred_check
          %p378 = pneg %p83
        $region58: #{bottleneck_forward.1} parent=51 // pred_check_branch
          %380 = sbr.rel (%p378) target = $region60
        $region59: #{bottleneck_forward.1} parent=51 // pred_region
          %381 = dma.done [#allocation7], 1024
        $region60: #{bottleneck_forward.1} parent=51 // pred_fallthru
          _
        // Predicated region
        $region61: #{bottleneck_forward.1} parent=51 // pred_check
          %p382 = pneg %p104
        $region62: #{bottleneck_forward.1} parent=51 // pred_check_branch
          %384 = sbr.rel (%p382) target = $region64
        $region63: #{bottleneck_forward.1} parent=51 // pred_region
          %385 = dma.done [#allocation7], 1024
        $region64: #{bottleneck_forward.1} parent=51 // pred_fallthru
          _
        // Predicated region
        $region65: #{bottleneck_forward.1} parent=51 // pred_check
          %p386 = pneg %p125
        $region66: #{bottleneck_forward.1} parent=51 // pred_check_branch
          %388 = sbr.rel (%p386) target = $region68
        $region67: #{bottleneck_forward.1} parent=51 // pred_region
          %389 = dma.done [#allocation10], 16
        $region68: #{bottleneck_forward.1} parent=51 // pred_fallthru
          _
        // Predicated region
        $region69: #{bottleneck_forward.1} parent=51 // pred_check
          %p390 = pneg %p146
        $region70: #{bottleneck_forward.1} parent=51 // pred_check_branch
          %392 = sbr.rel (%p390) target = $region72
        $region71: #{bottleneck_forward.1} parent=51 // pred_region
          %393 = dma.done [#allocation10], 9216
        $region72: #{bottleneck_forward.1} parent=51 // pred_fallthru
          _
        // Predicated region
        $region73: #{bottleneck_forward.1} parent=51 // pred_check
          %p394 = pneg %p167
        $region74: #{bottleneck_forward.1} parent=51 // pred_check_branch
          %396 = sbr.rel (%p394) target = $region76
        $region75: #{bottleneck_forward.1} parent=51 // pred_region
          %397 = dma.done [#allocation13], 16
        $region76: #{bottleneck_forward.1} parent=51 // pred_fallthru
          _
        // Predicated region
        $region77: #{bottleneck_forward.1} parent=51 // pred_check
          %p398 = pneg %p188
        $region78: #{bottleneck_forward.1} parent=51 // pred_check_branch
          %400 = sbr.rel (%p398) target = $region80
        $region79: #{bottleneck_forward.1} parent=51 // pred_region
          %401 = dma.done [#allocation13], 1024
        $region80: #{bottleneck_forward.1} parent=51 // pred_fallthru
          _
        // Predicated region
        $region81: #{bottleneck_forward.1} parent=51 // pred_check
          %p402 = pneg %p209
        $region82: #{bottleneck_forward.1} parent=51 // pred_check_branch
          %404 = sbr.rel (%p402) target = $region84
        $region83: #{bottleneck_forward.1} parent=51 // pred_region
          %405 = dma.done [#allocation16], 16
        $region84: #{bottleneck_forward.1} parent=51 // pred_fallthru
          _
        %s406 = sand.u32 %s49, 1
        %s407 = scalar_lea.sflag [#allocation4], %s406
        %s408 = sand.u32 %s49, 1
        %s409 = smul.addr %s408, 216
        %s410 = scalar_lea.vmem [#allocation3], %s409
        %p411 = pneg %p62
        %p412 = pneg %p59
        %p413 = pneg %p83
        %p414 = pneg %p80
        %p415 = pneg %p104
        %p416 = pneg %p101
        %p417 = pneg %p125
        %p418 = pneg %p122
        %p419 = pneg %p146
        %p420 = pneg %p143
        %p421 = pneg %p167
        %p422 = pneg %p164
        %p423 = pneg %p188
        %p424 = pneg %p185
        %p425 = pneg %p209
        %p426 = pneg %p206
        %p427 = pneg %p237
        %p428 = pneg %p234
        %s429 = sand.u32 %s224, 1
        %s430 = scalar_lea.sflag [#allocation5], %s429
        %s431 = sand.u32 %s224, 1
        %s432 = smul.addr %s431, 128
        %s433 = scalar_lea.vmem [#allocation17], %s432
        %s434 = smul.u32 16, %s34
        %s436 = smul.u32 %s34, 16
        %s437 = smul.u32 %s436, 3
        %s438 = smul.addr %s437, 4
        %s439 = scalar_lea.vmem %s373, %s438 [#allocation3]
        %v440 = vld [vmem:[%s439] sm:$0xf]
        %v441 = vld [vmem:[%s439 + $0x4] sm:$0xf]
        %v442 = vld [vmem:[%s439 + $0x8] sm:$0xf]
        %v443 = vld [vmem:[%s439 + $0xc] sm:$0xf]
        %v444 = vld [vmem:[%s439 + $0x10] sm:$0xf]
        %v445 = vld [vmem:[%s439 + $0x14] sm:$0xf]
        %v446 = vld [vmem:[%s439 + $0x18] sm:$0xf]
        %v447 = vld [vmem:[%s439 + $0x1c] sm:$0xf]
        %v448 = vld [vmem:[%s439 + $0x20] sm:$0xf]
        %v449 = vld [vmem:[%s439 + $0x24] sm:$0xf]
        %v450 = vld [vmem:[%s439 + $0x28] sm:$0xf]
        %v451 = vld [vmem:[%s439 + $0x2c] sm:$0xf]
        %v452 = vld [vmem:[%s439 + $0x30] sm:$0xf]
        %v453 = vld [vmem:[%s439 + $0x34] sm:$0xf]
        %v454 = vld [vmem:[%s439 + $0x38] sm:$0xf]
        %v455 = vld [vmem:[%s439 + $0x3c] sm:$0xf]
        %v456 = vld [vmem:[%s439 + $0x40] sm:$0xf]
        %v457 = vld [vmem:[%s439 + $0x44] sm:$0xf]
        %v458 = vld [vmem:[%s439 + $0x48] sm:$0xf]
        %v459 = vld [vmem:[%s439 + $0x4c] sm:$0xf]
        %v460 = vld [vmem:[%s439 + $0x50] sm:$0xf]
        %v461 = vld [vmem:[%s439 + $0x54] sm:$0xf]
        %v462 = vld [vmem:[%s439 + $0x58] sm:$0xf]
        %v463 = vld [vmem:[%s439 + $0x5c] sm:$0xf]
        %v464 = vld [vmem:[%s439 + $0x60] sm:$0xf]
        %v465 = vld [vmem:[%s439 + $0x64] sm:$0xf]
        %v466 = vld [vmem:[%s439 + $0x68] sm:$0xf]
        %v467 = vld [vmem:[%s439 + $0x6c] sm:$0xf]
        %v468 = vld [vmem:[%s439 + $0x70] sm:$0xf]
        %v469 = vld [vmem:[%s439 + $0x74] sm:$0xf]
        %v470 = vld [vmem:[%s439 + $0x78] sm:$0xf]
        %v471 = vld [vmem:[%s439 + $0x7c] sm:$0xf]
        %v472 = vld [vmem:[%s439 + $0x80] sm:$0xf]
        %v473 = vld [vmem:[%s439 + $0x84] sm:$0xf]
        %v474 = vld [vmem:[%s439 + $0x88] sm:$0xf]
        %v475 = vld [vmem:[%s439 + $0x8c] sm:$0xf]
        %v476 = vld [vmem:[%s439 + $0x90] sm:$0xf]
        %v477 = vld [vmem:[%s439 + $0x94] sm:$0xf]
        %v478 = vld [vmem:[%s439 + $0x98] sm:$0xf]
        %v479 = vld [vmem:[%s439 + $0x9c] sm:$0xf]
        %v480 = vld [vmem:[%s439 + $0xa0] sm:$0xf]
        %v481 = vld [vmem:[%s439 + $0xa4] sm:$0xf]
        %v482 = vld [vmem:[%s439 + $0xa8] sm:$0xf]
        %v483 = vld [vmem:[%s439 + $0xac] sm:$0xf]
        %v484 = vld [vmem:[%s439 + $0xb0] sm:$0xf]
        %v485 = vld [vmem:[%s439 + $0xb4] sm:$0xf]
        %v486 = vld [vmem:[%s439 + $0xb8] sm:$0xf]
        %v487 = vld [vmem:[%s439 + $0xbc] sm:$0xf]
        %v488 = vld [vmem:[%s439 + $0xc0] sm:$0xf]
        %v489 = vld [vmem:[%s439 + $0xc4] sm:$0xf]
        %v490 = vld [vmem:[%s439 + $0xc8] sm:$0xf]
        %v491 = vld [vmem:[%s439 + $0xcc] sm:$0xf]
        %v492 = vld [vmem:[%s439 + $0xd0] sm:$0xf]
        %v493 = vld [vmem:[%s439 + $0xd4] sm:$0xf]
        %v494 = vld [vmem:[#allocation6] sm:$0xf]
        %v495 = vld [vmem:[#allocation6 + $0x4] sm:$0xf]
        %v496 = vld [vmem:[#allocation6 + $0x8] sm:$0xf]
        %v497 = vld [vmem:[#allocation6 + $0xc] sm:$0xf]
        %v498 = vld [vmem:[#allocation6 + $0x10] sm:$0xf]
        %v499 = vld [vmem:[#allocation6 + $0x14] sm:$0xf]
        %v500 = vld [vmem:[#allocation6 + $0x18] sm:$0xf]
        %v501 = vld [vmem:[#allocation6 + $0x1c] sm:$0xf]
        %v502 = vld [vmem:[#allocation6 + $0x20] sm:$0xf]
        %v503 = vld [vmem:[#allocation6 + $0x24] sm:$0xf]
        %v504 = vld [vmem:[#allocation6 + $0x28] sm:$0xf]
        %v505 = vld [vmem:[#allocation6 + $0x2c] sm:$0xf]
        %v506 = vld [vmem:[#allocation6 + $0x30] sm:$0xf]
        %v507 = vld [vmem:[#allocation6 + $0x34] sm:$0xf]
        %v508 = vld [vmem:[#allocation6 + $0x38] sm:$0xf]
        %v509 = vld [vmem:[#allocation6 + $0x3c] sm:$0xf]
        %v510 = vld [vmem:[#allocation9] sm:$0x1]
        %v512 = vlaneseq
        %v513 = vshrl.u32 %v512, 7
        %v514 = vsub.s32 0, %v513
        %v515 = vrot.slane %v510, %v514
        %v571 = vunpack.c.l.b16 %v440
        %v572 = vunpack.c.l.b16 %v441
        %v573 = vunpack.c.l.b16 %v442
        %v574 = vunpack.c.l.b16 %v443
        %v575 = vunpack.c.l.b16 %v444
        %v576 = vunpack.c.l.b16 %v445
        %v577 = vunpack.c.l.b16 %v446
        %v578 = vunpack.c.l.b16 %v447
        %v579 = vunpack.c.l.b16 %v448
        %v580 = vunpack.c.l.b16 %v449
        %v581 = vunpack.c.l.b16 %v450
        %v582 = vunpack.c.l.b16 %v451
        %v583 = vunpack.c.l.b16 %v452
        %v584 = vunpack.c.l.b16 %v453
        %v585 = vunpack.c.l.b16 %v454
        %v586 = vunpack.c.l.b16 %v455
        %v587 = vunpack.c.l.b16 %v456
        %v588 = vunpack.c.l.b16 %v457
        %v589 = vunpack.c.l.b16 %v458
        %v590 = vunpack.c.l.b16 %v459
        %v591 = vunpack.c.l.b16 %v460
        %v592 = vunpack.c.l.b16 %v461
        %v593 = vunpack.c.l.b16 %v462
        %v594 = vunpack.c.l.b16 %v463
        %v595 = vunpack.c.l.b16 %v464
        %v596 = vunpack.c.l.b16 %v465
        %v597 = vunpack.c.l.b16 %v466
        %v598 = vunpack.c.l.b16 %v467
        %v599 = vunpack.c.l.b16 %v468
        %v600 = vunpack.c.l.b16 %v469
        %v601 = vunpack.c.l.b16 %v470
        %v602 = vunpack.c.l.b16 %v471
        %v603 = vunpack.c.l.b16 %v472
        %v604 = vunpack.c.l.b16 %v473
        %v605 = vunpack.c.l.b16 %v474
        %v606 = vunpack.c.l.b16 %v475
        %v607 = vunpack.c.l.b16 %v476
        %v608 = vunpack.c.l.b16 %v477
        %v609 = vunpack.c.l.b16 %v478
        %v610 = vunpack.c.l.b16 %v479
        %v611 = vunpack.c.l.b16 %v480
        %v612 = vunpack.c.l.b16 %v481
        %v613 = vunpack.c.l.b16 %v482
        %v614 = vunpack.c.l.b16 %v483
        %v615 = vunpack.c.l.b16 %v484
        %v616 = vunpack.c.l.b16 %v485
        %v617 = vunpack.c.l.b16 %v486
        %v618 = vunpack.c.l.b16 %v487
        %v619 = vunpack.c.l.b16 %v488
        %v620 = vunpack.c.l.b16 %v489
        %v621 = vunpack.c.l.b16 %v490
        %v622 = vunpack.c.l.b16 %v491
        %v623 = vunpack.c.l.b16 %v492
        %v624 = vunpack.c.l.b16 %v493
        %v625 = vpack.c.b16 %v572, %v571
        %v626 = vpack.c.b16 %v574, %v573
        %v627 = vpack.c.b16 %v576, %v575
        %v628 = vpack.c.b16 %v578, %v577
        %v629 = vpack.c.b16 %v580, %v579
        %v630 = vpack.c.b16 %v582, %v581
        %v631 = vpack.c.b16 %v584, %v583
        %v632 = vpack.c.b16 %v586, %v585
        %v633 = vpack.c.b16 %v588, %v587
        %v634 = vpack.c.b16 %v590, %v589
        %v635 = vpack.c.b16 %v592, %v591
        %v636 = vpack.c.b16 %v594, %v593
        %v637 = vpack.c.b16 %v596, %v595
        %v638 = vpack.c.b16 %v598, %v597
        %v639 = vpack.c.b16 %v600, %v599
        %v640 = vpack.c.b16 %v602, %v601
        %v641 = vpack.c.b16 %v604, %v603
        %v642 = vpack.c.b16 %v606, %v605
        %v643 = vpack.c.b16 %v608, %v607
        %v644 = vpack.c.b16 %v610, %v609
        %v645 = vpack.c.b16 %v612, %v611
        %v646 = vpack.c.b16 %v614, %v613
        %v647 = vpack.c.b16 %v616, %v615
        %v648 = vpack.c.b16 %v618, %v617
        %v649 = vpack.c.b16 %v620, %v619
        %v650 = vpack.c.b16 %v622, %v621
        %v651 = vpack.c.b16 %v624, %v623
        %v695 = vunpack.c.l.b16 %v494
        %v696 = vunpack.c.l.b16 %v495
        %v697 = vunpack.c.l.b16 %v496
        %v698 = vunpack.c.l.b16 %v497
        %v699 = vunpack.c.l.b16 %v498
        %v700 = vunpack.c.l.b16 %v499
        %v701 = vunpack.c.l.b16 %v500
        %v702 = vunpack.c.l.b16 %v501
        %v703 = vunpack.c.l.b16 %v502
        %v704 = vunpack.c.l.b16 %v503
        %v705 = vunpack.c.l.b16 %v504
        %v706 = vunpack.c.l.b16 %v505
        %v707 = vunpack.c.l.b16 %v506
        %v708 = vunpack.c.l.b16 %v507
        %v709 = vunpack.c.l.b16 %v508
        %v710 = vunpack.c.l.b16 %v509
        %v711 = vpack.c.b16 %v696, %v695
        %v712 = vpack.c.b16 %v698, %v697
        %v713 = vpack.c.b16 %v700, %v699
        %v714 = vpack.c.b16 %v702, %v701
        %v715 = vpack.c.b16 %v704, %v703
        %v716 = vpack.c.b16 %v706, %v705
        %v717 = vpack.c.b16 %v708, %v707
        %v718 = vpack.c.b16 %v710, %v709
        %727 = vmatprep.subr.bf16.mxu0 0
        %728 = vmatpush1.bf16.msra.mxu0 %v711
        %729 = vmatprep.subr.bf16.mxu0 0
        %730 = vmatpush1.bf16.msra.mxu0 %v712
        %731 = vmatprep.subr.bf16.mxu0 0
        %732 = vmatpush1.bf16.msra.mxu0 %v713
        %733 = vmatprep.subr.bf16.mxu0 0
        %734 = vmatpush1.bf16.msra.mxu0 %v714
        %735 = vmatprep.subr.bf16.mxu0 0
        %736 = vmatpush1.bf16.msra.mxu0 %v715
        %737 = vmatprep.subr.bf16.mxu0 0
        %738 = vmatpush1.bf16.msra.mxu0 %v716
        %739 = vmatprep.subr.bf16.mxu0 0
        %740 = vmatpush1.bf16.msra.mxu0 %v717
        %741 = vmatprep.subr.bf16.mxu0 0
        %742 = vmatpush1.bf16.msra.mxu0 %v718
        %743 = vmatprep.subr.bf16.mxu0 0
        %744 = vmatpush1.bf16.msra.mxu0 0
        %745 = vmatprep.subr.bf16.mxu0 0
        %746 = vmatpush1.bf16.msra.mxu0 0
        %747 = vmatprep.subr.bf16.mxu0 0
        %748 = vmatpush1.bf16.msra.mxu0 0
        %749 = vmatprep.subr.bf16.mxu0 0
        %750 = vmatpush1.bf16.msra.mxu0 0
        %751 = vmatprep.subr.bf16.mxu0 0
        %752 = vmatpush1.bf16.msra.mxu0 0
        %753 = vmatprep.subr.bf16.mxu0 0
        %754 = vmatpush1.bf16.msra.mxu0 0
        %755 = vmatprep.subr.bf16.mxu0 0
        %756 = vmatpush1.bf16.msra.mxu0 0
        %757 = vmatprep.subr.bf16.mxu0 0
        %758 = vmatpush1.bf16.msra.mxu0 0
        %759 = vmatprep.mubr.bf16.mxu0 0
        %760 = vmatmul.mubr.bf16.gmra.mrb[0].mxu0 %v625
        %v761 = vpop.f32.mrb[0].mxu0
        %v762 = vadd.f32 %v515, %v761
        %v763 = vpop.f32.mrb[0].mxu0
        %v764 = vpop.f32.mrb[0].mxu0
        %v765 = vadd.f32 %v515, %v764
        %v766 = vpop.f32.mrb[0].mxu0
        %767 = vmatprep.mubr.bf16.mxu0 0
        %768 = vmatmul.mubr.bf16.gmra.mrb[0].mxu0 %v626
        %v769 = vpop.f32.mrb[0].mxu0
        %v770 = vadd.f32 %v515, %v769
        %v771 = vpop.f32.mrb[0].mxu0
        %v772 = vpop.f32.mrb[0].mxu0
        %v773 = vadd.f32 %v515, %v772
        %v774 = vpop.f32.mrb[0].mxu0
        %775 = vmatprep.mubr.bf16.mxu0 0
        %776 = vmatmul.mubr.bf16.gmra.mrb[0].mxu0 %v627
        %v777 = vpop.f32.mrb[0].mxu0
        %v778 = vadd.f32 %v515, %v777
        %v779 = vpop.f32.mrb[0].mxu0
        %v780 = vpop.f32.mrb[0].mxu0
        %v781 = vadd.f32 %v515, %v780
        %v782 = vpop.f32.mrb[0].mxu0
        %783 = vmatprep.mubr.bf16.mxu0 0
        %784 = vmatmul.mubr.bf16.gmra.mrb[0].mxu0 %v628
        %v785 = vpop.f32.mrb[0].mxu0
        %v786 = vadd.f32 %v515, %v785
        %v787 = vpop.f32.mrb[0].mxu0
        %v788 = vpop.f32.mrb[0].mxu0
        %v789 = vadd.f32 %v515, %v788
        %v790 = vpop.f32.mrb[0].mxu0
        %791 = vmatprep.mubr.bf16.mxu0 0
        %792 = vmatmul.mubr.bf16.gmra.mrb[0].mxu0 %v629
        %v793 = vpop.f32.mrb[0].mxu0
        %v794 = vadd.f32 %v515, %v793
        %v795 = vpop.f32.mrb[0].mxu0
        %v796 = vpop.f32.mrb[0].mxu0
        %v797 = vadd.f32 %v515, %v796
        %v798 = vpop.f32.mrb[0].mxu0
        %799 = vmatprep.mubr.bf16.mxu0 0
        %800 = vmatmul.mubr.bf16.gmra.mrb[0].mxu0 %v630
        %v801 = vpop.f32.mrb[0].mxu0
        %v802 = vadd.f32 %v515, %v801
        %v803 = vpop.f32.mrb[0].mxu0
        %v804 = vpop.f32.mrb[0].mxu0
        %v805 = vadd.f32 %v515, %v804
        %v806 = vpop.f32.mrb[0].mxu0
        %807 = vmatprep.mubr.bf16.mxu0 0
        %808 = vmatmul.mubr.bf16.gmra.mrb[0].mxu0 %v631
        %v809 = vpop.f32.mrb[0].mxu0
        %v810 = vadd.f32 %v515, %v809
        %v811 = vpop.f32.mrb[0].mxu0
        %v812 = vpop.f32.mrb[0].mxu0
        %v813 = vadd.f32 %v515, %v812
        %v814 = vpop.f32.mrb[0].mxu0
        %815 = vmatprep.mubr.bf16.mxu0 0
        %816 = vmatmul.mubr.bf16.gmra.mrb[0].mxu0 %v632
        %v817 = vpop.f32.mrb[0].mxu0
        %v818 = vadd.f32 %v515, %v817
        %v819 = vpop.f32.mrb[0].mxu0
        %v820 = vpop.f32.mrb[0].mxu0
        %v821 = vadd.f32 %v515, %v820
        %v822 = vpop.f32.mrb[0].mxu0
        %823 = vmatprep.mubr.bf16.mxu0 0
        %824 = vmatmul.mubr.bf16.gmra.mrb[0].mxu0 %v633
        %v825 = vpop.f32.mrb[0].mxu0
        %v826 = vadd.f32 %v515, %v825
        %v827 = vpop.f32.mrb[0].mxu0
        %v828 = vpop.f32.mrb[0].mxu0
        %v829 = vadd.f32 %v515, %v828
        %v830 = vpop.f32.mrb[0].mxu0
        %831 = vmatprep.mubr.bf16.mxu0 0
        %832 = vmatmul.mubr.bf16.gmra.mrb[0].mxu0 %v634
        %v833 = vpop.f32.mrb[0].mxu0
        %v834 = vadd.f32 %v515, %v833
        %v835 = vpop.f32.mrb[0].mxu0
        %v836 = vpop.f32.mrb[0].mxu0
        %v837 = vadd.f32 %v515, %v836
        %v838 = vpop.f32.mrb[0].mxu0
        %839 = vmatprep.mubr.bf16.mxu0 0
        %840 = vmatmul.mubr.bf16.gmra.mrb[0].mxu0 %v635
        %v841 = vpop.f32.mrb[0].mxu0
        %v842 = vadd.f32 %v515, %v841
        %v843 = vpop.f32.mrb[0].mxu0
        %v844 = vpop.f32.mrb[0].mxu0
        %v845 = vadd.f32 %v515, %v844
        %v846 = vpop.f32.mrb[0].mxu0
        %847 = vmatprep.mubr.bf16.mxu0 0
        %848 = vmatmul.mubr.bf16.gmra.mrb[0].mxu0 %v636
        %v849 = vpop.f32.mrb[0].mxu0
        %v850 = vadd.f32 %v515, %v849
        %v851 = vpop.f32.mrb[0].mxu0
        %v852 = vpop.f32.mrb[0].mxu0
        %v853 = vadd.f32 %v515, %v852
        %v854 = vpop.f32.mrb[0].mxu0
        %855 = vmatprep.mubr.bf16.mxu0 0
        %856 = vmatmul.mubr.bf16.gmra.mrb[0].mxu0 %v637
        %v857 = vpop.f32.mrb[0].mxu0
        %v858 = vadd.f32 %v515, %v857
        %v859 = vpop.f32.mrb[0].mxu0
        %v860 = vpop.f32.mrb[0].mxu0
        %v861 = vadd.f32 %v515, %v860
        %v862 = vpop.f32.mrb[0].mxu0
        %863 = vmatprep.mubr.bf16.mxu0 0
        %864 = vmatmul.mubr.bf16.gmra.mrb[0].mxu0 %v638
        %v865 = vpop.f32.mrb[0].mxu0
        %v866 = vadd.f32 %v515, %v865
        %v867 = vpop.f32.mrb[0].mxu0
        %v868 = vpop.f32.mrb[0].mxu0
        %v869 = vadd.f32 %v515, %v868
        %v870 = vpop.f32.mrb[0].mxu0
        %871 = vmatprep.mubr.bf16.mxu0 0
        %872 = vmatmul.mubr.bf16.gmra.mrb[0].mxu0 %v639
        %v873 = vpop.f32.mrb[0].mxu0
        %v874 = vadd.f32 %v515, %v873
        %v875 = vpop.f32.mrb[0].mxu0
        %v876 = vpop.f32.mrb[0].mxu0
        %v877 = vadd.f32 %v515, %v876
        %v878 = vpop.f32.mrb[0].mxu0
        %879 = vmatprep.mubr.bf16.mxu0 0
        %880 = vmatmul.mubr.bf16.gmra.mrb[0].mxu0 %v640
        %v881 = vpop.f32.mrb[0].mxu0
        %v882 = vadd.f32 %v515, %v881
        %v883 = vpop.f32.mrb[0].mxu0
        %v884 = vpop.f32.mrb[0].mxu0
        %v885 = vadd.f32 %v515, %v884
        %v886 = vpop.f32.mrb[0].mxu0
        %887 = vmatprep.mubr.bf16.mxu0 0
        %888 = vmatmul.mubr.bf16.gmra.mrb[0].mxu0 %v641
        %v889 = vpop.f32.mrb[0].mxu0
        %v890 = vadd.f32 %v515, %v889
        %v891 = vpop.f32.mrb[0].mxu0
        %v892 = vpop.f32.mrb[0].mxu0
        %v893 = vadd.f32 %v515, %v892
        %v894 = vpop.f32.mrb[0].mxu0
        %895 = vmatprep.mubr.bf16.mxu0 0
        %896 = vmatmul.mubr.bf16.gmra.mrb[0].mxu0 %v642
        %v897 = vpop.f32.mrb[0].mxu0
        %v898 = vadd.f32 %v515, %v897
        %v899 = vpop.f32.mrb[0].mxu0
        %v900 = vpop.f32.mrb[0].mxu0
        %v901 = vadd.f32 %v515, %v900
        %v902 = vpop.f32.mrb[0].mxu0
        %903 = vmatprep.mubr.bf16.mxu0 0
        %904 = vmatmul.mubr.bf16.gmra.mrb[0].mxu0 %v643
        %v905 = vpop.f32.mrb[0].mxu0
        %v906 = vadd.f32 %v515, %v905
        %v907 = vpop.f32.mrb[0].mxu0
        %v908 = vpop.f32.mrb[0].mxu0
        %v909 = vadd.f32 %v515, %v908
        %v910 = vpop.f32.mrb[0].mxu0
        %911 = vmatprep.mubr.bf16.mxu0 0
        %912 = vmatmul.mubr.bf16.gmra.mrb[0].mxu0 %v644
        %v913 = vpop.f32.mrb[0].mxu0
        %v914 = vadd.f32 %v515, %v913
        %v915 = vpop.f32.mrb[0].mxu0
        %v916 = vpop.f32.mrb[0].mxu0
        %v917 = vadd.f32 %v515, %v916
        %v918 = vpop.f32.mrb[0].mxu0
        %919 = vmatprep.mubr.bf16.mxu0 0
        %920 = vmatmul.mubr.bf16.gmra.mrb[0].mxu0 %v645
        %v921 = vpop.f32.mrb[0].mxu0
        %v922 = vadd.f32 %v515, %v921
        %v923 = vpop.f32.mrb[0].mxu0
        %v924 = vpop.f32.mrb[0].mxu0
        %v925 = vadd.f32 %v515, %v924
        %v926 = vpop.f32.mrb[0].mxu0
        %927 = vmatprep.mubr.bf16.mxu0 0
        %928 = vmatmul.mubr.bf16.gmra.mrb[0].mxu0 %v646
        %v929 = vpop.f32.mrb[0].mxu0
        %v930 = vadd.f32 %v515, %v929
        %v931 = vpop.f32.mrb[0].mxu0
        %v932 = vpop.f32.mrb[0].mxu0
        %v933 = vadd.f32 %v515, %v932
        %v934 = vpop.f32.mrb[0].mxu0
        %935 = vmatprep.mubr.bf16.mxu0 0
        %936 = vmatmul.mubr.bf16.gmra.mrb[0].mxu0 %v647
        %v937 = vpop.f32.mrb[0].mxu0
        %v938 = vadd.f32 %v515, %v937
        %v939 = vpop.f32.mrb[0].mxu0
        %v940 = vpop.f32.mrb[0].mxu0
        %v941 = vadd.f32 %v515, %v940
        %v942 = vpop.f32.mrb[0].mxu0
        %943 = vmatprep.mubr.bf16.mxu0 0
        %944 = vmatmul.mubr.bf16.gmra.mrb[0].mxu0 %v648
        %v945 = vpop.f32.mrb[0].mxu0
        %v946 = vadd.f32 %v515, %v945
        %v947 = vpop.f32.mrb[0].mxu0
        %v948 = vpop.f32.mrb[0].mxu0
        %v949 = vadd.f32 %v515, %v948
        %v950 = vpop.f32.mrb[0].mxu0
        %951 = vmatprep.mubr.bf16.mxu0 0
        %952 = vmatmul.mubr.bf16.gmra.mrb[0].mxu0 %v649
        %v953 = vpop.f32.mrb[0].mxu0
        %v954 = vadd.f32 %v515, %v953
        %v955 = vpop.f32.mrb[0].mxu0
        %v956 = vpop.f32.mrb[0].mxu0
        %v957 = vadd.f32 %v515, %v956
        %v958 = vpop.f32.mrb[0].mxu0
        %959 = vmatprep.mubr.bf16.mxu0 0
        %960 = vmatmul.mubr.bf16.gmra.mrb[0].mxu0 %v650
        %v961 = vpop.f32.mrb[0].mxu0
        %v962 = vadd.f32 %v515, %v961
        %v963 = vpop.f32.mrb[0].mxu0
        %v964 = vpop.f32.mrb[0].mxu0
        %v965 = vadd.f32 %v515, %v964
        %v966 = vpop.f32.mrb[0].mxu0
        %967 = vmatprep.mubr.bf16.mxu0 0
        %968 = vmatmul.mubr.bf16.gmra.mrb[0].mxu0 %v651
        %v969 = vpop.f32.mrb[0].mxu0
        %v970 = vadd.f32 %v515, %v969
        %v971 = vpop.f32.mrb[0].mxu0
        %v972 = vpop.f32.mrb[0].mxu0
        %v973 = vadd.f32 %v515, %v972
        %v974 = vpop.f32.mrb[0].mxu0
        %975 = vdwg.mxu0
        %v976 = vmax.f32 %v762, 0.0
        %v977 = vmax.f32 %v765, 0.0
        %v978 = vmax.f32 %v770, 0.0
        %v979 = vmax.f32 %v773, 0.0
        %v980 = vmax.f32 %v778, 0.0
        %v981 = vmax.f32 %v781, 0.0
        %v982 = vmax.f32 %v786, 0.0
        %v983 = vmax.f32 %v789, 0.0
        %v984 = vmax.f32 %v794, 0.0
        %v985 = vmax.f32 %v797, 0.0
        %v986 = vmax.f32 %v802, 0.0
        %v987 = vmax.f32 %v805, 0.0
        %v988 = vmax.f32 %v810, 0.0
        %v989 = vmax.f32 %v813, 0.0
        %v990 = vmax.f32 %v818, 0.0
        %v991 = vmax.f32 %v821, 0.0
        %v992 = vmax.f32 %v826, 0.0
        %v993 = vmax.f32 %v829, 0.0
        %v994 = vmax.f32 %v834, 0.0
        %v995 = vmax.f32 %v837, 0.0
        %v996 = vmax.f32 %v842, 0.0
        %v997 = vmax.f32 %v845, 0.0
        %v998 = vmax.f32 %v850, 0.0
        %v999 = vmax.f32 %v853, 0.0
        %v1000 = vmax.f32 %v858, 0.0
        %v1001 = vmax.f32 %v861, 0.0
        %v1002 = vmax.f32 %v866, 0.0
        %v1003 = vmax.f32 %v869, 0.0
        %v1004 = vmax.f32 %v874, 0.0
        %v1005 = vmax.f32 %v877, 0.0
        %v1006 = vmax.f32 %v882, 0.0
        %v1007 = vmax.f32 %v885, 0.0
        %v1008 = vmax.f32 %v890, 0.0
        %v1009 = vmax.f32 %v893, 0.0
        %v1010 = vmax.f32 %v898, 0.0
        %v1011 = vmax.f32 %v901, 0.0
        %v1012 = vmax.f32 %v906, 0.0
        %v1013 = vmax.f32 %v909, 0.0
        %v1014 = vmax.f32 %v914, 0.0
        %v1015 = vmax.f32 %v917, 0.0
        %v1016 = vmax.f32 %v922, 0.0
        %v1017 = vmax.f32 %v925, 0.0
        %v1018 = vmax.f32 %v930, 0.0
        %v1019 = vmax.f32 %v933, 0.0
        %v1020 = vmax.f32 %v938, 0.0
        %v1021 = vmax.f32 %v941, 0.0
        %v1022 = vmax.f32 %v946, 0.0
        %v1023 = vmax.f32 %v949, 0.0
        %v1024 = vmax.f32 %v954, 0.0
        %v1025 = vmax.f32 %v957, 0.0
        %v1026 = vmax.f32 %v962, 0.0
        %v1027 = vmax.f32 %v965, 0.0
        %v1028 = vmax.f32 %v970, 0.0
        %v1029 = vmax.f32 %v973, 0.0
        %v1030 = vstv %s436
        %v1031 = vadd.s32 %v1030, 1
        %v1032 = vadd.s32 %v1030, 2
        %v1033 = vadd.s32 %v1030, 3
        %v1034 = vadd.s32 %v1030, 4
        %v1035 = vadd.s32 %v1030, 5
        %v1036 = vadd.s32 %v1030, 6
        %v1037 = vadd.s32 %v1030, 7
        %v1038 = vadd.s32 %v1030, 8
        %v1039 = vadd.s32 %v1030, 9
        %v1040 = vadd.s32 %v1030, 10
        %v1041 = vadd.s32 %v1030, 11
        %v1042 = vadd.s32 %v1030, 12
        %v1043 = vadd.s32 %v1030, 13
        %v1044 = vadd.s32 %v1030, 14
        %v1045 = vadd.s32 %v1030, 15
        %v1046 = vadd.s32 %v1030, 16
        %v1047 = vadd.s32 %v1030, 17
        %v1048 = vlaneseq
        %v1049 = vshrl.u32 %v1048, 7
        %v1050 = vadd.s32 %v1049, 8
        %v1051 = vadd.s32 %v1049, 16
        %vm1052 = vcmp.ge.s32.totalorder %v1030, 1
        %vm1053 = vcmp.ge.s32.totalorder %v1031, 1
        %vm1054 = vcmp.ge.s32.totalorder %v1032, 1
        %vm1055 = vcmp.ge.s32.totalorder %v1033, 1
        %vm1056 = vcmp.ge.s32.totalorder %v1034, 1
        %vm1057 = vcmp.ge.s32.totalorder %v1035, 1
        %vm1058 = vcmp.ge.s32.totalorder %v1036, 1
        %vm1059 = vcmp.ge.s32.totalorder %v1037, 1
        %vm1060 = vcmp.ge.s32.totalorder %v1038, 1
        %vm1061 = vcmp.ge.s32.totalorder %v1039, 1
        %vm1062 = vcmp.ge.s32.totalorder %v1040, 1
        %vm1063 = vcmp.ge.s32.totalorder %v1041, 1
        %vm1064 = vcmp.ge.s32.totalorder %v1042, 1
        %vm1065 = vcmp.ge.s32.totalorder %v1043, 1
        %vm1066 = vcmp.ge.s32.totalorder %v1044, 1
        %vm1067 = vcmp.ge.s32.totalorder %v1045, 1
        %vm1068 = vcmp.ge.s32.totalorder %v1046, 1
        %vm1069 = vcmp.ge.s32.totalorder %v1047, 1
        %vm1070 = vcmp.lt.s32.totalorder %v1030, 17
        %vm1071 = vcmp.lt.s32.totalorder %v1031, 17
        %vm1072 = vcmp.lt.s32.totalorder %v1032, 17
        %vm1073 = vcmp.lt.s32.totalorder %v1033, 17
        %vm1074 = vcmp.lt.s32.totalorder %v1034, 17
        %vm1075 = vcmp.lt.s32.totalorder %v1035, 17
        %vm1076 = vcmp.lt.s32.totalorder %v1036, 17
        %vm1077 = vcmp.lt.s32.totalorder %v1037, 17
        %vm1078 = vcmp.lt.s32.totalorder %v1038, 17
        %vm1079 = vcmp.lt.s32.totalorder %v1039, 17
        %vm1080 = vcmp.lt.s32.totalorder %v1040, 17
        %vm1081 = vcmp.lt.s32.totalorder %v1041, 17
        %vm1082 = vcmp.lt.s32.totalorder %v1042, 17
        %vm1083 = vcmp.lt.s32.totalorder %v1043, 17
        %vm1084 = vcmp.lt.s32.totalorder %v1044, 17
        %vm1085 = vcmp.lt.s32.totalorder %v1045, 17
        %vm1086 = vcmp.lt.s32.totalorder %v1046, 17
        %vm1087 = vcmp.lt.s32.totalorder %v1047, 17
        %vm1088 = vmand %vm1052, %vm1070
        %vm1089 = vmand %vm1053, %vm1071
        %vm1090 = vmand %vm1054, %vm1072
        %vm1091 = vmand %vm1055, %vm1073
        %vm1092 = vmand %vm1056, %vm1074
        %vm1093 = vmand %vm1057, %vm1075
        %vm1094 = vmand %vm1058, %vm1076
        %vm1095 = vmand %vm1059, %vm1077
        %vm1096 = vmand %vm1060, %vm1078
        %vm1097 = vmand %vm1061, %vm1079
        %vm1098 = vmand %vm1062, %vm1080
        %vm1099 = vmand %vm1063, %vm1081
        %vm1100 = vmand %vm1064, %vm1082
        %vm1101 = vmand %vm1065, %vm1083
        %vm1102 = vmand %vm1066, %vm1084
        %vm1103 = vmand %vm1067, %vm1085
        %vm1104 = vmand %vm1068, %vm1086
        %vm1105 = vmand %vm1069, %vm1087
        %vm1106 = vcmp.ge.s32.totalorder %v1049, 1
        %vm1107 = vcmp.ge.s32.totalorder %v1050, 1
        %vm1108 = vcmp.ge.s32.totalorder %v1051, 1
        %vm1109 = vmand %vm1088, %vm1106
        %vm1110 = vmand %vm1088, %vm1107
        %vm1111 = vmand %vm1088, %vm1108
        %vm1112 = vmand %vm1089, %vm1106
        %vm1113 = vmand %vm1089, %vm1107
        %vm1114 = vmand %vm1089, %vm1108
        %vm1115 = vmand %vm1090, %vm1106
        %vm1116 = vmand %vm1090, %vm1107
        %vm1117 = vmand %vm1090, %vm1108
        %vm1118 = vmand %vm1091, %vm1106
        %vm1119 = vmand %vm1091, %vm1107
        %vm1120 = vmand %vm1091, %vm1108
        %vm1121 = vmand %vm1092, %vm1106
        %vm1122 = vmand %vm1092, %vm1107
        %vm1123 = vmand %vm1092, %vm1108
        %vm1124 = vmand %vm1093, %vm1106
        %vm1125 = vmand %vm1093, %vm1107
        %vm1126 = vmand %vm1093, %vm1108
        %vm1127 = vmand %vm1094, %vm1106
        %vm1128 = vmand %vm1094, %vm1107
        %vm1129 = vmand %vm1094, %vm1108
        %vm1130 = vmand %vm1095, %vm1106
        %vm1131 = vmand %vm1095, %vm1107
        %vm1132 = vmand %vm1095, %vm1108
        %vm1133 = vmand %vm1096, %vm1106
        %vm1134 = vmand %vm1096, %vm1107
        %vm1135 = vmand %vm1096, %vm1108
        %vm1136 = vmand %vm1097, %vm1106
        %vm1137 = vmand %vm1097, %vm1107
        %vm1138 = vmand %vm1097, %vm1108
        %vm1139 = vmand %vm1098, %vm1106
        %vm1140 = vmand %vm1098, %vm1107
        %vm1141 = vmand %vm1098, %vm1108
        %vm1142 = vmand %vm1099, %vm1106
        %vm1143 = vmand %vm1099, %vm1107
        %vm1144 = vmand %vm1099, %vm1108
        %vm1145 = vmand %vm1100, %vm1106
        %vm1146 = vmand %vm1100, %vm1107
        %vm1147 = vmand %vm1100, %vm1108
        %vm1148 = vmand %vm1101, %vm1106
        %vm1149 = vmand %vm1101, %vm1107
        %vm1150 = vmand %vm1101, %vm1108
        %vm1151 = vmand %vm1102, %vm1106
        %vm1152 = vmand %vm1102, %vm1107
        %vm1153 = vmand %vm1102, %vm1108
        %vm1154 = vmand %vm1103, %vm1106
        %vm1155 = vmand %vm1103, %vm1107
        %vm1156 = vmand %vm1103, %vm1108
        %vm1157 = vmand %vm1104, %vm1106
        %vm1158 = vmand %vm1104, %vm1107
        %vm1159 = vmand %vm1104, %vm1108
        %vm1160 = vmand %vm1105, %vm1106
        %vm1161 = vmand %vm1105, %vm1107
        %vm1162 = vmand %vm1105, %vm1108
        %vm1163 = vcmp.lt.s32.totalorder %v1049, 17
        %vm1164 = vcmp.lt.s32.totalorder %v1050, 17
        %vm1165 = vcmp.lt.s32.totalorder %v1051, 17
        %vm1166 = vmand %vm1109, %vm1163
        %vm1167 = vmand %vm1110, %vm1164
        %vm1168 = vmand %vm1111, %vm1165
        %vm1169 = vmand %vm1112, %vm1163
        %vm1170 = vmand %vm1113, %vm1164
        %vm1171 = vmand %vm1114, %vm1165
        %vm1172 = vmand %vm1115, %vm1163
        %vm1173 = vmand %vm1116, %vm1164
        %vm1174 = vmand %vm1117, %vm1165
        %vm1175 = vmand %vm1118, %vm1163
        %vm1176 = vmand %vm1119, %vm1164
        %vm1177 = vmand %vm1120, %vm1165
        %vm1178 = vmand %vm1121, %vm1163
        %vm1179 = vmand %vm1122, %vm1164
        %vm1180 = vmand %vm1123, %vm1165
        %vm1181 = vmand %vm1124, %vm1163
        %vm1182 = vmand %vm1125, %vm1164
        %vm1183 = vmand %vm1126, %vm1165
        %vm1184 = vmand %vm1127, %vm1163
        %vm1185 = vmand %vm1128, %vm1164
        %vm1186 = vmand %vm1129, %vm1165
        %vm1187 = vmand %vm1130, %vm1163
        %vm1188 = vmand %vm1131, %vm1164
        %vm1189 = vmand %vm1132, %vm1165
        %vm1190 = vmand %vm1133, %vm1163
        %vm1191 = vmand %vm1134, %vm1164
        %vm1192 = vmand %vm1135, %vm1165
        %vm1193 = vmand %vm1136, %vm1163
        %vm1194 = vmand %vm1137, %vm1164
        %vm1195 = vmand %vm1138, %vm1165
        %vm1196 = vmand %vm1139, %vm1163
        %vm1197 = vmand %vm1140, %vm1164
        %vm1198 = vmand %vm1141, %vm1165
        %vm1199 = vmand %vm1142, %vm1163
        %vm1200 = vmand %vm1143, %vm1164
        %vm1201 = vmand %vm1144, %vm1165
        %vm1202 = vmand %vm1145, %vm1163
        %vm1203 = vmand %vm1146, %vm1164
        %vm1204 = vmand %vm1147, %vm1165
        %vm1205 = vmand %vm1148, %vm1163
        %vm1206 = vmand %vm1149, %vm1164
        %vm1207 = vmand %vm1150, %vm1165
        %vm1208 = vmand %vm1151, %vm1163
        %vm1209 = vmand %vm1152, %vm1164
        %vm1210 = vmand %vm1153, %vm1165
        %vm1211 = vmand %vm1154, %vm1163
        %vm1212 = vmand %vm1155, %vm1164
        %vm1213 = vmand %vm1156, %vm1165
        %vm1214 = vmand %vm1157, %vm1163
        %vm1215 = vmand %vm1158, %vm1164
        %vm1216 = vmand %vm1159, %vm1165
        %vm1217 = vmand %vm1160, %vm1163
        %vm1218 = vmand %vm1161, %vm1164
        %vm1219 = vmand %vm1162, %vm1165
        %v1220 = vsel %vm1166, 1, 0
        %v1221 = vsel %vm1167, 1, 0
        %v1222 = vsel %vm1168, 1, 0
        %v1223 = vsel %vm1169, 1, 0
        %v1224 = vsel %vm1170, 1, 0
        %v1225 = vsel %vm1171, 1, 0
        %v1226 = vsel %vm1172, 1, 0
        %v1227 = vsel %vm1173, 1, 0
        %v1228 = vsel %vm1174, 1, 0
        %v1229 = vsel %vm1175, 1, 0
        %v1230 = vsel %vm1176, 1, 0
        %v1231 = vsel %vm1177, 1, 0
        %v1232 = vsel %vm1178, 1, 0
        %v1233 = vsel %vm1179, 1, 0
        %v1234 = vsel %vm1180, 1, 0
        %v1235 = vsel %vm1181, 1, 0
        %v1236 = vsel %vm1182, 1, 0
        %v1237 = vsel %vm1183, 1, 0
        %v1238 = vsel %vm1184, 1, 0
        %v1239 = vsel %vm1185, 1, 0
        %v1240 = vsel %vm1186, 1, 0
        %v1241 = vsel %vm1187, 1, 0
        %v1242 = vsel %vm1188, 1, 0
        %v1243 = vsel %vm1189, 1, 0
        %v1244 = vsel %vm1190, 1, 0
        %v1245 = vsel %vm1191, 1, 0
        %v1246 = vsel %vm1192, 1, 0
        %v1247 = vsel %vm1193, 1, 0
        %v1248 = vsel %vm1194, 1, 0
        %v1249 = vsel %vm1195, 1, 0
        %v1250 = vsel %vm1196, 1, 0
        %v1251 = vsel %vm1197, 1, 0
        %v1252 = vsel %vm1198, 1, 0
        %v1253 = vsel %vm1199, 1, 0
        %v1254 = vsel %vm1200, 1, 0
        %v1255 = vsel %vm1201, 1, 0
        %v1256 = vsel %vm1202, 1, 0
        %v1257 = vsel %vm1203, 1, 0
        %v1258 = vsel %vm1204, 1, 0
        %v1259 = vsel %vm1205, 1, 0
        %v1260 = vsel %vm1206, 1, 0
        %v1261 = vsel %vm1207, 1, 0
        %v1262 = vsel %vm1208, 1, 0
        %v1263 = vsel %vm1209, 1, 0
        %v1264 = vsel %vm1210, 1, 0
        %v1265 = vsel %vm1211, 1, 0
        %v1266 = vsel %vm1212, 1, 0
        %v1267 = vsel %vm1213, 1, 0
        %v1268 = vsel %vm1214, 1, 0
        %v1269 = vsel %vm1215, 1, 0
        %v1270 = vsel %vm1216, 1, 0
        %v1271 = vsel %vm1217, 1, 0
        %v1272 = vsel %vm1218, 1, 0
        %v1273 = vsel %vm1219, 1, 0
        %v1274 = vcvt.s32.f32 %v1220
        %v1275 = vcvt.s32.f32 %v1221
        %v1276 = vcvt.s32.f32 %v1222
        %v1277 = vcvt.s32.f32 %v1223
        %v1278 = vcvt.s32.f32 %v1224
        %v1279 = vcvt.s32.f32 %v1225
        %v1280 = vcvt.s32.f32 %v1226
        %v1281 = vcvt.s32.f32 %v1227
        %v1282 = vcvt.s32.f32 %v1228
        %v1283 = vcvt.s32.f32 %v1229
        %v1284 = vcvt.s32.f32 %v1230
        %v1285 = vcvt.s32.f32 %v1231
        %v1286 = vcvt.s32.f32 %v1232
        %v1287 = vcvt.s32.f32 %v1233
        %v1288 = vcvt.s32.f32 %v1234
        %v1289 = vcvt.s32.f32 %v1235
        %v1290 = vcvt.s32.f32 %v1236
        %v1291 = vcvt.s32.f32 %v1237
        %v1292 = vcvt.s32.f32 %v1238
        %v1293 = vcvt.s32.f32 %v1239
        %v1294 = vcvt.s32.f32 %v1240
        %v1295 = vcvt.s32.f32 %v1241
        %v1296 = vcvt.s32.f32 %v1242
        %v1297 = vcvt.s32.f32 %v1243
        %v1298 = vcvt.s32.f32 %v1244
        %v1299 = vcvt.s32.f32 %v1245
        %v1300 = vcvt.s32.f32 %v1246
        %v1301 = vcvt.s32.f32 %v1247
        %v1302 = vcvt.s32.f32 %v1248
        %v1303 = vcvt.s32.f32 %v1249
        %v1304 = vcvt.s32.f32 %v1250
        %v1305 = vcvt.s32.f32 %v1251
        %v1306 = vcvt.s32.f32 %v1252
        %v1307 = vcvt.s32.f32 %v1253
        %v1308 = vcvt.s32.f32 %v1254
        %v1309 = vcvt.s32.f32 %v1255
        %v1310 = vcvt.s32.f32 %v1256
        %v1311 = vcvt.s32.f32 %v1257
        %v1312 = vcvt.s32.f32 %v1258
        %v1313 = vcvt.s32.f32 %v1259
        %v1314 = vcvt.s32.f32 %v1260
        %v1315 = vcvt.s32.f32 %v1261
        %v1316 = vcvt.s32.f32 %v1262
        %v1317 = vcvt.s32.f32 %v1263
        %v1318 = vcvt.s32.f32 %v1264
        %v1319 = vcvt.s32.f32 %v1265
        %v1320 = vcvt.s32.f32 %v1266
        %v1321 = vcvt.s32.f32 %v1267
        %v1322 = vcvt.s32.f32 %v1268
        %v1323 = vcvt.s32.f32 %v1269
        %v1324 = vcvt.s32.f32 %v1270
        %v1325 = vcvt.s32.f32 %v1271
        %v1326 = vcvt.s32.f32 %v1272
        %v1327 = vcvt.s32.f32 %v1273
        %v1328 = vmul.f32 %v976, %v1274
        %v1329 = vmul.f32 %v977, %v1275
        %v1330 = vmul.f32 %v978, %v1276
        %v1331 = vmul.f32 %v979, %v1277
        %v1332 = vmul.f32 %v980, %v1278
        %v1333 = vmul.f32 %v981, %v1279
        %v1334 = vmul.f32 %v982, %v1280
        %v1335 = vmul.f32 %v983, %v1281
        %v1336 = vmul.f32 %v984, %v1282
        %v1337 = vmul.f32 %v985, %v1283
        %v1338 = vmul.f32 %v986, %v1284
        %v1339 = vmul.f32 %v987, %v1285
        %v1340 = vmul.f32 %v988, %v1286
        %v1341 = vmul.f32 %v989, %v1287
        %v1342 = vmul.f32 %v990, %v1288
        %v1343 = vmul.f32 %v991, %v1289
        %v1344 = vmul.f32 %v992, %v1290
        %v1345 = vmul.f32 %v993, %v1291
        %v1346 = vmul.f32 %v994, %v1292
        %v1347 = vmul.f32 %v995, %v1293
        %v1348 = vmul.f32 %v996, %v1294
        %v1349 = vmul.f32 %v997, %v1295
        %v1350 = vmul.f32 %v998, %v1296
        %v1351 = vmul.f32 %v999, %v1297
        %v1352 = vmul.f32 %v1000, %v1298
        %v1353 = vmul.f32 %v1001, %v1299
        %v1354 = vmul.f32 %v1002, %v1300
        %v1355 = vmul.f32 %v1003, %v1301
        %v1356 = vmul.f32 %v1004, %v1302
        %v1357 = vmul.f32 %v1005, %v1303
        %v1358 = vmul.f32 %v1006, %v1304
        %v1359 = vmul.f32 %v1007, %v1305
        %v1360 = vmul.f32 %v1008, %v1306
        %v1361 = vmul.f32 %v1009, %v1307
        %v1362 = vmul.f32 %v1010, %v1308
        %v1363 = vmul.f32 %v1011, %v1309
        %v1364 = vmul.f32 %v1012, %v1310
        %v1365 = vmul.f32 %v1013, %v1311
        %v1366 = vmul.f32 %v1014, %v1312
        %v1367 = vmul.f32 %v1015, %v1313
        %v1368 = vmul.f32 %v1016, %v1314
        %v1369 = vmul.f32 %v1017, %v1315
        %v1370 = vmul.f32 %v1018, %v1316
        %v1371 = vmul.f32 %v1019, %v1317
        %v1372 = vmul.f32 %v1020, %v1318
        %v1373 = vmul.f32 %v1021, %v1319
        %v1374 = vmul.f32 %v1022, %v1320
        %v1375 = vmul.f32 %v1023, %v1321
        %v1376 = vmul.f32 %v1024, %v1322
        %v1377 = vmul.f32 %v1025, %v1323
        %v1378 = vmul.f32 %v1026, %v1324
        %v1379 = vmul.f32 %v1027, %v1325
        %v1380 = vmul.f32 %v1028, %v1326
        %v1381 = vmul.f32 %v1029, %v1327
        %v1382 = vpack.c.bf16 %v1329, %v1328
        %v1383 = vpack.c.bf16 %v1330, %v1330
        %v1384 = vpack.c.bf16 %v1332, %v1331
        %v1385 = vpack.c.bf16 %v1333, %v1333
        %v1386 = vpack.c.bf16 %v1335, %v1334
        %v1387 = vpack.c.bf16 %v1336, %v1336
        %v1388 = vpack.c.bf16 %v1338, %v1337
        %v1389 = vpack.c.bf16 %v1339, %v1339
        %v1390 = vpack.c.bf16 %v1341, %v1340
        %v1391 = vpack.c.bf16 %v1342, %v1342
        %v1392 = vpack.c.bf16 %v1344, %v1343
        %v1393 = vpack.c.bf16 %v1345, %v1345
        %v1394 = vpack.c.bf16 %v1347, %v1346
        %v1395 = vpack.c.bf16 %v1348, %v1348
        %v1396 = vpack.c.bf16 %v1350, %v1349
        %v1397 = vpack.c.bf16 %v1351, %v1351
        %v1398 = vpack.c.bf16 %v1353, %v1352
        %v1399 = vpack.c.bf16 %v1354, %v1354
        %v1400 = vpack.c.bf16 %v1356, %v1355
        %v1401 = vpack.c.bf16 %v1357, %v1357
        %v1402 = vpack.c.bf16 %v1359, %v1358
        %v1403 = vpack.c.bf16 %v1360, %v1360
        %v1404 = vpack.c.bf16 %v1362, %v1361
        %v1405 = vpack.c.bf16 %v1363, %v1363
        %v1406 = vpack.c.bf16 %v1365, %v1364
        %v1407 = vpack.c.bf16 %v1366, %v1366
        %v1408 = vpack.c.bf16 %v1368, %v1367
        %v1409 = vpack.c.bf16 %v1369, %v1369
        %v1410 = vpack.c.bf16 %v1371, %v1370
        %v1411 = vpack.c.bf16 %v1372, %v1372
        %v1412 = vpack.c.bf16 %v1374, %v1373
        %v1413 = vpack.c.bf16 %v1375, %v1375
        %v1414 = vpack.c.bf16 %v1377, %v1376
        %v1415 = vpack.c.bf16 %v1378, %v1378
        %v1416 = vpack.c.bf16 %v1380, %v1379
        %v1417 = vpack.c.bf16 %v1381, %v1381
        %v1454 = vunpack.c.l.b16 %v1382
        %v1455 = vunpack.c.h.b16 %v1382
        %v1456 = vunpack.c.l.b16 %v1383
        %v1457 = vunpack.c.l.b16 %v1384
        %v1458 = vunpack.c.h.b16 %v1384
        %v1459 = vunpack.c.l.b16 %v1385
        %v1460 = vunpack.c.l.b16 %v1386
        %v1461 = vunpack.c.h.b16 %v1386
        %v1462 = vunpack.c.l.b16 %v1387
        %v1463 = vunpack.c.l.b16 %v1388
        %v1464 = vunpack.c.h.b16 %v1388
        %v1465 = vunpack.c.l.b16 %v1389
        %v1466 = vunpack.c.l.b16 %v1390
        %v1467 = vunpack.c.h.b16 %v1390
        %v1468 = vunpack.c.l.b16 %v1391
        %v1469 = vunpack.c.l.b16 %v1392
        %v1470 = vunpack.c.h.b16 %v1392
        %v1471 = vunpack.c.l.b16 %v1393
        %v1472 = vunpack.c.l.b16 %v1394
        %v1473 = vunpack.c.h.b16 %v1394
        %v1474 = vunpack.c.l.b16 %v1395
        %v1475 = vunpack.c.l.b16 %v1396
        %v1476 = vunpack.c.h.b16 %v1396
        %v1477 = vunpack.c.l.b16 %v1397
        %v1478 = vunpack.c.l.b16 %v1398
        %v1479 = vunpack.c.h.b16 %v1398
        %v1480 = vunpack.c.l.b16 %v1399
        %v1481 = vunpack.c.l.b16 %v1400
        %v1482 = vunpack.c.h.b16 %v1400
        %v1483 = vunpack.c.l.b16 %v1401
        %v1484 = vunpack.c.l.b16 %v1402
        %v1485 = vunpack.c.h.b16 %v1402
        %v1486 = vunpack.c.l.b16 %v1403
        %v1487 = vunpack.c.l.b16 %v1404
        %v1488 = vunpack.c.h.b16 %v1404
        %v1489 = vunpack.c.l.b16 %v1405
        %v1490 = vunpack.c.l.b16 %v1406
        %v1491 = vunpack.c.h.b16 %v1406
        %v1492 = vunpack.c.l.b16 %v1407
        %v1493 = vunpack.c.l.b16 %v1408
        %v1494 = vunpack.c.h.b16 %v1408
        %v1495 = vunpack.c.l.b16 %v1409
        %v1496 = vunpack.c.l.b16 %v1410
        %v1497 = vunpack.c.h.b16 %v1410
        %v1498 = vunpack.c.l.b16 %v1411
        %v1499 = vunpack.c.l.b16 %v1412
        %v1500 = vunpack.c.h.b16 %v1412
        %v1501 = vunpack.c.l.b16 %v1413
        %v1502 = vunpack.c.l.b16 %v1414
        %v1503 = vunpack.c.h.b16 %v1414
        %v1504 = vunpack.c.l.b16 %v1415
        %v1505 = vunpack.c.l.b16 %v1416
        %v1506 = vunpack.c.h.b16 %v1416
        %v1507 = vunpack.c.l.b16 %v1417
        %v1508 = vpack.c.b16 %v1454, %v1454
        %v1509 = vpack.c.b16 %v1455, %v1455
        %v1510 = vpack.c.b16 %v1456, %v1456
        %v1511 = vpack.c.b16 %v1457, %v1457
        %v1512 = vpack.c.b16 %v1458, %v1458
        %v1513 = vpack.c.b16 %v1459, %v1459
        %v1514 = vpack.c.b16 %v1460, %v1460
        %v1515 = vpack.c.b16 %v1461, %v1461
        %v1516 = vpack.c.b16 %v1462, %v1462
        %v1517 = vpack.c.b16 %v1463, %v1463
        %v1518 = vpack.c.b16 %v1464, %v1464
        %v1519 = vpack.c.b16 %v1465, %v1465
        %v1520 = vpack.c.b16 %v1466, %v1466
        %v1521 = vpack.c.b16 %v1467, %v1467
        %v1522 = vpack.c.b16 %v1468, %v1468
        %v1523 = vpack.c.b16 %v1469, %v1469
        %v1524 = vpack.c.b16 %v1470, %v1470
        %v1525 = vpack.c.b16 %v1471, %v1471
        %v1526 = vpack.c.b16 %v1472, %v1472
        %v1527 = vpack.c.b16 %v1473, %v1473
        %v1528 = vpack.c.b16 %v1474, %v1474
        %v1529 = vpack.c.b16 %v1475, %v1475
        %v1530 = vpack.c.b16 %v1476, %v1476
        %v1531 = vpack.c.b16 %v1477, %v1477
        %v1532 = vpack.c.b16 %v1478, %v1478
        %v1533 = vpack.c.b16 %v1479, %v1479
        %v1534 = vpack.c.b16 %v1480, %v1480
        %v1535 = vpack.c.b16 %v1481, %v1481
        %v1536 = vpack.c.b16 %v1482, %v1482
        %v1537 = vpack.c.b16 %v1483, %v1483
        %v1538 = vpack.c.b16 %v1484, %v1484
        %v1539 = vpack.c.b16 %v1485, %v1485
        %v1540 = vpack.c.b16 %v1486, %v1486
        %v1541 = vpack.c.b16 %v1487, %v1487
        %v1542 = vpack.c.b16 %v1488, %v1488
        %v1543 = vpack.c.b16 %v1489, %v1489
        %v1544 = vpack.c.b16 %v1490, %v1490
        %v1545 = vpack.c.b16 %v1491, %v1491
        %v1546 = vpack.c.b16 %v1492, %v1492
        %v1547 = vpack.c.b16 %v1493, %v1493
        %v1548 = vpack.c.b16 %v1494, %v1494
        %v1549 = vpack.c.b16 %v1495, %v1495
        %v1550 = vpack.c.b16 %v1496, %v1496
        %v1551 = vpack.c.b16 %v1497, %v1497
        %v1552 = vpack.c.b16 %v1498, %v1498
        %v1553 = vpack.c.b16 %v1499, %v1499
        %v1554 = vpack.c.b16 %v1500, %v1500
        %v1555 = vpack.c.b16 %v1501, %v1501
        %v1556 = vpack.c.b16 %v1502, %v1502
        %v1557 = vpack.c.b16 %v1503, %v1503
        %v1558 = vpack.c.b16 %v1504, %v1504
        %v1559 = vpack.c.b16 %v1505, %v1505
        %v1560 = vpack.c.b16 %v1506, %v1506
        %v1561 = vpack.c.b16 %v1507, %v1507
        %1616 = vst [vmem:[#allocation2] sm:$0xf] %v1508
        %1617 = vst [vmem:[#allocation2 + $0x4] sm:$0xf] %v1509
        %1618 = vst [vmem:[#allocation2 + $0x8] sm:$0xf] %v1510
        %1619 = vst [vmem:[#allocation2 + $0xc] sm:$0xf] %v1511
        %1620 = vst [vmem:[#allocation2 + $0x10] sm:$0xf] %v1512
        %1621 = vst [vmem:[#allocation2 + $0x14] sm:$0xf] %v1513
        %1622 = vst [vmem:[#allocation2 + $0x18] sm:$0xf] %v1514
        %1623 = vst [vmem:[#allocation2 + $0x1c] sm:$0xf] %v1515
        %1624 = vst [vmem:[#allocation2 + $0x20] sm:$0xf] %v1516
        %1625 = vst [vmem:[#allocation2 + $0x24] sm:$0xf] %v1517
        %1626 = vst [vmem:[#allocation2 + $0x28] sm:$0xf] %v1518
        %1627 = vst [vmem:[#allocation2 + $0x2c] sm:$0xf] %v1519
        %1628 = vst [vmem:[#allocation2 + $0x30] sm:$0xf] %v1520
        %1629 = vst [vmem:[#allocation2 + $0x34] sm:$0xf] %v1521
        %1630 = vst [vmem:[#allocation2 + $0x38] sm:$0xf] %v1522
        %1631 = vst [vmem:[#allocation2 + $0x3c] sm:$0xf] %v1523
        %1632 = vst [vmem:[#allocation2 + $0x40] sm:$0xf] %v1524
        %1633 = vst [vmem:[#allocation2 + $0x44] sm:$0xf] %v1525
        %1634 = vst [vmem:[#allocation2 + $0x48] sm:$0xf] %v1526
        %1635 = vst [vmem:[#allocation2 + $0x4c] sm:$0xf] %v1527
        %1636 = vst [vmem:[#allocation2 + $0x50] sm:$0xf] %v1528
        %1637 = vst [vmem:[#allocation2 + $0x54] sm:$0xf] %v1529
        %1638 = vst [vmem:[#allocation2 + $0x58] sm:$0xf] %v1530
        %1639 = vst [vmem:[#allocation2 + $0x5c] sm:$0xf] %v1531
        %1640 = vst [vmem:[#allocation2 + $0x60] sm:$0xf] %v1532
        %1641 = vst [vmem:[#allocation2 + $0x64] sm:$0xf] %v1533
        %1642 = vst [vmem:[#allocation2 + $0x68] sm:$0xf] %v1534
        %1643 = vst [vmem:[#allocation2 + $0x6c] sm:$0xf] %v1535
        %1644 = vst [vmem:[#allocation2 + $0x70] sm:$0xf] %v1536
        %1645 = vst [vmem:[#allocation2 + $0x74] sm:$0xf] %v1537
        %1646 = vst [vmem:[#allocation2 + $0x78] sm:$0xf] %v1538
        %1647 = vst [vmem:[#allocation2 + $0x7c] sm:$0xf] %v1539
        %1648 = vst [vmem:[#allocation2 + $0x80] sm:$0xf] %v1540
        %1649 = vst [vmem:[#allocation2 + $0x84] sm:$0xf] %v1541
        %1650 = vst [vmem:[#allocation2 + $0x88] sm:$0xf] %v1542
        %1651 = vst [vmem:[#allocation2 + $0x8c] sm:$0xf] %v1543
        %1652 = vst [vmem:[#allocation2 + $0x90] sm:$0xf] %v1544
        %1653 = vst [vmem:[#allocation2 + $0x94] sm:$0xf] %v1545
        %1654 = vst [vmem:[#allocation2 + $0x98] sm:$0xf] %v1546
        %1655 = vst [vmem:[#allocation2 + $0x9c] sm:$0xf] %v1547
        %1656 = vst [vmem:[#allocation2 + $0xa0] sm:$0xf] %v1548
        %1657 = vst [vmem:[#allocation2 + $0xa4] sm:$0xf] %v1549
        %1658 = vst [vmem:[#allocation2 + $0xa8] sm:$0xf] %v1550
        %1659 = vst [vmem:[#allocation2 + $0xac] sm:$0xf] %v1551
        %1660 = vst [vmem:[#allocation2 + $0xb0] sm:$0xf] %v1552
        %1661 = vst [vmem:[#allocation2 + $0xb4] sm:$0xf] %v1553
        %1662 = vst [vmem:[#allocation2 + $0xb8] sm:$0xf] %v1554
        %1663 = vst [vmem:[#allocation2 + $0xbc] sm:$0xf] %v1555
        %1664 = vst [vmem:[#allocation2 + $0xc0] sm:$0xf] %v1556
        %1665 = vst [vmem:[#allocation2 + $0xc4] sm:$0xf] %v1557
        %1666 = vst [vmem:[#allocation2 + $0xc8] sm:$0xf] %v1558
        %1667 = vst [vmem:[#allocation2 + $0xcc] sm:$0xf] %v1559
        %1668 = vst [vmem:[#allocation2 + $0xd0] sm:$0xf] %v1560
        %1669 = vst [vmem:[#allocation2 + $0xd4] sm:$0xf] %v1561
        %vm1670 = vsmask.f32 3328
        %vm1671 = vsmask.f32 7440
        %vm1672 = vmor %vm1670, %vm1671
        %v1674 = vshrl.u32 %v443, 16
        %v1676 = vrot.slane %v1674, 4
        %v1677 = vshll.u32 %v443, 16
        %v1679 = vrot.slane %v1677, 5
        %v1680 = vor.u32 %v1676, %v1679
        %v1681 = vrot.slane %v1680, 4
        %v1683 = vshll.u32 %v444, 16
        %v1685 = vrot.slane %v1683, 5
        %v1686 = vsel %vm1672, %v1681, %v1685
        %v1687 = vshrl.u32 %v444, 16
        %v1689 = vrot.slane %v1687, 4
        %v1690 = vor.u32 %v1689, %v1685
        %v1691 = vrot.slane %v1690, 4
        %v1693 = vshll.u32 %v445, 16
        %v1695 = vrot.slane %v1693, 5
        %v1696 = vsel %vm1672, %v1691, %v1695
        %v1698 = vshrl.u32 %v446, 16
        %v1700 = vrot.slane %v1698, 4
        %v1701 = vshll.u32 %v446, 16
        %v1703 = vrot.slane %v1701, 5
        %v1704 = vor.u32 %v1700, %v1703
        %v1705 = vrot.slane %v1704, 4
        %v1707 = vshll.u32 %v447, 16
        %v1709 = vrot.slane %v1707, 5
        %v1710 = vsel %vm1672, %v1705, %v1709
        %v1711 = vshrl.u32 %v447, 16
        %v1713 = vrot.slane %v1711, 4
        %v1714 = vor.u32 %v1713, %v1709
        %v1715 = vrot.slane %v1714, 4
        %v1717 = vshll.u32 %v448, 16
        %v1719 = vrot.slane %v1717, 5
        %v1720 = vsel %vm1672, %v1715, %v1719
        %v1722 = vshrl.u32 %v449, 16
        %v1724 = vrot.slane %v1722, 4
        %v1725 = vshll.u32 %v449, 16
        %v1727 = vrot.slane %v1725, 5
        %v1728 = vor.u32 %v1724, %v1727
        %v1729 = vrot.slane %v1728, 4
        %v1731 = vshll.u32 %v450, 16
        %v1733 = vrot.slane %v1731, 5
        %v1734 = vsel %vm1672, %v1729, %v1733
        %v1735 = vshrl.u32 %v450, 16
        %v1737 = vrot.slane %v1735, 4
        %v1738 = vor.u32 %v1737, %v1733
        %v1739 = vrot.slane %v1738, 4
        %v1741 = vshll.u32 %v451, 16
        %v1743 = vrot.slane %v1741, 5
        %v1744 = vsel %vm1672, %v1739, %v1743
        %v1746 = vshrl.u32 %v452, 16
        %v1748 = vrot.slane %v1746, 4
        %v1749 = vshll.u32 %v452, 16
        %v1751 = vrot.slane %v1749, 5
        %v1752 = vor.u32 %v1748, %v1751
        %v1753 = vrot.slane %v1752, 4
        %v1755 = vshll.u32 %v453, 16
        %v1757 = vrot.slane %v1755, 5
        %v1758 = vsel %vm1672, %v1753, %v1757
        %v1759 = vshrl.u32 %v453, 16
        %v1761 = vrot.slane %v1759, 4
        %v1762 = vor.u32 %v1761, %v1757
        %v1763 = vrot.slane %v1762, 4
        %v1765 = vshll.u32 %v454, 16
        %v1767 = vrot.slane %v1765, 5
        %v1768 = vsel %vm1672, %v1763, %v1767
        %v1770 = vshrl.u32 %v455, 16
        %v1772 = vrot.slane %v1770, 4
        %v1773 = vshll.u32 %v455, 16
        %v1775 = vrot.slane %v1773, 5
        %v1776 = vor.u32 %v1772, %v1775
        %v1777 = vrot.slane %v1776, 4
        %v1779 = vshll.u32 %v456, 16
        %v1781 = vrot.slane %v1779, 5
        %v1782 = vsel %vm1672, %v1777, %v1781
        %v1783 = vshrl.u32 %v456, 16
        %v1785 = vrot.slane %v1783, 4
        %v1786 = vor.u32 %v1785, %v1781
        %v1787 = vrot.slane %v1786, 4
        %v1789 = vshll.u32 %v457, 16
        %v1791 = vrot.slane %v1789, 5
        %v1792 = vsel %vm1672, %v1787, %v1791
        %v1794 = vshrl.u32 %v458, 16
        %v1796 = vrot.slane %v1794, 4
        %v1797 = vshll.u32 %v458, 16
        %v1799 = vrot.slane %v1797, 5
        %v1800 = vor.u32 %v1796, %v1799
        %v1801 = vrot.slane %v1800, 4
        %v1803 = vshll.u32 %v459, 16
        %v1805 = vrot.slane %v1803, 5
        %v1806 = vsel %vm1672, %v1801, %v1805
        %v1807 = vshrl.u32 %v459, 16
        %v1809 = vrot.slane %v1807, 4
        %v1810 = vor.u32 %v1809, %v1805
        %v1811 = vrot.slane %v1810, 4
        %v1813 = vshll.u32 %v460, 16
        %v1815 = vrot.slane %v1813, 5
        %v1816 = vsel %vm1672, %v1811, %v1815
        %v1818 = vshrl.u32 %v461, 16
        %v1820 = vrot.slane %v1818, 4
        %v1821 = vshll.u32 %v461, 16
        %v1823 = vrot.slane %v1821, 5
        %v1824 = vor.u32 %v1820, %v1823
        %v1825 = vrot.slane %v1824, 4
        %v1827 = vshll.u32 %v462, 16
        %v1829 = vrot.slane %v1827, 5
        %v1830 = vsel %vm1672, %v1825, %v1829
        %v1831 = vshrl.u32 %v462, 16
        %v1833 = vrot.slane %v1831, 4
        %v1834 = vor.u32 %v1833, %v1829
        %v1835 = vrot.slane %v1834, 4
        %v1837 = vshll.u32 %v463, 16
        %v1839 = vrot.slane %v1837, 5
        %v1840 = vsel %vm1672, %v1835, %v1839
        %v1842 = vshrl.u32 %v464, 16
        %v1844 = vrot.slane %v1842, 4
        %v1845 = vshll.u32 %v464, 16
        %v1847 = vrot.slane %v1845, 5
        %v1848 = vor.u32 %v1844, %v1847
        %v1849 = vrot.slane %v1848, 4
        %v1851 = vshll.u32 %v465, 16
        %v1853 = vrot.slane %v1851, 5
        %v1854 = vsel %vm1672, %v1849, %v1853
        %v1855 = vshrl.u32 %v465, 16
        %v1857 = vrot.slane %v1855, 4
        %v1858 = vor.u32 %v1857, %v1853
        %v1859 = vrot.slane %v1858, 4
        %v1861 = vshll.u32 %v466, 16
        %v1863 = vrot.slane %v1861, 5
        %v1864 = vsel %vm1672, %v1859, %v1863
        %v1866 = vshrl.u32 %v467, 16
        %v1868 = vrot.slane %v1866, 4
        %v1869 = vshll.u32 %v467, 16
        %v1871 = vrot.slane %v1869, 5
        %v1872 = vor.u32 %v1868, %v1871
        %v1873 = vrot.slane %v1872, 4
        %v1875 = vshll.u32 %v468, 16
        %v1877 = vrot.slane %v1875, 5
        %v1878 = vsel %vm1672, %v1873, %v1877
        %v1879 = vshrl.u32 %v468, 16
        %v1881 = vrot.slane %v1879, 4
        %v1882 = vor.u32 %v1881, %v1877
        %v1883 = vrot.slane %v1882, 4
        %v1885 = vshll.u32 %v469, 16
        %v1887 = vrot.slane %v1885, 5
        %v1888 = vsel %vm1672, %v1883, %v1887
        %v1890 = vshrl.u32 %v470, 16
        %v1892 = vrot.slane %v1890, 4
        %v1893 = vshll.u32 %v470, 16
        %v1895 = vrot.slane %v1893, 5
        %v1896 = vor.u32 %v1892, %v1895
        %v1897 = vrot.slane %v1896, 4
        %v1899 = vshll.u32 %v471, 16
        %v1901 = vrot.slane %v1899, 5
        %v1902 = vsel %vm1672, %v1897, %v1901
        %v1903 = vshrl.u32 %v471, 16
        %v1905 = vrot.slane %v1903, 4
        %v1906 = vor.u32 %v1905, %v1901
        %v1907 = vrot.slane %v1906, 4
        %v1909 = vshll.u32 %v472, 16
        %v1911 = vrot.slane %v1909, 5
        %v1912 = vsel %vm1672, %v1907, %v1911
        %v1914 = vshrl.u32 %v473, 16
        %v1916 = vrot.slane %v1914, 4
        %v1917 = vshll.u32 %v473, 16
        %v1919 = vrot.slane %v1917, 5
        %v1920 = vor.u32 %v1916, %v1919
        %v1921 = vrot.slane %v1920, 4
        %v1923 = vshll.u32 %v474, 16
        %v1925 = vrot.slane %v1923, 5
        %v1926 = vsel %vm1672, %v1921, %v1925
        %v1927 = vshrl.u32 %v474, 16
        %v1929 = vrot.slane %v1927, 4
        %v1930 = vor.u32 %v1929, %v1925
        %v1931 = vrot.slane %v1930, 4
        %v1933 = vshll.u32 %v475, 16
        %v1935 = vrot.slane %v1933, 5
        %v1936 = vsel %vm1672, %v1931, %v1935
        %v1938 = vshrl.u32 %v476, 16
        %v1940 = vrot.slane %v1938, 4
        %v1941 = vshll.u32 %v476, 16
        %v1943 = vrot.slane %v1941, 5
        %v1944 = vor.u32 %v1940, %v1943
        %v1945 = vrot.slane %v1944, 4
        %v1947 = vshll.u32 %v477, 16
        %v1949 = vrot.slane %v1947, 5
        %v1950 = vsel %vm1672, %v1945, %v1949
        %v1951 = vshrl.u32 %v477, 16
        %v1953 = vrot.slane %v1951, 4
        %v1954 = vor.u32 %v1953, %v1949
        %v1955 = vrot.slane %v1954, 4
        %v1957 = vshll.u32 %v478, 16
        %v1959 = vrot.slane %v1957, 5
        %v1960 = vsel %vm1672, %v1955, %v1959
        %v1962 = vshrl.u32 %v479, 16
        %v1964 = vrot.slane %v1962, 4
        %v1965 = vshll.u32 %v479, 16
        %v1967 = vrot.slane %v1965, 5
        %v1968 = vor.u32 %v1964, %v1967
        %v1969 = vrot.slane %v1968, 4
        %v1971 = vshll.u32 %v480, 16
        %v1973 = vrot.slane %v1971, 5
        %v1974 = vsel %vm1672, %v1969, %v1973
        %v1975 = vshrl.u32 %v480, 16
        %v1977 = vrot.slane %v1975, 4
        %v1978 = vor.u32 %v1977, %v1973
        %v1979 = vrot.slane %v1978, 4
        %v1981 = vshll.u32 %v481, 16
        %v1983 = vrot.slane %v1981, 5
        %v1984 = vsel %vm1672, %v1979, %v1983
        %v1986 = vshrl.u32 %v482, 16
        %v1988 = vrot.slane %v1986, 4
        %v1989 = vshll.u32 %v482, 16
        %v1991 = vrot.slane %v1989, 5
        %v1992 = vor.u32 %v1988, %v1991
        %v1993 = vrot.slane %v1992, 4
        %v1995 = vshll.u32 %v483, 16
        %v1997 = vrot.slane %v1995, 5
        %v1998 = vsel %vm1672, %v1993, %v1997
        %v1999 = vshrl.u32 %v483, 16
        %v2001 = vrot.slane %v1999, 4
        %v2002 = vor.u32 %v2001, %v1997
        %v2003 = vrot.slane %v2002, 4
        %v2005 = vshll.u32 %v484, 16
        %v2007 = vrot.slane %v2005, 5
        %v2008 = vsel %vm1672, %v2003, %v2007
        %v2010 = vshrl.u32 %v485, 16
        %v2012 = vrot.slane %v2010, 4
        %v2013 = vshll.u32 %v485, 16
        %v2015 = vrot.slane %v2013, 5
        %v2016 = vor.u32 %v2012, %v2015
        %v2017 = vrot.slane %v2016, 4
        %v2019 = vshll.u32 %v486, 16
        %v2021 = vrot.slane %v2019, 5
        %v2022 = vsel %vm1672, %v2017, %v2021
        %v2023 = vshrl.u32 %v486, 16
        %v2025 = vrot.slane %v2023, 4
        %v2026 = vor.u32 %v2025, %v2021
        %v2027 = vrot.slane %v2026, 4
        %v2029 = vshll.u32 %v487, 16
        %v2031 = vrot.slane %v2029, 5
        %v2032 = vsel %vm1672, %v2027, %v2031
        %v2034 = vshrl.u32 %v488, 16
        %v2036 = vrot.slane %v2034, 4
        %v2037 = vshll.u32 %v488, 16
        %v2039 = vrot.slane %v2037, 5
        %v2040 = vor.u32 %v2036, %v2039
        %v2041 = vrot.slane %v2040, 4
        %v2043 = vshll.u32 %v489, 16
        %v2045 = vrot.slane %v2043, 5
        %v2046 = vsel %vm1672, %v2041, %v2045
        %v2047 = vshrl.u32 %v489, 16
        %v2049 = vrot.slane %v2047, 4
        %v2050 = vor.u32 %v2049, %v2045
        %v2051 = vrot.slane %v2050, 4
        %v2053 = vshll.u32 %v490, 16
        %v2055 = vrot.slane %v2053, 5
        %v2056 = vsel %vm1672, %v2051, %v2055
        %v2057 = vld [vmem:[#allocation8] sm:$0xf]
        %v2058 = vld [vmem:[#allocation8 + $0x4] sm:$0xf]
        %v2059 = vld [vmem:[#allocation8 + $0x8] sm:$0xf]
        %v2060 = vld [vmem:[#allocation8 + $0xc] sm:$0xf]
        %v2061 = vld [vmem:[#allocation8 + $0x10] sm:$0xf]
        %v2062 = vld [vmem:[#allocation8 + $0x14] sm:$0xf]
        %v2063 = vld [vmem:[#allocation8 + $0x18] sm:$0xf]
        %v2064 = vld [vmem:[#allocation8 + $0x1c] sm:$0xf]
        %v2065 = vld [vmem:[#allocation8 + $0x20] sm:$0xf]
        %v2066 = vld [vmem:[#allocation8 + $0x24] sm:$0xf]
        %v2067 = vld [vmem:[#allocation8 + $0x28] sm:$0xf]
        %v2068 = vld [vmem:[#allocation8 + $0x2c] sm:$0xf]
        %v2069 = vld [vmem:[#allocation8 + $0x30] sm:$0xf]
        %v2070 = vld [vmem:[#allocation8 + $0x34] sm:$0xf]
        %v2071 = vld [vmem:[#allocation8 + $0x38] sm:$0xf]
        %v2072 = vld [vmem:[#allocation8 + $0x3c] sm:$0xf]
        %v2073 = vunpack.c.l.b16 %v1686
        %v2074 = vunpack.c.l.b16 %v1696
        %v2075 = vunpack.c.l.b16 %v1710
        %v2076 = vunpack.c.l.b16 %v1720
        %v2077 = vunpack.c.l.b16 %v1734
        %v2078 = vunpack.c.l.b16 %v1744
        %v2079 = vunpack.c.l.b16 %v1758
        %v2080 = vunpack.c.l.b16 %v1768
        %v2081 = vunpack.c.l.b16 %v1782
        %v2082 = vunpack.c.l.b16 %v1792
        %v2083 = vunpack.c.l.b16 %v1806
        %v2084 = vunpack.c.l.b16 %v1816
        %v2085 = vunpack.c.l.b16 %v1830
        %v2086 = vunpack.c.l.b16 %v1840
        %v2087 = vunpack.c.l.b16 %v1854
        %v2088 = vunpack.c.l.b16 %v1864
        %v2089 = vunpack.c.l.b16 %v1878
        %v2090 = vunpack.c.l.b16 %v1888
        %v2091 = vunpack.c.l.b16 %v1902
        %v2092 = vunpack.c.l.b16 %v1912
        %v2093 = vunpack.c.l.b16 %v1926
        %v2094 = vunpack.c.l.b16 %v1936
        %v2095 = vunpack.c.l.b16 %v1950
        %v2096 = vunpack.c.l.b16 %v1960
        %v2097 = vunpack.c.l.b16 %v1974
        %v2098 = vunpack.c.l.b16 %v1984
        %v2099 = vunpack.c.l.b16 %v1998
        %v2100 = vunpack.c.l.b16 %v2008
        %v2101 = vunpack.c.l.b16 %v2022
        %v2102 = vunpack.c.l.b16 %v2032
        %v2103 = vunpack.c.l.b16 %v2046
        %v2104 = vunpack.c.l.b16 %v2056
        %v2105 = vpack.c.b16 %v2074, %v2073
        %v2106 = vpack.c.b16 %v2076, %v2075
        %v2107 = vpack.c.b16 %v2078, %v2077
        %v2108 = vpack.c.b16 %v2080, %v2079
        %v2109 = vpack.c.b16 %v2082, %v2081
        %v2110 = vpack.c.b16 %v2084, %v2083
        %v2111 = vpack.c.b16 %v2086, %v2085
        %v2112 = vpack.c.b16 %v2088, %v2087
        %v2113 = vpack.c.b16 %v2090, %v2089
        %v2114 = vpack.c.b16 %v2092, %v2091
        %v2115 = vpack.c.b16 %v2094, %v2093
        %v2116 = vpack.c.b16 %v2096, %v2095
        %v2117 = vpack.c.b16 %v2098, %v2097
        %v2118 = vpack.c.b16 %v2100, %v2099
        %v2119 = vpack.c.b16 %v2102, %v2101
        %v2120 = vpack.c.b16 %v2104, %v2103
        %v2153 = vunpack.c.l.b16 %v2057
        %v2154 = vunpack.c.l.b16 %v2058
        %v2155 = vunpack.c.l.b16 %v2059
        %v2156 = vunpack.c.l.b16 %v2060
        %v2157 = vunpack.c.l.b16 %v2061
        %v2158 = vunpack.c.l.b16 %v2062
        %v2159 = vunpack.c.l.b16 %v2063
        %v2160 = vunpack.c.l.b16 %v2064
        %v2161 = vunpack.c.l.b16 %v2065
        %v2162 = vunpack.c.l.b16 %v2066
        %v2163 = vunpack.c.l.b16 %v2067
        %v2164 = vunpack.c.l.b16 %v2068
        %v2165 = vunpack.c.l.b16 %v2069
        %v2166 = vunpack.c.l.b16 %v2070
        %v2167 = vunpack.c.l.b16 %v2071
        %v2168 = vunpack.c.l.b16 %v2072
        %v2169 = vpack.c.b16 %v2154, %v2153
        %v2170 = vpack.c.b16 %v2156, %v2155
        %v2171 = vpack.c.b16 %v2158, %v2157
        %v2172 = vpack.c.b16 %v2160, %v2159
        %v2173 = vpack.c.b16 %v2162, %v2161
        %v2174 = vpack.c.b16 %v2164, %v2163
        %v2175 = vpack.c.b16 %v2166, %v2165
        %v2176 = vpack.c.b16 %v2168, %v2167
        %2185 = vmatprep.subr.bf16.mxu0 0
        %2186 = vmatpush1.bf16.msra.mxu0 %v2169
        %2187 = vmatprep.subr.bf16.mxu0 0
        %2188 = vmatpush1.bf16.msra.mxu0 %v2170
        %2189 = vmatprep.subr.bf16.mxu0 0
        %2190 = vmatpush1.bf16.msra.mxu0 %v2171
        %2191 = vmatprep.subr.bf16.mxu0 0
        %2192 = vmatpush1.bf16.msra.mxu0 %v2172
        %2193 = vmatprep.subr.bf16.mxu0 0
        %2194 = vmatpush1.bf16.msra.mxu0 %v2173
        %2195 = vmatprep.subr.bf16.mxu0 0
        %2196 = vmatpush1.bf16.msra.mxu0 %v2174
        %2197 = vmatprep.subr.bf16.mxu0 0
        %2198 = vmatpush1.bf16.msra.mxu0 %v2175
        %2199 = vmatprep.subr.bf16.mxu0 0
        %2200 = vmatpush1.bf16.msra.mxu0 %v2176
        %2201 = vmatprep.subr.bf16.mxu0 0
        %2202 = vmatpush1.bf16.msra.mxu0 0
        %2203 = vmatprep.subr.bf16.mxu0 0
        %2204 = vmatpush1.bf16.msra.mxu0 0
        %2205 = vmatprep.subr.bf16.mxu0 0
        %2206 = vmatpush1.bf16.msra.mxu0 0
        %2207 = vmatprep.subr.bf16.mxu0 0
        %2208 = vmatpush1.bf16.msra.mxu0 0
        %2209 = vmatprep.subr.bf16.mxu0 0
        %2210 = vmatpush1.bf16.msra.mxu0 0
        %2211 = vmatprep.subr.bf16.mxu0 0
        %2212 = vmatpush1.bf16.msra.mxu0 0
        %2213 = vmatprep.subr.bf16.mxu0 0
        %2214 = vmatpush1.bf16.msra.mxu0 0
        %2215 = vmatprep.subr.bf16.mxu0 0
        %2216 = vmatpush1.bf16.msra.mxu0 0
        %2217 = vmatprep.mubr.bf16.mxu0 0
        %2218 = vmatmul.mubr.bf16.gmra.mrb[0].mxu0 %v2105
        %v2219 = vpop.f32.mrb[0].mxu0
        %v2220 = vadd.f32 0.0, %v2219
        %v2221 = vpop.f32.mrb[0].mxu0
        %v2222 = vpop.f32.mrb[0].mxu0
        %v2223 = vadd.f32 0.0, %v2222
        %v2224 = vpop.f32.mrb[0].mxu0
        %2225 = vmatprep.mubr.bf16.mxu0 0
        %2226 = vmatmul.mubr.bf16.gmra.mrb[0].mxu0 %v2106
        %v2227 = vpop.f32.mrb[0].mxu0
        %v2228 = vadd.f32 0.0, %v2227
        %v2229 = vpop.f32.mrb[0].mxu0
        %v2230 = vpop.f32.mrb[0].mxu0
        %v2231 = vadd.f32 0.0, %v2230
        %v2232 = vpop.f32.mrb[0].mxu0
        %2233 = vmatprep.mubr.bf16.mxu0 0
        %2234 = vmatmul.mubr.bf16.gmra.mrb[0].mxu0 %v2107
        %v2235 = vpop.f32.mrb[0].mxu0
        %v2236 = vadd.f32 0.0, %v2235
        %v2237 = vpop.f32.mrb[0].mxu0
        %v2238 = vpop.f32.mrb[0].mxu0
        %v2239 = vadd.f32 0.0, %v2238
        %v2240 = vpop.f32.mrb[0].mxu0
        %2241 = vmatprep.mubr.bf16.mxu0 0
        %2242 = vmatmul.mubr.bf16.gmra.mrb[0].mxu0 %v2108
        %v2243 = vpop.f32.mrb[0].mxu0
        %v2244 = vadd.f32 0.0, %v2243
        %v2245 = vpop.f32.mrb[0].mxu0
        %v2246 = vpop.f32.mrb[0].mxu0
        %v2247 = vadd.f32 0.0, %v2246
        %v2248 = vpop.f32.mrb[0].mxu0
        %2249 = vmatprep.mubr.bf16.mxu0 0
        %2250 = vmatmul.mubr.bf16.gmra.mrb[0].mxu0 %v2109
        %v2251 = vpop.f32.mrb[0].mxu0
        %v2252 = vadd.f32 0.0, %v2251
        %v2253 = vpop.f32.mrb[0].mxu0
        %v2254 = vpop.f32.mrb[0].mxu0
        %v2255 = vadd.f32 0.0, %v2254
        %v2256 = vpop.f32.mrb[0].mxu0
        %2257 = vmatprep.mubr.bf16.mxu0 0
        %2258 = vmatmul.mubr.bf16.gmra.mrb[0].mxu0 %v2110
        %v2259 = vpop.f32.mrb[0].mxu0
        %v2260 = vadd.f32 0.0, %v2259
        %v2261 = vpop.f32.mrb[0].mxu0
        %v2262 = vpop.f32.mrb[0].mxu0
        %v2263 = vadd.f32 0.0, %v2262
        %v2264 = vpop.f32.mrb[0].mxu0
        %2265 = vmatprep.mubr.bf16.mxu0 0
        %2266 = vmatmul.mubr.bf16.gmra.mrb[0].mxu0 %v2111
        %v2267 = vpop.f32.mrb[0].mxu0
        %v2268 = vadd.f32 0.0, %v2267
        %v2269 = vpop.f32.mrb[0].mxu0
        %v2270 = vpop.f32.mrb[0].mxu0
        %v2271 = vadd.f32 0.0, %v2270
        %v2272 = vpop.f32.mrb[0].mxu0
        %2273 = vmatprep.mubr.bf16.mxu0 0
        %2274 = vmatmul.mubr.bf16.gmra.mrb[0].mxu0 %v2112
        %v2275 = vpop.f32.mrb[0].mxu0
        %v2276 = vadd.f32 0.0, %v2275
        %v2277 = vpop.f32.mrb[0].mxu0
        %v2278 = vpop.f32.mrb[0].mxu0
        %v2279 = vadd.f32 0.0, %v2278
        %v2280 = vpop.f32.mrb[0].mxu0
        %2281 = vmatprep.mubr.bf16.mxu0 0
        %2282 = vmatmul.mubr.bf16.gmra.mrb[0].mxu0 %v2113
        %v2283 = vpop.f32.mrb[0].mxu0
        %v2284 = vadd.f32 0.0, %v2283
        %v2285 = vpop.f32.mrb[0].mxu0
        %v2286 = vpop.f32.mrb[0].mxu0
        %v2287 = vadd.f32 0.0, %v2286
        %v2288 = vpop.f32.mrb[0].mxu0
        %2289 = vmatprep.mubr.bf16.mxu0 0
        %2290 = vmatmul.mubr.bf16.gmra.mrb[0].mxu0 %v2114
        %v2291 = vpop.f32.mrb[0].mxu0
        %v2292 = vadd.f32 0.0, %v2291
        %v2293 = vpop.f32.mrb[0].mxu0
        %v2294 = vpop.f32.mrb[0].mxu0
        %v2295 = vadd.f32 0.0, %v2294
        %v2296 = vpop.f32.mrb[0].mxu0
        %2297 = vmatprep.mubr.bf16.mxu0 0
        %2298 = vmatmul.mubr.bf16.gmra.mrb[0].mxu0 %v2115
        %v2299 = vpop.f32.mrb[0].mxu0
        %v2300 = vadd.f32 0.0, %v2299
        %v2301 = vpop.f32.mrb[0].mxu0
        %v2302 = vpop.f32.mrb[0].mxu0
        %v2303 = vadd.f32 0.0, %v2302
        %v2304 = vpop.f32.mrb[0].mxu0
        %2305 = vmatprep.mubr.bf16.mxu0 0
        %2306 = vmatmul.mubr.bf16.gmra.mrb[0].mxu0 %v2116
        %v2307 = vpop.f32.mrb[0].mxu0
        %v2308 = vadd.f32 0.0, %v2307
        %v2309 = vpop.f32.mrb[0].mxu0
        %v2310 = vpop.f32.mrb[0].mxu0
        %v2311 = vadd.f32 0.0, %v2310
        %v2312 = vpop.f32.mrb[0].mxu0
        %2313 = vmatprep.mubr.bf16.mxu0 0
        %2314 = vmatmul.mubr.bf16.gmra.mrb[0].mxu0 %v2117
        %v2315 = vpop.f32.mrb[0].mxu0
        %v2316 = vadd.f32 0.0, %v2315
        %v2317 = vpop.f32.mrb[0].mxu0
        %v2318 = vpop.f32.mrb[0].mxu0
        %v2319 = vadd.f32 0.0, %v2318
        %v2320 = vpop.f32.mrb[0].mxu0
        %2321 = vmatprep.mubr.bf16.mxu0 0
        %2322 = vmatmul.mubr.bf16.gmra.mrb[0].mxu0 %v2118
        %v2323 = vpop.f32.mrb[0].mxu0
        %v2324 = vadd.f32 0.0, %v2323
        %v2325 = vpop.f32.mrb[0].mxu0
        %v2326 = vpop.f32.mrb[0].mxu0
        %v2327 = vadd.f32 0.0, %v2326
        %v2328 = vpop.f32.mrb[0].mxu0
        %2329 = vmatprep.mubr.bf16.mxu0 0
        %2330 = vmatmul.mubr.bf16.gmra.mrb[0].mxu0 %v2119
        %v2331 = vpop.f32.mrb[0].mxu0
        %v2332 = vadd.f32 0.0, %v2331
        %v2333 = vpop.f32.mrb[0].mxu0
        %v2334 = vpop.f32.mrb[0].mxu0
        %v2335 = vadd.f32 0.0, %v2334
        %v2336 = vpop.f32.mrb[0].mxu0
        %2337 = vmatprep.mubr.bf16.mxu0 0
        %2338 = vmatmul.mubr.bf16.gmra.mrb[0].mxu0 %v2120
        %v2339 = vpop.f32.mrb[0].mxu0
        %v2340 = vadd.f32 0.0, %v2339
        %v2341 = vpop.f32.mrb[0].mxu0
        %v2342 = vpop.f32.mrb[0].mxu0
        %v2343 = vadd.f32 0.0, %v2342
        %v2344 = vpop.f32.mrb[0].mxu0
        %2345 = vdwg.mxu0
        %v2346 = vld [vmem:[#allocation2] sm:$0xf]
        %v2347 = vld [vmem:[#allocation2 + $0x4] sm:$0xf]
        %v2348 = vld [vmem:[#allocation2 + $0x8] sm:$0xf]
        %v2349 = vld [vmem:[#allocation2 + $0xc] sm:$0xf]
        %v2350 = vld [vmem:[#allocation2 + $0x10] sm:$0xf]
        %v2351 = vld [vmem:[#allocation2 + $0x14] sm:$0xf]
        %v2352 = vld [vmem:[#allocation2 + $0x18] sm:$0xf]
        %v2353 = vld [vmem:[#allocation2 + $0x1c] sm:$0xf]
        %v2354 = vld [vmem:[#allocation2 + $0x20] sm:$0xf]
        %v2355 = vld [vmem:[#allocation2 + $0x24] sm:$0xf]
        %v2356 = vld [vmem:[#allocation2 + $0x28] sm:$0xf]
        %v2357 = vld [vmem:[#allocation2 + $0x2c] sm:$0xf]
        %v2358 = vld [vmem:[#allocation2 + $0x30] sm:$0xf]
        %v2359 = vld [vmem:[#allocation2 + $0x34] sm:$0xf]
        %v2360 = vld [vmem:[#allocation2 + $0x38] sm:$0xf]
        %v2361 = vld [vmem:[#allocation2 + $0x3c] sm:$0xf]
        %v2362 = vld [vmem:[#allocation2 + $0x40] sm:$0xf]
        %v2363 = vld [vmem:[#allocation2 + $0x44] sm:$0xf]
        %v2364 = vld [vmem:[#allocation2 + $0x48] sm:$0xf]
        %v2365 = vld [vmem:[#allocation2 + $0x4c] sm:$0xf]
        %v2366 = vld [vmem:[#allocation2 + $0x50] sm:$0xf]
        %v2367 = vld [vmem:[#allocation2 + $0x54] sm:$0xf]
        %v2368 = vld [vmem:[#allocation2 + $0x58] sm:$0xf]
        %v2369 = vld [vmem:[#allocation2 + $0x5c] sm:$0xf]
        %v2370 = vld [vmem:[#allocation2 + $0x60] sm:$0xf]
        %v2371 = vld [vmem:[#allocation2 + $0x64] sm:$0xf]
        %v2372 = vld [vmem:[#allocation2 + $0x68] sm:$0xf]
        %v2373 = vld [vmem:[#allocation2 + $0x6c] sm:$0xf]
        %v2374 = vld [vmem:[#allocation2 + $0x70] sm:$0xf]
        %v2375 = vld [vmem:[#allocation2 + $0x74] sm:$0xf]
        %v2376 = vld [vmem:[#allocation2 + $0x78] sm:$0xf]
        %v2377 = vld [vmem:[#allocation2 + $0x7c] sm:$0xf]
        %v2378 = vld [vmem:[#allocation2 + $0x80] sm:$0xf]
        %v2379 = vld [vmem:[#allocation2 + $0x84] sm:$0xf]
        %v2380 = vld [vmem:[#allocation2 + $0x88] sm:$0xf]
        %v2381 = vld [vmem:[#allocation2 + $0x8c] sm:$0xf]
        %v2382 = vld [vmem:[#allocation2 + $0x90] sm:$0xf]
        %v2383 = vld [vmem:[#allocation2 + $0x94] sm:$0xf]
        %v2384 = vld [vmem:[#allocation2 + $0x98] sm:$0xf]
        %v2385 = vld [vmem:[#allocation2 + $0x9c] sm:$0xf]
        %v2386 = vld [vmem:[#allocation2 + $0xa0] sm:$0xf]
        %v2387 = vld [vmem:[#allocation2 + $0xa4] sm:$0xf]
        %v2388 = vld [vmem:[#allocation2 + $0xa8] sm:$0xf]
        %v2389 = vld [vmem:[#allocation2 + $0xac] sm:$0xf]
        %v2390 = vld [vmem:[#allocation2 + $0xb0] sm:$0xf]
        %v2391 = vld [vmem:[#allocation2 + $0xb4] sm:$0xf]
        %v2392 = vld [vmem:[#allocation2 + $0xb8] sm:$0xf]
        %v2393 = vld [vmem:[#allocation2 + $0xbc] sm:$0xf]
        %v2426 = vunpack.c.l.b16 %v2346
        %v2427 = vunpack.c.l.b16 %v2347
        %v2428 = vunpack.c.l.b16 %v2349
        %v2429 = vunpack.c.l.b16 %v2350
        %v2430 = vunpack.c.l.b16 %v2352
        %v2431 = vunpack.c.l.b16 %v2353
        %v2432 = vunpack.c.l.b16 %v2355
        %v2433 = vunpack.c.l.b16 %v2356
        %v2434 = vunpack.c.l.b16 %v2358
        %v2435 = vunpack.c.l.b16 %v2359
        %v2436 = vunpack.c.l.b16 %v2361
        %v2437 = vunpack.c.l.b16 %v2362
        %v2438 = vunpack.c.l.b16 %v2364
        %v2439 = vunpack.c.l.b16 %v2365
        %v2440 = vunpack.c.l.b16 %v2367
        %v2441 = vunpack.c.l.b16 %v2368
        %v2442 = vunpack.c.l.b16 %v2370
        %v2443 = vunpack.c.l.b16 %v2371
        %v2444 = vunpack.c.l.b16 %v2373
        %v2445 = vunpack.c.l.b16 %v2374
        %v2446 = vunpack.c.l.b16 %v2376
        %v2447 = vunpack.c.l.b16 %v2377
        %v2448 = vunpack.c.l.b16 %v2379
        %v2449 = vunpack.c.l.b16 %v2380
        %v2450 = vunpack.c.l.b16 %v2382
        %v2451 = vunpack.c.l.b16 %v2383
        %v2452 = vunpack.c.l.b16 %v2385
        %v2453 = vunpack.c.l.b16 %v2386
        %v2454 = vunpack.c.l.b16 %v2388
        %v2455 = vunpack.c.l.b16 %v2389
        %v2456 = vunpack.c.l.b16 %v2391
        %v2457 = vunpack.c.l.b16 %v2392
        %v2458 = vpack.c.b16 %v2427, %v2426
        %v2459 = vpack.c.b16 %v2429, %v2428
        %v2460 = vpack.c.b16 %v2431, %v2430
        %v2461 = vpack.c.b16 %v2433, %v2432
        %v2462 = vpack.c.b16 %v2435, %v2434
        %v2463 = vpack.c.b16 %v2437, %v2436
        %v2464 = vpack.c.b16 %v2439, %v2438
        %v2465 = vpack.c.b16 %v2441, %v2440
        %v2466 = vpack.c.b16 %v2443, %v2442
        %v2467 = vpack.c.b16 %v2445, %v2444
        %v2468 = vpack.c.b16 %v2447, %v2446
        %v2469 = vpack.c.b16 %v2449, %v2448
        %v2470 = vpack.c.b16 %v2451, %v2450
        %v2471 = vpack.c.b16 %v2453, %v2452
        %v2472 = vpack.c.b16 %v2455, %v2454
        %v2473 = vpack.c.b16 %v2457, %v2456
        %v2506 = vunpack.c.l.b16 %v2348
        %v2507 = vunpack.c.l.b16 %v2351
        %v2508 = vunpack.c.l.b16 %v2354
        %v2509 = vunpack.c.l.b16 %v2357
        %v2510 = vunpack.c.l.b16 %v2360
        %v2511 = vunpack.c.l.b16 %v2363
        %v2512 = vunpack.c.l.b16 %v2366
        %v2513 = vunpack.c.l.b16 %v2369
        %v2514 = vunpack.c.l.b16 %v2372
        %v2515 = vunpack.c.l.b16 %v2375
        %v2516 = vunpack.c.l.b16 %v2378
        %v2517 = vunpack.c.l.b16 %v2381
        %v2518 = vunpack.c.l.b16 %v2384
        %v2519 = vunpack.c.l.b16 %v2387
        %v2520 = vunpack.c.l.b16 %v2390
        %v2521 = vunpack.c.l.b16 %v2393
        %v2522 = vpack.c.b16 %v2506, %v2506
        %v2523 = vpack.c.b16 %v2507, %v2507
        %v2524 = vpack.c.b16 %v2508, %v2508
        %v2525 = vpack.c.b16 %v2509, %v2509
        %v2526 = vpack.c.b16 %v2510, %v2510
        %v2527 = vpack.c.b16 %v2511, %v2511
        %v2528 = vpack.c.b16 %v2512, %v2512
        %v2529 = vpack.c.b16 %v2513, %v2513
        %v2530 = vpack.c.b16 %v2514, %v2514
        %v2531 = vpack.c.b16 %v2515, %v2515
        %v2532 = vpack.c.b16 %v2516, %v2516
        %v2533 = vpack.c.b16 %v2517, %v2517
        %v2534 = vpack.c.b16 %v2518, %v2518
        %v2535 = vpack.c.b16 %v2519, %v2519
        %v2536 = vpack.c.b16 %v2520, %v2520
        %v2537 = vpack.c.b16 %v2521, %v2521
        %vm2538 = vsmask.f32 7424
        %v2540 = vshrl.u32 %v2458, 16
        %v2542 = vshll.u32 %v2458, 16
        %v2544 = vrot.slane %v2542, 1
        %v2545 = vor.u32 %v2540, %v2544
        %v2547 = vshll.u32 %v2522, 16
        %v2549 = vrot.slane %v2547, 1
        %v2550 = vsel %vm2538, %v2545, %v2549
        %v2552 = vshrl.u32 %v2459, 16
        %v2554 = vshll.u32 %v2459, 16
        %v2556 = vrot.slane %v2554, 1
        %v2557 = vor.u32 %v2552, %v2556
        %v2559 = vshll.u32 %v2523, 16
        %v2561 = vrot.slane %v2559, 1
        %v2562 = vsel %vm2538, %v2557, %v2561
        %v2564 = vshrl.u32 %v2460, 16
        %v2566 = vshll.u32 %v2460, 16
        %v2568 = vrot.slane %v2566, 1
        %v2569 = vor.u32 %v2564, %v2568
        %v2571 = vshll.u32 %v2524, 16
        %v2573 = vrot.slane %v2571, 1
        %v2574 = vsel %vm2538, %v2569, %v2573
        %v2576 = vshrl.u32 %v2461, 16
        %v2578 = vshll.u32 %v2461, 16
        %v2580 = vrot.slane %v2578, 1
        %v2581 = vor.u32 %v2576, %v2580
        %v2583 = vshll.u32 %v2525, 16
        %v2585 = vrot.slane %v2583, 1
        %v2586 = vsel %vm2538, %v2581, %v2585
        %v2588 = vshrl.u32 %v2462, 16
        %v2590 = vshll.u32 %v2462, 16
        %v2592 = vrot.slane %v2590, 1
        %v2593 = vor.u32 %v2588, %v2592
        %v2595 = vshll.u32 %v2526, 16
        %v2597 = vrot.slane %v2595, 1
        %v2598 = vsel %vm2538, %v2593, %v2597
        %v2600 = vshrl.u32 %v2463, 16
        %v2602 = vshll.u32 %v2463, 16
        %v2604 = vrot.slane %v2602, 1
        %v2605 = vor.u32 %v2600, %v2604
        %v2607 = vshll.u32 %v2527, 16
        %v2609 = vrot.slane %v2607, 1
        %v2610 = vsel %vm2538, %v2605, %v2609
        %v2612 = vshrl.u32 %v2464, 16
        %v2614 = vshll.u32 %v2464, 16
        %v2616 = vrot.slane %v2614, 1
        %v2617 = vor.u32 %v2612, %v2616
        %v2619 = vshll.u32 %v2528, 16
        %v2621 = vrot.slane %v2619, 1
        %v2622 = vsel %vm2538, %v2617, %v2621
        %v2624 = vshrl.u32 %v2465, 16
        %v2626 = vshll.u32 %v2465, 16
        %v2628 = vrot.slane %v2626, 1
        %v2629 = vor.u32 %v2624, %v2628
        %v2631 = vshll.u32 %v2529, 16
        %v2633 = vrot.slane %v2631, 1
        %v2634 = vsel %vm2538, %v2629, %v2633
        %v2636 = vshrl.u32 %v2466, 16
        %v2638 = vshll.u32 %v2466, 16
        %v2640 = vrot.slane %v2638, 1
        %v2641 = vor.u32 %v2636, %v2640
        %v2643 = vshll.u32 %v2530, 16
        %v2645 = vrot.slane %v2643, 1
        %v2646 = vsel %vm2538, %v2641, %v2645
        %v2648 = vshrl.u32 %v2467, 16
        %v2650 = vshll.u32 %v2467, 16
        %v2652 = vrot.slane %v2650, 1
        %v2653 = vor.u32 %v2648, %v2652
        %v2655 = vshll.u32 %v2531, 16
        %v2657 = vrot.slane %v2655, 1
        %v2658 = vsel %vm2538, %v2653, %v2657
        %v2660 = vshrl.u32 %v2468, 16
        %v2662 = vshll.u32 %v2468, 16
        %v2664 = vrot.slane %v2662, 1
        %v2665 = vor.u32 %v2660, %v2664
        %v2667 = vshll.u32 %v2532, 16
        %v2669 = vrot.slane %v2667, 1
        %v2670 = vsel %vm2538, %v2665, %v2669
        %v2672 = vshrl.u32 %v2469, 16
        %v2674 = vshll.u32 %v2469, 16
        %v2676 = vrot.slane %v2674, 1
        %v2677 = vor.u32 %v2672, %v2676
        %v2679 = vshll.u32 %v2533, 16
        %v2681 = vrot.slane %v2679, 1
        %v2682 = vsel %vm2538, %v2677, %v2681
        %v2684 = vshrl.u32 %v2470, 16
        %v2686 = vshll.u32 %v2470, 16
        %v2688 = vrot.slane %v2686, 1
        %v2689 = vor.u32 %v2684, %v2688
        %v2691 = vshll.u32 %v2534, 16
        %v2693 = vrot.slane %v2691, 1
        %v2694 = vsel %vm2538, %v2689, %v2693
        %v2696 = vshrl.u32 %v2471, 16
        %v2698 = vshll.u32 %v2471, 16
        %v2700 = vrot.slane %v2698, 1
        %v2701 = vor.u32 %v2696, %v2700
        %v2703 = vshll.u32 %v2535, 16
        %v2705 = vrot.slane %v2703, 1
        %v2706 = vsel %vm2538, %v2701, %v2705
        %v2708 = vshrl.u32 %v2472, 16
        %v2710 = vshll.u32 %v2472, 16
        %v2712 = vrot.slane %v2710, 1
        %v2713 = vor.u32 %v2708, %v2712
        %v2715 = vshll.u32 %v2536, 16
        %v2717 = vrot.slane %v2715, 1
        %v2718 = vsel %vm2538, %v2713, %v2717
        %v2720 = vshrl.u32 %v2473, 16
        %v2722 = vshll.u32 %v2473, 16
        %v2724 = vrot.slane %v2722, 1
        %v2725 = vor.u32 %v2720, %v2724
        %v2727 = vshll.u32 %v2537, 16
        %v2729 = vrot.slane %v2727, 1
        %v2730 = vsel %vm2538, %v2725, %v2729
        %vm2747 = vcmask 1046528
        %v2748 = vrot.slane %v2458, 1
        %v2749 = vrot.slane %v2522, 1
        %v2750 = vsel %vm2747, %v2748, %v2749
        %v2751 = vrot.slane %v2459, 1
        %v2752 = vrot.slane %v2523, 1
        %v2753 = vsel %vm2747, %v2751, %v2752
        %v2754 = vrot.slane %v2460, 1
        %v2755 = vrot.slane %v2524, 1
        %v2756 = vsel %vm2747, %v2754, %v2755
        %v2757 = vrot.slane %v2461, 1
        %v2758 = vrot.slane %v2525, 1
        %v2759 = vsel %vm2747, %v2757, %v2758
        %v2760 = vrot.slane %v2462, 1
        %v2761 = vrot.slane %v2526, 1
        %v2762 = vsel %vm2747, %v2760, %v2761
        %v2763 = vrot.slane %v2463, 1
        %v2764 = vrot.slane %v2527, 1
        %v2765 = vsel %vm2747, %v2763, %v2764
        %v2766 = vrot.slane %v2464, 1
        %v2767 = vrot.slane %v2528, 1
        %v2768 = vsel %vm2747, %v2766, %v2767
        %v2769 = vrot.slane %v2465, 1
        %v2770 = vrot.slane %v2529, 1
        %v2771 = vsel %vm2747, %v2769, %v2770
        %v2772 = vrot.slane %v2466, 1
        %v2773 = vrot.slane %v2530, 1
        %v2774 = vsel %vm2747, %v2772, %v2773
        %v2775 = vrot.slane %v2467, 1
        %v2776 = vrot.slane %v2531, 1
        %v2777 = vsel %vm2747, %v2775, %v2776
        %v2778 = vrot.slane %v2468, 1
        %v2779 = vrot.slane %v2532, 1
        %v2780 = vsel %vm2747, %v2778, %v2779
        %v2781 = vrot.slane %v2469, 1
        %v2782 = vrot.slane %v2533, 1
        %v2783 = vsel %vm2747, %v2781, %v2782
        %v2784 = vrot.slane %v2470, 1
        %v2785 = vrot.slane %v2534, 1
        %v2786 = vsel %vm2747, %v2784, %v2785
        %v2787 = vrot.slane %v2471, 1
        %v2788 = vrot.slane %v2535, 1
        %v2789 = vsel %vm2747, %v2787, %v2788
        %v2790 = vrot.slane %v2472, 1
        %v2791 = vrot.slane %v2536, 1
        %v2792 = vsel %vm2747, %v2790, %v2791
        %v2793 = vrot.slane %v2473, 1
        %v2794 = vrot.slane %v2537, 1
        %v2795 = vsel %vm2747, %v2793, %v2794
        %v2812 = vld [vmem:[#allocation11] sm:$0xf]
        %v2813 = vld [vmem:[#allocation11 + $0x4] sm:$0xf]
        %v2814 = vld [vmem:[#allocation11 + $0x8] sm:$0xf]
        %v2815 = vld [vmem:[#allocation11 + $0xc] sm:$0xf]
        %v2816 = vld [vmem:[#allocation11 + $0x10] sm:$0xf]
        %v2817 = vld [vmem:[#allocation11 + $0x14] sm:$0xf]
        %v2818 = vld [vmem:[#allocation11 + $0x18] sm:$0xf]
        %v2819 = vld [vmem:[#allocation11 + $0x1c] sm:$0xf]
        %v2820 = vld [vmem:[#allocation11 + $0x20] sm:$0xf]
        %v2821 = vld [vmem:[#allocation11 + $0x24] sm:$0xf]
        %v2822 = vld [vmem:[#allocation11 + $0x28] sm:$0xf]
        %v2823 = vld [vmem:[#allocation11 + $0x2c] sm:$0xf]
        %v2824 = vld [vmem:[#allocation11 + $0x30] sm:$0xf]
        %v2825 = vld [vmem:[#allocation11 + $0x34] sm:$0xf]
        %v2826 = vld [vmem:[#allocation11 + $0x38] sm:$0xf]
        %v2827 = vld [vmem:[#allocation11 + $0x3c] sm:$0xf]
        %v2828 = vld [vmem:[#allocation11 + $0x40] sm:$0xf]
        %v2829 = vld [vmem:[#allocation11 + $0x44] sm:$0xf]
        %v2830 = vld [vmem:[#allocation11 + $0x48] sm:$0xf]
        %v2831 = vld [vmem:[#allocation11 + $0x4c] sm:$0xf]
        %v2832 = vld [vmem:[#allocation11 + $0x50] sm:$0xf]
        %v2833 = vld [vmem:[#allocation11 + $0x54] sm:$0xf]
        %v2834 = vld [vmem:[#allocation11 + $0x58] sm:$0xf]
        %v2835 = vld [vmem:[#allocation11 + $0x5c] sm:$0xf]
        %v2836 = vld [vmem:[#allocation11 + $0x60] sm:$0xf]
        %v2837 = vld [vmem:[#allocation11 + $0x64] sm:$0xf]
        %v2838 = vld [vmem:[#allocation11 + $0x68] sm:$0xf]
        %v2839 = vld [vmem:[#allocation11 + $0x6c] sm:$0xf]
        %v2840 = vld [vmem:[#allocation11 + $0x70] sm:$0xf]
        %v2841 = vld [vmem:[#allocation11 + $0x74] sm:$0xf]
        %v2842 = vld [vmem:[#allocation11 + $0x78] sm:$0xf]
        %v2843 = vld [vmem:[#allocation11 + $0x7c] sm:$0xf]
        %v2844 = vld [vmem:[#allocation11 + $0x80] sm:$0xf]
        %v2845 = vld [vmem:[#allocation11 + $0x84] sm:$0xf]
        %v2846 = vld [vmem:[#allocation11 + $0x88] sm:$0xf]
        %v2847 = vld [vmem:[#allocation11 + $0x8c] sm:$0xf]
        %v2848 = vld [vmem:[#allocation11 + $0x90] sm:$0xf]
        %v2849 = vld [vmem:[#allocation11 + $0x94] sm:$0xf]
        %v2850 = vld [vmem:[#allocation11 + $0x98] sm:$0xf]
        %v2851 = vld [vmem:[#allocation11 + $0x9c] sm:$0xf]
        %v2852 = vld [vmem:[#allocation11 + $0xa0] sm:$0xf]
        %v2853 = vld [vmem:[#allocation11 + $0xa4] sm:$0xf]
        %v2854 = vld [vmem:[#allocation11 + $0xa8] sm:$0xf]
        %v2855 = vld [vmem:[#allocation11 + $0xac] sm:$0xf]
        %v2856 = vld [vmem:[#allocation11 + $0xb0] sm:$0xf]
        %v2857 = vld [vmem:[#allocation11 + $0xb4] sm:$0xf]
        %v2858 = vld [vmem:[#allocation11 + $0xb8] sm:$0xf]
        %v2859 = vld [vmem:[#allocation11 + $0xbc] sm:$0xf]
        %s2860 = scalar_lea.vmem [#allocation2], 12
        %v2861 = vld [vmem:[%s2860] sm:$0xf]
        %v2862 = vld [vmem:[%s2860 + $0x4] sm:$0xf]
        %v2863 = vld [vmem:[%s2860 + $0x8] sm:$0xf]
        %v2864 = vld [vmem:[%s2860 + $0xc] sm:$0xf]
        %v2865 = vld [vmem:[%s2860 + $0x10] sm:$0xf]
        %v2866 = vld [vmem:[%s2860 + $0x14] sm:$0xf]
        %v2867 = vld [vmem:[%s2860 + $0x18] sm:$0xf]
        %v2868 = vld [vmem:[%s2860 + $0x1c] sm:$0xf]
        %v2869 = vld [vmem:[%s2860 + $0x20] sm:$0xf]
        %v2870 = vld [vmem:[%s2860 + $0x24] sm:$0xf]
        %v2871 = vld [vmem:[%s2860 + $0x28] sm:$0xf]
        %v2872 = vld [vmem:[%s2860 + $0x2c] sm:$0xf]
        %v2873 = vld [vmem:[%s2860 + $0x30] sm:$0xf]
        %v2874 = vld [vmem:[%s2860 + $0x34] sm:$0xf]
        %v2875 = vld [vmem:[%s2860 + $0x38] sm:$0xf]
        %v2876 = vld [vmem:[%s2860 + $0x3c] sm:$0xf]
        %v2877 = vld [vmem:[%s2860 + $0x40] sm:$0xf]
        %v2878 = vld [vmem:[%s2860 + $0x44] sm:$0xf]
        %v2879 = vld [vmem:[%s2860 + $0x48] sm:$0xf]
        %v2880 = vld [vmem:[%s2860 + $0x4c] sm:$0xf]
        %v2881 = vld [vmem:[%s2860 + $0x50] sm:$0xf]
        %v2882 = vld [vmem:[%s2860 + $0x54] sm:$0xf]
        %v2883 = vld [vmem:[%s2860 + $0x58] sm:$0xf]
        %v2884 = vld [vmem:[%s2860 + $0x5c] sm:$0xf]
        %v2885 = vld [vmem:[%s2860 + $0x60] sm:$0xf]
        %v2886 = vld [vmem:[%s2860 + $0x64] sm:$0xf]
        %v2887 = vld [vmem:[%s2860 + $0x68] sm:$0xf]
        %v2888 = vld [vmem:[%s2860 + $0x6c] sm:$0xf]
        %v2889 = vld [vmem:[%s2860 + $0x70] sm:$0xf]
        %v2890 = vld [vmem:[%s2860 + $0x74] sm:$0xf]
        %v2891 = vld [vmem:[%s2860 + $0x78] sm:$0xf]
        %v2892 = vld [vmem:[%s2860 + $0x7c] sm:$0xf]
        %v2893 = vld [vmem:[%s2860 + $0x80] sm:$0xf]
        %v2894 = vld [vmem:[%s2860 + $0x84] sm:$0xf]
        %v2895 = vld [vmem:[%s2860 + $0x88] sm:$0xf]
        %v2896 = vld [vmem:[%s2860 + $0x8c] sm:$0xf]
        %v2897 = vld [vmem:[%s2860 + $0x90] sm:$0xf]
        %v2898 = vld [vmem:[%s2860 + $0x94] sm:$0xf]
        %v2899 = vld [vmem:[%s2860 + $0x98] sm:$0xf]
        %v2900 = vld [vmem:[%s2860 + $0x9c] sm:$0xf]
        %v2901 = vld [vmem:[%s2860 + $0xa0] sm:$0xf]
        %v2902 = vld [vmem:[%s2860 + $0xa4] sm:$0xf]
        %v2903 = vld [vmem:[%s2860 + $0xa8] sm:$0xf]
        %v2904 = vld [vmem:[%s2860 + $0xac] sm:$0xf]
        %v2905 = vld [vmem:[%s2860 + $0xb0] sm:$0xf]
        %v2906 = vld [vmem:[%s2860 + $0xb4] sm:$0xf]
        %v2907 = vld [vmem:[%s2860 + $0xb8] sm:$0xf]
        %v2908 = vld [vmem:[%s2860 + $0xbc] sm:$0xf]
        %v2941 = vunpack.c.l.b16 %v2861
        %v2942 = vunpack.c.l.b16 %v2862
        %v2943 = vunpack.c.l.b16 %v2864
        %v2944 = vunpack.c.l.b16 %v2865
        %v2945 = vunpack.c.l.b16 %v2867
        %v2946 = vunpack.c.l.b16 %v2868
        %v2947 = vunpack.c.l.b16 %v2870
        %v2948 = vunpack.c.l.b16 %v2871
        %v2949 = vunpack.c.l.b16 %v2873
        %v2950 = vunpack.c.l.b16 %v2874
        %v2951 = vunpack.c.l.b16 %v2876
        %v2952 = vunpack.c.l.b16 %v2877
        %v2953 = vunpack.c.l.b16 %v2879
        %v2954 = vunpack.c.l.b16 %v2880
        %v2955 = vunpack.c.l.b16 %v2882
        %v2956 = vunpack.c.l.b16 %v2883
        %v2957 = vunpack.c.l.b16 %v2885
        %v2958 = vunpack.c.l.b16 %v2886
        %v2959 = vunpack.c.l.b16 %v2888
        %v2960 = vunpack.c.l.b16 %v2889
        %v2961 = vunpack.c.l.b16 %v2891
        %v2962 = vunpack.c.l.b16 %v2892
        %v2963 = vunpack.c.l.b16 %v2894
        %v2964 = vunpack.c.l.b16 %v2895
        %v2965 = vunpack.c.l.b16 %v2897
        %v2966 = vunpack.c.l.b16 %v2898
        %v2967 = vunpack.c.l.b16 %v2900
        %v2968 = vunpack.c.l.b16 %v2901
        %v2969 = vunpack.c.l.b16 %v2903
        %v2970 = vunpack.c.l.b16 %v2904
        %v2971 = vunpack.c.l.b16 %v2906
        %v2972 = vunpack.c.l.b16 %v2907
        %v2973 = vpack.c.b16 %v2942, %v2941
        %v2974 = vpack.c.b16 %v2944, %v2943
        %v2975 = vpack.c.b16 %v2946, %v2945
        %v2976 = vpack.c.b16 %v2948, %v2947
        %v2977 = vpack.c.b16 %v2950, %v2949
        %v2978 = vpack.c.b16 %v2952, %v2951
        %v2979 = vpack.c.b16 %v2954, %v2953
        %v2980 = vpack.c.b16 %v2956, %v2955
        %v2981 = vpack.c.b16 %v2958, %v2957
        %v2982 = vpack.c.b16 %v2960, %v2959
        %v2983 = vpack.c.b16 %v2962, %v2961
        %v2984 = vpack.c.b16 %v2964, %v2963
        %v2985 = vpack.c.b16 %v2966, %v2965
        %v2986 = vpack.c.b16 %v2968, %v2967
        %v2987 = vpack.c.b16 %v2970, %v2969
        %v2988 = vpack.c.b16 %v2972, %v2971
        %v3021 = vunpack.c.l.b16 %v2863
        %v3022 = vunpack.c.l.b16 %v2866
        %v3023 = vunpack.c.l.b16 %v2869
        %v3024 = vunpack.c.l.b16 %v2872
        %v3025 = vunpack.c.l.b16 %v2875
        %v3026 = vunpack.c.l.b16 %v2878
        %v3027 = vunpack.c.l.b16 %v2881
        %v3028 = vunpack.c.l.b16 %v2884
        %v3029 = vunpack.c.l.b16 %v2887
        %v3030 = vunpack.c.l.b16 %v2890
        %v3031 = vunpack.c.l.b16 %v2893
        %v3032 = vunpack.c.l.b16 %v2896
        %v3033 = vunpack.c.l.b16 %v2899
        %v3034 = vunpack.c.l.b16 %v2902
        %v3035 = vunpack.c.l.b16 %v2905
        %v3036 = vunpack.c.l.b16 %v2908
        %v3037 = vpack.c.b16 %v3021, %v3021
        %v3038 = vpack.c.b16 %v3022, %v3022
        %v3039 = vpack.c.b16 %v3023, %v3023
        %v3040 = vpack.c.b16 %v3024, %v3024
        %v3041 = vpack.c.b16 %v3025, %v3025
        %v3042 = vpack.c.b16 %v3026, %v3026
        %v3043 = vpack.c.b16 %v3027, %v3027
        %v3044 = vpack.c.b16 %v3028, %v3028
        %v3045 = vpack.c.b16 %v3029, %v3029
        %v3046 = vpack.c.b16 %v3030, %v3030
        %v3047 = vpack.c.b16 %v3031, %v3031
        %v3048 = vpack.c.b16 %v3032, %v3032
        %v3049 = vpack.c.b16 %v3033, %v3033
        %v3050 = vpack.c.b16 %v3034, %v3034
        %v3051 = vpack.c.b16 %v3035, %v3035
        %v3052 = vpack.c.b16 %v3036, %v3036
        %v3054 = vshrl.u32 %v2973, 16
        %v3056 = vshll.u32 %v2973, 16
        %v3058 = vrot.slane %v3056, 1
        %v3059 = vor.u32 %v3054, %v3058
        %v3061 = vshll.u32 %v3037, 16
        %v3063 = vrot.slane %v3061, 1
        %v3064 = vsel %vm2538, %v3059, %v3063
        %v3066 = vshrl.u32 %v2974, 16
        %v3068 = vshll.u32 %v2974, 16
        %v3070 = vrot.slane %v3068, 1
        %v3071 = vor.u32 %v3066, %v3070
        %v3073 = vshll.u32 %v3038, 16
        %v3075 = vrot.slane %v3073, 1
        %v3076 = vsel %vm2538, %v3071, %v3075
        %v3078 = vshrl.u32 %v2975, 16
        %v3080 = vshll.u32 %v2975, 16
        %v3082 = vrot.slane %v3080, 1
        %v3083 = vor.u32 %v3078, %v3082
        %v3085 = vshll.u32 %v3039, 16
        %v3087 = vrot.slane %v3085, 1
        %v3088 = vsel %vm2538, %v3083, %v3087
        %v3090 = vshrl.u32 %v2976, 16
        %v3092 = vshll.u32 %v2976, 16
        %v3094 = vrot.slane %v3092, 1
        %v3095 = vor.u32 %v3090, %v3094
        %v3097 = vshll.u32 %v3040, 16
        %v3099 = vrot.slane %v3097, 1
        %v3100 = vsel %vm2538, %v3095, %v3099
        %v3102 = vshrl.u32 %v2977, 16
        %v3104 = vshll.u32 %v2977, 16
        %v3106 = vrot.slane %v3104, 1
        %v3107 = vor.u32 %v3102, %v3106
        %v3109 = vshll.u32 %v3041, 16
        %v3111 = vrot.slane %v3109, 1
        %v3112 = vsel %vm2538, %v3107, %v3111
        %v3114 = vshrl.u32 %v2978, 16
        %v3116 = vshll.u32 %v2978, 16
        %v3118 = vrot.slane %v3116, 1
        %v3119 = vor.u32 %v3114, %v3118
        %v3121 = vshll.u32 %v3042, 16
        %v3123 = vrot.slane %v3121, 1
        %v3124 = vsel %vm2538, %v3119, %v3123
        %v3126 = vshrl.u32 %v2979, 16
        %v3128 = vshll.u32 %v2979, 16
        %v3130 = vrot.slane %v3128, 1
        %v3131 = vor.u32 %v3126, %v3130
        %v3133 = vshll.u32 %v3043, 16
        %v3135 = vrot.slane %v3133, 1
        %v3136 = vsel %vm2538, %v3131, %v3135
        %v3138 = vshrl.u32 %v2980, 16
        %v3140 = vshll.u32 %v2980, 16
        %v3142 = vrot.slane %v3140, 1
        %v3143 = vor.u32 %v3138, %v3142
        %v3145 = vshll.u32 %v3044, 16
        %v3147 = vrot.slane %v3145, 1
        %v3148 = vsel %vm2538, %v3143, %v3147
        %v3150 = vshrl.u32 %v2981, 16
        %v3152 = vshll.u32 %v2981, 16
        %v3154 = vrot.slane %v3152, 1
        %v3155 = vor.u32 %v3150, %v3154
        %v3157 = vshll.u32 %v3045, 16
        %v3159 = vrot.slane %v3157, 1
        %v3160 = vsel %vm2538, %v3155, %v3159
        %v3162 = vshrl.u32 %v2982, 16
        %v3164 = vshll.u32 %v2982, 16
        %v3166 = vrot.slane %v3164, 1
        %v3167 = vor.u32 %v3162, %v3166
        %v3169 = vshll.u32 %v3046, 16
        %v3171 = vrot.slane %v3169, 1
        %v3172 = vsel %vm2538, %v3167, %v3171
        %v3174 = vshrl.u32 %v2983, 16
        %v3176 = vshll.u32 %v2983, 16
        %v3178 = vrot.slane %v3176, 1
        %v3179 = vor.u32 %v3174, %v3178
        %v3181 = vshll.u32 %v3047, 16
        %v3183 = vrot.slane %v3181, 1
        %v3184 = vsel %vm2538, %v3179, %v3183
        %v3186 = vshrl.u32 %v2984, 16
        %v3188 = vshll.u32 %v2984, 16
        %v3190 = vrot.slane %v3188, 1
        %v3191 = vor.u32 %v3186, %v3190
        %v3193 = vshll.u32 %v3048, 16
        %v3195 = vrot.slane %v3193, 1
        %v3196 = vsel %vm2538, %v3191, %v3195
        %v3198 = vshrl.u32 %v2985, 16
        %v3200 = vshll.u32 %v2985, 16
        %v3202 = vrot.slane %v3200, 1
        %v3203 = vor.u32 %v3198, %v3202
        %v3205 = vshll.u32 %v3049, 16
        %v3207 = vrot.slane %v3205, 1
        %v3208 = vsel %vm2538, %v3203, %v3207
        %v3210 = vshrl.u32 %v2986, 16
        %v3212 = vshll.u32 %v2986, 16
        %v3214 = vrot.slane %v3212, 1
        %v3215 = vor.u32 %v3210, %v3214
        %v3217 = vshll.u32 %v3050, 16
        %v3219 = vrot.slane %v3217, 1
        %v3220 = vsel %vm2538, %v3215, %v3219
        %v3222 = vshrl.u32 %v2987, 16
        %v3224 = vshll.u32 %v2987, 16
        %v3226 = vrot.slane %v3224, 1
        %v3227 = vor.u32 %v3222, %v3226
        %v3229 = vshll.u32 %v3051, 16
        %v3231 = vrot.slane %v3229, 1
        %v3232 = vsel %vm2538, %v3227, %v3231
        %v3234 = vshrl.u32 %v2988, 16
        %v3236 = vshll.u32 %v2988, 16
        %v3238 = vrot.slane %v3236, 1
        %v3239 = vor.u32 %v3234, %v3238
        %v3241 = vshll.u32 %v3052, 16
        %v3243 = vrot.slane %v3241, 1
        %v3244 = vsel %vm2538, %v3239, %v3243
        %v3261 = vrot.slane %v2973, 1
        %v3262 = vrot.slane %v3037, 1
        %v3263 = vsel %vm2747, %v3261, %v3262
        %v3264 = vrot.slane %v2974, 1
        %v3265 = vrot.slane %v3038, 1
        %v3266 = vsel %vm2747, %v3264, %v3265
        %v3267 = vrot.slane %v2975, 1
        %v3268 = vrot.slane %v3039, 1
        %v3269 = vsel %vm2747, %v3267, %v3268
        %v3270 = vrot.slane %v2976, 1
        %v3271 = vrot.slane %v3040, 1
        %v3272 = vsel %vm2747, %v3270, %v3271
        %v3273 = vrot.slane %v2977, 1
        %v3274 = vrot.slane %v3041, 1
        %v3275 = vsel %vm2747, %v3273, %v3274
        %v3276 = vrot.slane %v2978, 1
        %v3277 = vrot.slane %v3042, 1
        %v3278 = vsel %vm2747, %v3276, %v3277
        %v3279 = vrot.slane %v2979, 1
        %v3280 = vrot.slane %v3043, 1
        %v3281 = vsel %vm2747, %v3279, %v3280
        %v3282 = vrot.slane %v2980, 1
        %v3283 = vrot.slane %v3044, 1
        %v3284 = vsel %vm2747, %v3282, %v3283
        %v3285 = vrot.slane %v2981, 1
        %v3286 = vrot.slane %v3045, 1
        %v3287 = vsel %vm2747, %v3285, %v3286
        %v3288 = vrot.slane %v2982, 1
        %v3289 = vrot.slane %v3046, 1
        %v3290 = vsel %vm2747, %v3288, %v3289
        %v3291 = vrot.slane %v2983, 1
        %v3292 = vrot.slane %v3047, 1
        %v3293 = vsel %vm2747, %v3291, %v3292
        %v3294 = vrot.slane %v2984, 1
        %v3295 = vrot.slane %v3048, 1
        %v3296 = vsel %vm2747, %v3294, %v3295
        %v3297 = vrot.slane %v2985, 1
        %v3298 = vrot.slane %v3049, 1
        %v3299 = vsel %vm2747, %v3297, %v3298
        %v3300 = vrot.slane %v2986, 1
        %v3301 = vrot.slane %v3050, 1
        %v3302 = vsel %vm2747, %v3300, %v3301
        %v3303 = vrot.slane %v2987, 1
        %v3304 = vrot.slane %v3051, 1
        %v3305 = vsel %vm2747, %v3303, %v3304
        %v3306 = vrot.slane %v2988, 1
        %v3307 = vrot.slane %v3052, 1
        %v3308 = vsel %vm2747, %v3306, %v3307
        %s3325 = scalar_lea.vmem [#allocation11], 192
        %v3326 = vld [vmem:[%s3325] sm:$0xf]
        %v3327 = vld [vmem:[%s3325 + $0x4] sm:$0xf]
        %v3328 = vld [vmem:[%s3325 + $0x8] sm:$0xf]
        %v3329 = vld [vmem:[%s3325 + $0xc] sm:$0xf]
        %v3330 = vld [vmem:[%s3325 + $0x10] sm:$0xf]
        %v3331 = vld [vmem:[%s3325 + $0x14] sm:$0xf]
        %v3332 = vld [vmem:[%s3325 + $0x18] sm:$0xf]
        %v3333 = vld [vmem:[%s3325 + $0x1c] sm:$0xf]
        %v3334 = vld [vmem:[%s3325 + $0x20] sm:$0xf]
        %v3335 = vld [vmem:[%s3325 + $0x24] sm:$0xf]
        %v3336 = vld [vmem:[%s3325 + $0x28] sm:$0xf]
        %v3337 = vld [vmem:[%s3325 + $0x2c] sm:$0xf]
        %v3338 = vld [vmem:[%s3325 + $0x30] sm:$0xf]
        %v3339 = vld [vmem:[%s3325 + $0x34] sm:$0xf]
        %v3340 = vld [vmem:[%s3325 + $0x38] sm:$0xf]
        %v3341 = vld [vmem:[%s3325 + $0x3c] sm:$0xf]
        %v3342 = vld [vmem:[%s3325 + $0x40] sm:$0xf]
        %v3343 = vld [vmem:[%s3325 + $0x44] sm:$0xf]
        %v3344 = vld [vmem:[%s3325 + $0x48] sm:$0xf]
        %v3345 = vld [vmem:[%s3325 + $0x4c] sm:$0xf]
        %v3346 = vld [vmem:[%s3325 + $0x50] sm:$0xf]
        %v3347 = vld [vmem:[%s3325 + $0x54] sm:$0xf]
        %v3348 = vld [vmem:[%s3325 + $0x58] sm:$0xf]
        %v3349 = vld [vmem:[%s3325 + $0x5c] sm:$0xf]
        %v3350 = vld [vmem:[%s3325 + $0x60] sm:$0xf]
        %v3351 = vld [vmem:[%s3325 + $0x64] sm:$0xf]
        %v3352 = vld [vmem:[%s3325 + $0x68] sm:$0xf]
        %v3353 = vld [vmem:[%s3325 + $0x6c] sm:$0xf]
        %v3354 = vld [vmem:[%s3325 + $0x70] sm:$0xf]
        %v3355 = vld [vmem:[%s3325 + $0x74] sm:$0xf]
        %v3356 = vld [vmem:[%s3325 + $0x78] sm:$0xf]
        %v3357 = vld [vmem:[%s3325 + $0x7c] sm:$0xf]
        %v3358 = vld [vmem:[%s3325 + $0x80] sm:$0xf]
        %v3359 = vld [vmem:[%s3325 + $0x84] sm:$0xf]
        %v3360 = vld [vmem:[%s3325 + $0x88] sm:$0xf]
        %v3361 = vld [vmem:[%s3325 + $0x8c] sm:$0xf]
        %v3362 = vld [vmem:[%s3325 + $0x90] sm:$0xf]
        %v3363 = vld [vmem:[%s3325 + $0x94] sm:$0xf]
        %v3364 = vld [vmem:[%s3325 + $0x98] sm:$0xf]
        %v3365 = vld [vmem:[%s3325 + $0x9c] sm:$0xf]
        %v3366 = vld [vmem:[%s3325 + $0xa0] sm:$0xf]
        %v3367 = vld [vmem:[%s3325 + $0xa4] sm:$0xf]
        %v3368 = vld [vmem:[%s3325 + $0xa8] sm:$0xf]
        %v3369 = vld [vmem:[%s3325 + $0xac] sm:$0xf]
        %v3370 = vld [vmem:[%s3325 + $0xb0] sm:$0xf]
        %v3371 = vld [vmem:[%s3325 + $0xb4] sm:$0xf]
        %v3372 = vld [vmem:[%s3325 + $0xb8] sm:$0xf]
        %v3373 = vld [vmem:[%s3325 + $0xbc] sm:$0xf]
        %v3422 = vunpack.c.l.b16 %v3326
        %v3423 = vunpack.c.l.b16 %v3327
        %v3424 = vunpack.c.l.b16 %v3328
        %v3425 = vunpack.c.l.b16 %v3329
        %v3426 = vunpack.c.l.b16 %v3330
        %v3427 = vunpack.c.l.b16 %v3331
        %v3428 = vunpack.c.l.b16 %v3332
        %v3429 = vunpack.c.l.b16 %v3333
        %v3430 = vunpack.c.l.b16 %v3334
        %v3431 = vunpack.c.l.b16 %v3335
        %v3432 = vunpack.c.l.b16 %v3336
        %v3433 = vunpack.c.l.b16 %v3337
        %v3434 = vunpack.c.l.b16 %v3338
        %v3435 = vunpack.c.l.b16 %v3339
        %v3436 = vunpack.c.l.b16 %v3340
        %v3437 = vunpack.c.l.b16 %v3341
        %v3438 = vunpack.c.l.b16 %v3342
        %v3439 = vunpack.c.l.b16 %v3343
        %v3440 = vunpack.c.l.b16 %v3344
        %v3441 = vunpack.c.l.b16 %v3345
        %v3442 = vunpack.c.l.b16 %v3346
        %v3443 = vunpack.c.l.b16 %v3347
        %v3444 = vunpack.c.l.b16 %v3348
        %v3445 = vunpack.c.l.b16 %v3349
        %v3446 = vunpack.c.l.b16 %v3350
        %v3447 = vunpack.c.l.b16 %v3351
        %v3448 = vunpack.c.l.b16 %v3352
        %v3449 = vunpack.c.l.b16 %v3353
        %v3450 = vunpack.c.l.b16 %v3354
        %v3451 = vunpack.c.l.b16 %v3355
        %v3452 = vunpack.c.l.b16 %v3356
        %v3453 = vunpack.c.l.b16 %v3357
        %v3454 = vunpack.c.l.b16 %v3358
        %v3455 = vunpack.c.l.b16 %v3359
        %v3456 = vunpack.c.l.b16 %v3360
        %v3457 = vunpack.c.l.b16 %v3361
        %v3458 = vunpack.c.l.b16 %v3362
        %v3459 = vunpack.c.l.b16 %v3363
        %v3460 = vunpack.c.l.b16 %v3364
        %v3461 = vunpack.c.l.b16 %v3365
        %v3462 = vunpack.c.l.b16 %v3366
        %v3463 = vunpack.c.l.b16 %v3367
        %v3464 = vunpack.c.l.b16 %v3368
        %v3465 = vunpack.c.l.b16 %v3369
        %v3466 = vunpack.c.l.b16 %v3370
        %v3467 = vunpack.c.l.b16 %v3371
        %v3468 = vunpack.c.l.b16 %v3372
        %v3469 = vunpack.c.l.b16 %v3373
        %v3470 = vpack.c.b16 %v3423, %v3422
        %v3471 = vpack.c.b16 %v3425, %v3424
        %v3472 = vpack.c.b16 %v3427, %v3426
        %v3473 = vpack.c.b16 %v3429, %v3428
        %v3474 = vpack.c.b16 %v3431, %v3430
        %v3475 = vpack.c.b16 %v3433, %v3432
        %v3476 = vpack.c.b16 %v3435, %v3434
        %v3477 = vpack.c.b16 %v3437, %v3436
        %v3478 = vpack.c.b16 %v3439, %v3438
        %v3479 = vpack.c.b16 %v3441, %v3440
        %v3480 = vpack.c.b16 %v3443, %v3442
        %v3481 = vpack.c.b16 %v3445, %v3444
        %v3482 = vpack.c.b16 %v3447, %v3446
        %v3483 = vpack.c.b16 %v3449, %v3448
        %v3484 = vpack.c.b16 %v3451, %v3450
        %v3485 = vpack.c.b16 %v3453, %v3452
        %v3486 = vpack.c.b16 %v3455, %v3454
        %v3487 = vpack.c.b16 %v3457, %v3456
        %v3488 = vpack.c.b16 %v3459, %v3458
        %v3489 = vpack.c.b16 %v3461, %v3460
        %v3490 = vpack.c.b16 %v3463, %v3462
        %v3491 = vpack.c.b16 %v3465, %v3464
        %v3492 = vpack.c.b16 %v3467, %v3466
        %v3493 = vpack.c.b16 %v3469, %v3468
        %3518 = vmatprep.subr.bf16.mxu0 0
        %3519 = vmatpush1.bf16.msra.mxu0 %v3470
        %3520 = vmatprep.subr.bf16.mxu0 0
        %3521 = vmatpush1.bf16.msra.mxu0 %v3471
        %3522 = vmatprep.subr.bf16.mxu0 0
        %3523 = vmatpush1.bf16.msra.mxu0 %v3472
        %3524 = vmatprep.subr.bf16.mxu0 0
        %3525 = vmatpush1.bf16.msra.mxu0 %v3473
        %3526 = vmatprep.subr.bf16.mxu0 0
        %3527 = vmatpush1.bf16.msra.mxu0 %v3474
        %3528 = vmatprep.subr.bf16.mxu0 0
        %3529 = vmatpush1.bf16.msra.mxu0 %v3475
        %3530 = vmatprep.subr.bf16.mxu0 0
        %3531 = vmatpush1.bf16.msra.mxu0 %v3476
        %3532 = vmatprep.subr.bf16.mxu0 0
        %3533 = vmatpush1.bf16.msra.mxu0 %v3477
        %3534 = vmatprep.subr.bf16.mxu0 0
        %3535 = vmatpush1.bf16.msra.mxu0 %v3478
        %3536 = vmatprep.subr.bf16.mxu0 0
        %3537 = vmatpush1.bf16.msra.mxu0 %v3479
        %3538 = vmatprep.subr.bf16.mxu0 0
        %3539 = vmatpush1.bf16.msra.mxu0 %v3480
        %3540 = vmatprep.subr.bf16.mxu0 0
        %3541 = vmatpush1.bf16.msra.mxu0 %v3481
        %3542 = vmatprep.subr.bf16.mxu0 0
        %3543 = vmatpush1.bf16.msra.mxu0 %v3482
        %3544 = vmatprep.subr.bf16.mxu0 0
        %3545 = vmatpush1.bf16.msra.mxu0 %v3483
        %3546 = vmatprep.subr.bf16.mxu0 0
        %3547 = vmatpush1.bf16.msra.mxu0 %v3484
        %3548 = vmatprep.subr.bf16.mxu0 0
        %3549 = vmatpush1.bf16.msra.mxu0 %v3485
        %3550 = vmatprep.mubr.bf16.mxu0 %v3064
        %3551 = vmatmul.mubr.bf16.gmra.mrb[0].mxu0 %v2973
        %v3552 = vpop.f32.mrb[0].mxu0
        %v3553 = vadd.f32 0.0, %v3552
        %v3554 = vpop.f32.mrb[0].mxu0
        %v3555 = vpop.f32.mrb[0].mxu0
        %v3556 = vadd.f32 0.0, %v3555
        %v3557 = vpop.f32.mrb[0].mxu0
        %3558 = vmatprep.mubr.bf16.mxu0 %v3076
        %3559 = vmatmul.mubr.bf16.gmra.mrb[0].mxu0 %v2974
        %v3560 = vpop.f32.mrb[0].mxu0
        %v3561 = vadd.f32 0.0, %v3560
        %v3562 = vpop.f32.mrb[0].mxu0
        %v3563 = vpop.f32.mrb[0].mxu0
        %v3564 = vadd.f32 0.0, %v3563
        %v3565 = vpop.f32.mrb[0].mxu0
        %3566 = vmatprep.mubr.bf16.mxu0 %v3088
        %3567 = vmatmul.mubr.bf16.gmra.mrb[0].mxu0 %v2975
        %v3568 = vpop.f32.mrb[0].mxu0
        %v3569 = vadd.f32 0.0, %v3568
        %v3570 = vpop.f32.mrb[0].mxu0
        %v3571 = vpop.f32.mrb[0].mxu0
        %v3572 = vadd.f32 0.0, %v3571
        %v3573 = vpop.f32.mrb[0].mxu0
        %3574 = vmatprep.mubr.bf16.mxu0 %v3100
        %3575 = vmatmul.mubr.bf16.gmra.mrb[0].mxu0 %v2976
        %v3576 = vpop.f32.mrb[0].mxu0
        %v3577 = vadd.f32 0.0, %v3576
        %v3578 = vpop.f32.mrb[0].mxu0
        %v3579 = vpop.f32.mrb[0].mxu0
        %v3580 = vadd.f32 0.0, %v3579
        %v3581 = vpop.f32.mrb[0].mxu0
        %3582 = vmatprep.mubr.bf16.mxu0 %v3112
        %3583 = vmatmul.mubr.bf16.gmra.mrb[0].mxu0 %v2977
        %v3584 = vpop.f32.mrb[0].mxu0
        %v3585 = vadd.f32 0.0, %v3584
        %v3586 = vpop.f32.mrb[0].mxu0
        %v3587 = vpop.f32.mrb[0].mxu0
        %v3588 = vadd.f32 0.0, %v3587
        %v3589 = vpop.f32.mrb[0].mxu0
        %3590 = vmatprep.mubr.bf16.mxu0 %v3124
        %3591 = vmatmul.mubr.bf16.gmra.mrb[0].mxu0 %v2978
        %v3592 = vpop.f32.mrb[0].mxu0
        %v3593 = vadd.f32 0.0, %v3592
        %v3594 = vpop.f32.mrb[0].mxu0
        %v3595 = vpop.f32.mrb[0].mxu0
        %v3596 = vadd.f32 0.0, %v3595
        %v3597 = vpop.f32.mrb[0].mxu0
        %3598 = vmatprep.mubr.bf16.mxu0 %v3136
        %3599 = vmatmul.mubr.bf16.gmra.mrb[0].mxu0 %v2979
        %v3600 = vpop.f32.mrb[0].mxu0
        %v3601 = vadd.f32 0.0, %v3600
        %v3602 = vpop.f32.mrb[0].mxu0
        %v3603 = vpop.f32.mrb[0].mxu0
        %v3604 = vadd.f32 0.0, %v3603
        %v3605 = vpop.f32.mrb[0].mxu0
        %3606 = vmatprep.mubr.bf16.mxu0 %v3148
        %3607 = vmatmul.mubr.bf16.gmra.mrb[0].mxu0 %v2980
        %v3608 = vpop.f32.mrb[0].mxu0
        %v3609 = vadd.f32 0.0, %v3608
        %v3610 = vpop.f32.mrb[0].mxu0
        %v3611 = vpop.f32.mrb[0].mxu0
        %v3612 = vadd.f32 0.0, %v3611
        %v3613 = vpop.f32.mrb[0].mxu0
        %3614 = vmatprep.mubr.bf16.mxu0 %v3160
        %3615 = vmatmul.mubr.bf16.gmra.mrb[0].mxu0 %v2981
        %v3616 = vpop.f32.mrb[0].mxu0
        %v3617 = vadd.f32 0.0, %v3616
        %v3618 = vpop.f32.mrb[0].mxu0
        %v3619 = vpop.f32.mrb[0].mxu0
        %v3620 = vadd.f32 0.0, %v3619
        %v3621 = vpop.f32.mrb[0].mxu0
        %3622 = vmatprep.mubr.bf16.mxu0 %v3172
        %3623 = vmatmul.mubr.bf16.gmra.mrb[0].mxu0 %v2982
        %v3624 = vpop.f32.mrb[0].mxu0
        %v3625 = vadd.f32 0.0, %v3624
        %v3626 = vpop.f32.mrb[0].mxu0
        %v3627 = vpop.f32.mrb[0].mxu0
        %v3628 = vadd.f32 0.0, %v3627
        %v3629 = vpop.f32.mrb[0].mxu0
        %3630 = vmatprep.mubr.bf16.mxu0 %v3184
        %3631 = vmatmul.mubr.bf16.gmra.mrb[0].mxu0 %v2983
        %v3632 = vpop.f32.mrb[0].mxu0
        %v3633 = vadd.f32 0.0, %v3632
        %v3634 = vpop.f32.mrb[0].mxu0
        %v3635 = vpop.f32.mrb[0].mxu0
        %v3636 = vadd.f32 0.0, %v3635
        %v3637 = vpop.f32.mrb[0].mxu0
        %3638 = vmatprep.mubr.bf16.mxu0 %v3196
        %3639 = vmatmul.mubr.bf16.gmra.mrb[0].mxu0 %v2984
        %v3640 = vpop.f32.mrb[0].mxu0
        %v3641 = vadd.f32 0.0, %v3640
        %v3642 = vpop.f32.mrb[0].mxu0
        %v3643 = vpop.f32.mrb[0].mxu0
        %v3644 = vadd.f32 0.0, %v3643
        %v3645 = vpop.f32.mrb[0].mxu0
        %3646 = vmatprep.mubr.bf16.mxu0 %v3208
        %3647 = vmatmul.mubr.bf16.gmra.mrb[0].mxu0 %v2985
        %v3648 = vpop.f32.mrb[0].mxu0
        %v3649 = vadd.f32 0.0, %v3648
        %v3650 = vpop.f32.mrb[0].mxu0
        %v3651 = vpop.f32.mrb[0].mxu0
        %v3652 = vadd.f32 0.0, %v3651
        %v3653 = vpop.f32.mrb[0].mxu0
        %3654 = vmatprep.mubr.bf16.mxu0 %v3220
        %3655 = vmatmul.mubr.bf16.gmra.mrb[0].mxu0 %v2986
        %v3656 = vpop.f32.mrb[0].mxu0
        %v3657 = vadd.f32 0.0, %v3656
        %v3658 = vpop.f32.mrb[0].mxu0
        %v3659 = vpop.f32.mrb[0].mxu0
        %v3660 = vadd.f32 0.0, %v3659
        %v3661 = vpop.f32.mrb[0].mxu0
        %3662 = vmatprep.mubr.bf16.mxu0 %v3232
        %3663 = vmatmul.mubr.bf16.gmra.mrb[0].mxu0 %v2987
        %v3664 = vpop.f32.mrb[0].mxu0
        %v3665 = vadd.f32 0.0, %v3664
        %v3666 = vpop.f32.mrb[0].mxu0
        %v3667 = vpop.f32.mrb[0].mxu0
        %v3668 = vadd.f32 0.0, %v3667
        %v3669 = vpop.f32.mrb[0].mxu0
        %3670 = vmatprep.mubr.bf16.mxu0 %v3244
        %3671 = vmatmul.mubr.bf16.gmra.mrb[0].mxu0 %v2988
        %v3672 = vpop.f32.mrb[0].mxu0
        %v3673 = vadd.f32 0.0, %v3672
        %v3674 = vpop.f32.mrb[0].mxu0
        %v3675 = vpop.f32.mrb[0].mxu0
        %v3676 = vadd.f32 0.0, %v3675
        %v3677 = vpop.f32.mrb[0].mxu0
        %3678 = vdwg.mxu0
        %3679 = vmatprep.subr.bf16.mxu0 0
        %3680 = vmatpush1.bf16.msra.mxu0 %v3486
        %3681 = vmatprep.subr.bf16.mxu0 0
        %3682 = vmatpush1.bf16.msra.mxu0 %v3487
        %3683 = vmatprep.subr.bf16.mxu0 0
        %3684 = vmatpush1.bf16.msra.mxu0 %v3488
        %3685 = vmatprep.subr.bf16.mxu0 0
        %3686 = vmatpush1.bf16.msra.mxu0 %v3489
        %3687 = vmatprep.subr.bf16.mxu0 0
        %3688 = vmatpush1.bf16.msra.mxu0 %v3490
        %3689 = vmatprep.subr.bf16.mxu0 0
        %3690 = vmatpush1.bf16.msra.mxu0 %v3491
        %3691 = vmatprep.subr.bf16.mxu0 0
        %3692 = vmatpush1.bf16.msra.mxu0 %v3492
        %3693 = vmatprep.subr.bf16.mxu0 0
        %3694 = vmatpush1.bf16.msra.mxu0 %v3493
        %3695 = vmatprep.subr.bf16.mxu0 0
        %3696 = vmatpush1.bf16.msra.mxu0 0
        %3697 = vmatprep.subr.bf16.mxu0 0
        %3698 = vmatpush1.bf16.msra.mxu0 0
        %3699 = vmatprep.subr.bf16.mxu0 0
        %3700 = vmatpush1.bf16.msra.mxu0 0
        %3701 = vmatprep.subr.bf16.mxu0 0
        %3702 = vmatpush1.bf16.msra.mxu0 0
        %3703 = vmatprep.subr.bf16.mxu0 0
        %3704 = vmatpush1.bf16.msra.mxu0 0
        %3705 = vmatprep.subr.bf16.mxu0 0
        %3706 = vmatpush1.bf16.msra.mxu0 0
        %3707 = vmatprep.subr.bf16.mxu0 0
        %3708 = vmatpush1.bf16.msra.mxu0 0
        %3709 = vmatprep.subr.bf16.mxu0 0
        %3710 = vmatpush1.bf16.msra.mxu0 0
        %3711 = vmatprep.mubr.bf16.mxu0 0
        %3712 = vmatmul.mubr.bf16.gmra.mrb[0].mxu0 %v3263
        %v3713 = vpop.f32.mrb[0].mxu0
        %v3714 = vadd.f32 %v3553, %v3713
        %v3715 = vpop.f32.mrb[0].mxu0
        %v3716 = vpop.f32.mrb[0].mxu0
        %v3717 = vadd.f32 %v3556, %v3716
        %v3718 = vpop.f32.mrb[0].mxu0
        %3719 = vmatprep.mubr.bf16.mxu0 0
        %3720 = vmatmul.mubr.bf16.gmra.mrb[0].mxu0 %v3266
        %v3721 = vpop.f32.mrb[0].mxu0
        %v3722 = vadd.f32 %v3561, %v3721
        %v3723 = vpop.f32.mrb[0].mxu0
        %v3724 = vpop.f32.mrb[0].mxu0
        %v3725 = vadd.f32 %v3564, %v3724
        %v3726 = vpop.f32.mrb[0].mxu0
        %3727 = vmatprep.mubr.bf16.mxu0 0
        %3728 = vmatmul.mubr.bf16.gmra.mrb[0].mxu0 %v3269
        %v3729 = vpop.f32.mrb[0].mxu0
        %v3730 = vadd.f32 %v3569, %v3729
        %v3731 = vpop.f32.mrb[0].mxu0
        %v3732 = vpop.f32.mrb[0].mxu0
        %v3733 = vadd.f32 %v3572, %v3732
        %v3734 = vpop.f32.mrb[0].mxu0
        %3735 = vmatprep.mubr.bf16.mxu0 0
        %3736 = vmatmul.mubr.bf16.gmra.mrb[0].mxu0 %v3272
        %v3737 = vpop.f32.mrb[0].mxu0
        %v3738 = vadd.f32 %v3577, %v3737
        %v3739 = vpop.f32.mrb[0].mxu0
        %v3740 = vpop.f32.mrb[0].mxu0
        %v3741 = vadd.f32 %v3580, %v3740
        %v3742 = vpop.f32.mrb[0].mxu0
        %3743 = vmatprep.mubr.bf16.mxu0 0
        %3744 = vmatmul.mubr.bf16.gmra.mrb[0].mxu0 %v3275
        %v3745 = vpop.f32.mrb[0].mxu0
        %v3746 = vadd.f32 %v3585, %v3745
        %v3747 = vpop.f32.mrb[0].mxu0
        %v3748 = vpop.f32.mrb[0].mxu0
        %v3749 = vadd.f32 %v3588, %v3748
        %v3750 = vpop.f32.mrb[0].mxu0
        %3751 = vmatprep.mubr.bf16.mxu0 0
        %3752 = vmatmul.mubr.bf16.gmra.mrb[0].mxu0 %v3278
        %v3753 = vpop.f32.mrb[0].mxu0
        %v3754 = vadd.f32 %v3593, %v3753
        %v3755 = vpop.f32.mrb[0].mxu0
        %v3756 = vpop.f32.mrb[0].mxu0
        %v3757 = vadd.f32 %v3596, %v3756
        %v3758 = vpop.f32.mrb[0].mxu0
        %3759 = vmatprep.mubr.bf16.mxu0 0
        %3760 = vmatmul.mubr.bf16.gmra.mrb[0].mxu0 %v3281
        %v3761 = vpop.f32.mrb[0].mxu0
        %v3762 = vadd.f32 %v3601, %v3761
        %v3763 = vpop.f32.mrb[0].mxu0
        %v3764 = vpop.f32.mrb[0].mxu0
        %v3765 = vadd.f32 %v3604, %v3764
        %v3766 = vpop.f32.mrb[0].mxu0
        %3767 = vmatprep.mubr.bf16.mxu0 0
        %3768 = vmatmul.mubr.bf16.gmra.mrb[0].mxu0 %v3284
        %v3769 = vpop.f32.mrb[0].mxu0
        %v3770 = vadd.f32 %v3609, %v3769
        %v3771 = vpop.f32.mrb[0].mxu0
        %v3772 = vpop.f32.mrb[0].mxu0
        %v3773 = vadd.f32 %v3612, %v3772
        %v3774 = vpop.f32.mrb[0].mxu0
        %3775 = vmatprep.mubr.bf16.mxu0 0
        %3776 = vmatmul.mubr.bf16.gmra.mrb[0].mxu0 %v3287
        %v3777 = vpop.f32.mrb[0].mxu0
        %v3778 = vadd.f32 %v3617, %v3777
        %v3779 = vpop.f32.mrb[0].mxu0
        %v3780 = vpop.f32.mrb[0].mxu0
        %v3781 = vadd.f32 %v3620, %v3780
        %v3782 = vpop.f32.mrb[0].mxu0
        %3783 = vmatprep.mubr.bf16.mxu0 0
        %3784 = vmatmul.mubr.bf16.gmra.mrb[0].mxu0 %v3290
        %v3785 = vpop.f32.mrb[0].mxu0
        %v3786 = vadd.f32 %v3625, %v3785
        %v3787 = vpop.f32.mrb[0].mxu0
        %v3788 = vpop.f32.mrb[0].mxu0
        %v3789 = vadd.f32 %v3628, %v3788
        %v3790 = vpop.f32.mrb[0].mxu0
        %3791 = vmatprep.mubr.bf16.mxu0 0
        %3792 = vmatmul.mubr.bf16.gmra.mrb[0].mxu0 %v3293
        %v3793 = vpop.f32.mrb[0].mxu0
        %v3794 = vadd.f32 %v3633, %v3793
        %v3795 = vpop.f32.mrb[0].mxu0
        %v3796 = vpop.f32.mrb[0].mxu0
        %v3797 = vadd.f32 %v3636, %v3796
        %v3798 = vpop.f32.mrb[0].mxu0
        %3799 = vmatprep.mubr.bf16.mxu0 0
        %3800 = vmatmul.mubr.bf16.gmra.mrb[0].mxu0 %v3296
        %v3801 = vpop.f32.mrb[0].mxu0
        %v3802 = vadd.f32 %v3641, %v3801
        %v3803 = vpop.f32.mrb[0].mxu0
        %v3804 = vpop.f32.mrb[0].mxu0
        %v3805 = vadd.f32 %v3644, %v3804
        %v3806 = vpop.f32.mrb[0].mxu0
        %3807 = vmatprep.mubr.bf16.mxu0 0
        %3808 = vmatmul.mubr.bf16.gmra.mrb[0].mxu0 %v3299
        %v3809 = vpop.f32.mrb[0].mxu0
        %v3810 = vadd.f32 %v3649, %v3809
        %v3811 = vpop.f32.mrb[0].mxu0
        %v3812 = vpop.f32.mrb[0].mxu0
        %v3813 = vadd.f32 %v3652, %v3812
        %v3814 = vpop.f32.mrb[0].mxu0
        %3815 = vmatprep.mubr.bf16.mxu0 0
        %3816 = vmatmul.mubr.bf16.gmra.mrb[0].mxu0 %v3302
        %v3817 = vpop.f32.mrb[0].mxu0
        %v3818 = vadd.f32 %v3657, %v3817
        %v3819 = vpop.f32.mrb[0].mxu0
        %v3820 = vpop.f32.mrb[0].mxu0
        %v3821 = vadd.f32 %v3660, %v3820
        %v3822 = vpop.f32.mrb[0].mxu0
        %3823 = vmatprep.mubr.bf16.mxu0 0
        %3824 = vmatmul.mubr.bf16.gmra.mrb[0].mxu0 %v3305
        %v3825 = vpop.f32.mrb[0].mxu0
        %v3826 = vadd.f32 %v3665, %v3825
        %v3827 = vpop.f32.mrb[0].mxu0
        %v3828 = vpop.f32.mrb[0].mxu0
        %v3829 = vadd.f32 %v3668, %v3828
        %v3830 = vpop.f32.mrb[0].mxu0
        %3831 = vmatprep.mubr.bf16.mxu0 0
        %3832 = vmatmul.mubr.bf16.gmra.mrb[0].mxu0 %v3308
        %v3833 = vpop.f32.mrb[0].mxu0
        %v3834 = vadd.f32 %v3673, %v3833
        %v3835 = vpop.f32.mrb[0].mxu0
        %v3836 = vpop.f32.mrb[0].mxu0
        %v3837 = vadd.f32 %v3676, %v3836
        %v3838 = vpop.f32.mrb[0].mxu0
        %3839 = vdwg.mxu0
        %v3888 = vunpack.c.l.b16 %v2812
        %v3889 = vunpack.c.l.b16 %v2813
        %v3890 = vunpack.c.l.b16 %v2814
        %v3891 = vunpack.c.l.b16 %v2815
        %v3892 = vunpack.c.l.b16 %v2816
        %v3893 = vunpack.c.l.b16 %v2817
        %v3894 = vunpack.c.l.b16 %v2818
        %v3895 = vunpack.c.l.b16 %v2819
        %v3896 = vunpack.c.l.b16 %v2820
        %v3897 = vunpack.c.l.b16 %v2821
        %v3898 = vunpack.c.l.b16 %v2822
        %v3899 = vunpack.c.l.b16 %v2823
        %v3900 = vunpack.c.l.b16 %v2824
        %v3901 = vunpack.c.l.b16 %v2825
        %v3902 = vunpack.c.l.b16 %v2826
        %v3903 = vunpack.c.l.b16 %v2827
        %v3904 = vunpack.c.l.b16 %v2828
        %v3905 = vunpack.c.l.b16 %v2829
        %v3906 = vunpack.c.l.b16 %v2830
        %v3907 = vunpack.c.l.b16 %v2831
        %v3908 = vunpack.c.l.b16 %v2832
        %v3909 = vunpack.c.l.b16 %v2833
        %v3910 = vunpack.c.l.b16 %v2834
        %v3911 = vunpack.c.l.b16 %v2835
        %v3912 = vunpack.c.l.b16 %v2836
        %v3913 = vunpack.c.l.b16 %v2837
        %v3914 = vunpack.c.l.b16 %v2838
        %v3915 = vunpack.c.l.b16 %v2839
        %v3916 = vunpack.c.l.b16 %v2840
        %v3917 = vunpack.c.l.b16 %v2841
        %v3918 = vunpack.c.l.b16 %v2842
        %v3919 = vunpack.c.l.b16 %v2843
        %v3920 = vunpack.c.l.b16 %v2844
        %v3921 = vunpack.c.l.b16 %v2845
        %v3922 = vunpack.c.l.b16 %v2846
        %v3923 = vunpack.c.l.b16 %v2847
        %v3924 = vunpack.c.l.b16 %v2848
        %v3925 = vunpack.c.l.b16 %v2849
        %v3926 = vunpack.c.l.b16 %v2850
        %v3927 = vunpack.c.l.b16 %v2851
        %v3928 = vunpack.c.l.b16 %v2852
        %v3929 = vunpack.c.l.b16 %v2853
        %v3930 = vunpack.c.l.b16 %v2854
        %v3931 = vunpack.c.l.b16 %v2855
        %v3932 = vunpack.c.l.b16 %v2856
        %v3933 = vunpack.c.l.b16 %v2857
        %v3934 = vunpack.c.l.b16 %v2858
        %v3935 = vunpack.c.l.b16 %v2859
        %v3936 = vpack.c.b16 %v3889, %v3888
        %v3937 = vpack.c.b16 %v3891, %v3890
        %v3938 = vpack.c.b16 %v3893, %v3892
        %v3939 = vpack.c.b16 %v3895, %v3894
        %v3940 = vpack.c.b16 %v3897, %v3896
        %v3941 = vpack.c.b16 %v3899, %v3898
        %v3942 = vpack.c.b16 %v3901, %v3900
        %v3943 = vpack.c.b16 %v3903, %v3902
        %v3944 = vpack.c.b16 %v3905, %v3904
        %v3945 = vpack.c.b16 %v3907, %v3906
        %v3946 = vpack.c.b16 %v3909, %v3908
        %v3947 = vpack.c.b16 %v3911, %v3910
        %v3948 = vpack.c.b16 %v3913, %v3912
        %v3949 = vpack.c.b16 %v3915, %v3914
        %v3950 = vpack.c.b16 %v3917, %v3916
        %v3951 = vpack.c.b16 %v3919, %v3918
        %v3952 = vpack.c.b16 %v3921, %v3920
        %v3953 = vpack.c.b16 %v3923, %v3922
        %v3954 = vpack.c.b16 %v3925, %v3924
        %v3955 = vpack.c.b16 %v3927, %v3926
        %v3956 = vpack.c.b16 %v3929, %v3928
        %v3957 = vpack.c.b16 %v3931, %v3930
        %v3958 = vpack.c.b16 %v3933, %v3932
        %v3959 = vpack.c.b16 %v3935, %v3934
        %3984 = vmatprep.subr.bf16.mxu0 0
        %3985 = vmatpush1.bf16.msra.mxu0 %v3936
        %3986 = vmatprep.subr.bf16.mxu0 0
        %3987 = vmatpush1.bf16.msra.mxu0 %v3937
        %3988 = vmatprep.subr.bf16.mxu0 0
        %3989 = vmatpush1.bf16.msra.mxu0 %v3938
        %3990 = vmatprep.subr.bf16.mxu0 0
        %3991 = vmatpush1.bf16.msra.mxu0 %v3939
        %3992 = vmatprep.subr.bf16.mxu0 0
        %3993 = vmatpush1.bf16.msra.mxu0 %v3940
        %3994 = vmatprep.subr.bf16.mxu0 0
        %3995 = vmatpush1.bf16.msra.mxu0 %v3941
        %3996 = vmatprep.subr.bf16.mxu0 0
        %3997 = vmatpush1.bf16.msra.mxu0 %v3942
        %3998 = vmatprep.subr.bf16.mxu0 0
        %3999 = vmatpush1.bf16.msra.mxu0 %v3943
        %4000 = vmatprep.subr.bf16.mxu0 0
        %4001 = vmatpush1.bf16.msra.mxu0 %v3944
        %4002 = vmatprep.subr.bf16.mxu0 0
        %4003 = vmatpush1.bf16.msra.mxu0 %v3945
        %4004 = vmatprep.subr.bf16.mxu0 0
        %4005 = vmatpush1.bf16.msra.mxu0 %v3946
        %4006 = vmatprep.subr.bf16.mxu0 0
        %4007 = vmatpush1.bf16.msra.mxu0 %v3947
        %4008 = vmatprep.subr.bf16.mxu0 0
        %4009 = vmatpush1.bf16.msra.mxu0 %v3948
        %4010 = vmatprep.subr.bf16.mxu0 0
        %4011 = vmatpush1.bf16.msra.mxu0 %v3949
        %4012 = vmatprep.subr.bf16.mxu0 0
        %4013 = vmatpush1.bf16.msra.mxu0 %v3950
        %4014 = vmatprep.subr.bf16.mxu0 0
        %4015 = vmatpush1.bf16.msra.mxu0 %v3951
        %4016 = vmatprep.mubr.bf16.mxu0 %v2550
        %4017 = vmatmul.mubr.bf16.gmra.mrb[0].mxu0 %v2458
        %v4018 = vpop.f32.mrb[0].mxu0
        %v4019 = vadd.f32 %v3714, %v4018
        %v4020 = vpop.f32.mrb[0].mxu0
        %v4021 = vpop.f32.mrb[0].mxu0
        %v4022 = vadd.f32 %v3717, %v4021
        %v4023 = vpop.f32.mrb[0].mxu0
        %4024 = vmatprep.mubr.bf16.mxu0 %v2562
        %4025 = vmatmul.mubr.bf16.gmra.mrb[0].mxu0 %v2459
        %v4026 = vpop.f32.mrb[0].mxu0
        %v4027 = vadd.f32 %v3722, %v4026
        %v4028 = vpop.f32.mrb[0].mxu0
        %v4029 = vpop.f32.mrb[0].mxu0
        %v4030 = vadd.f32 %v3725, %v4029
        %v4031 = vpop.f32.mrb[0].mxu0
        %4032 = vmatprep.mubr.bf16.mxu0 %v2574
        %4033 = vmatmul.mubr.bf16.gmra.mrb[0].mxu0 %v2460
        %v4034 = vpop.f32.mrb[0].mxu0
        %v4035 = vadd.f32 %v3730, %v4034
        %v4036 = vpop.f32.mrb[0].mxu0
        %v4037 = vpop.f32.mrb[0].mxu0
        %v4038 = vadd.f32 %v3733, %v4037
        %v4039 = vpop.f32.mrb[0].mxu0
        %4040 = vmatprep.mubr.bf16.mxu0 %v2586
        %4041 = vmatmul.mubr.bf16.gmra.mrb[0].mxu0 %v2461
        %v4042 = vpop.f32.mrb[0].mxu0
        %v4043 = vadd.f32 %v3738, %v4042
        %v4044 = vpop.f32.mrb[0].mxu0
        %v4045 = vpop.f32.mrb[0].mxu0
        %v4046 = vadd.f32 %v3741, %v4045
        %v4047 = vpop.f32.mrb[0].mxu0
        %4048 = vmatprep.mubr.bf16.mxu0 %v2598
        %4049 = vmatmul.mubr.bf16.gmra.mrb[0].mxu0 %v2462
        %v4050 = vpop.f32.mrb[0].mxu0
        %v4051 = vadd.f32 %v3746, %v4050
        %v4052 = vpop.f32.mrb[0].mxu0
        %v4053 = vpop.f32.mrb[0].mxu0
        %v4054 = vadd.f32 %v3749, %v4053
        %v4055 = vpop.f32.mrb[0].mxu0
        %4056 = vmatprep.mubr.bf16.mxu0 %v2610
        %4057 = vmatmul.mubr.bf16.gmra.mrb[0].mxu0 %v2463
        %v4058 = vpop.f32.mrb[0].mxu0
        %v4059 = vadd.f32 %v3754, %v4058
        %v4060 = vpop.f32.mrb[0].mxu0
        %v4061 = vpop.f32.mrb[0].mxu0
        %v4062 = vadd.f32 %v3757, %v4061
        %v4063 = vpop.f32.mrb[0].mxu0
        %4064 = vmatprep.mubr.bf16.mxu0 %v2622
        %4065 = vmatmul.mubr.bf16.gmra.mrb[0].mxu0 %v2464
        %v4066 = vpop.f32.mrb[0].mxu0
        %v4067 = vadd.f32 %v3762, %v4066
        %v4068 = vpop.f32.mrb[0].mxu0
        %v4069 = vpop.f32.mrb[0].mxu0
        %v4070 = vadd.f32 %v3765, %v4069
        %v4071 = vpop.f32.mrb[0].mxu0
        %4072 = vmatprep.mubr.bf16.mxu0 %v2634
        %4073 = vmatmul.mubr.bf16.gmra.mrb[0].mxu0 %v2465
        %v4074 = vpop.f32.mrb[0].mxu0
        %v4075 = vadd.f32 %v3770, %v4074
        %v4076 = vpop.f32.mrb[0].mxu0
        %v4077 = vpop.f32.mrb[0].mxu0
        %v4078 = vadd.f32 %v3773, %v4077
        %v4079 = vpop.f32.mrb[0].mxu0
        %4080 = vmatprep.mubr.bf16.mxu0 %v2646
        %4081 = vmatmul.mubr.bf16.gmra.mrb[0].mxu0 %v2466
        %v4082 = vpop.f32.mrb[0].mxu0
        %v4083 = vadd.f32 %v3778, %v4082
        %v4084 = vpop.f32.mrb[0].mxu0
        %v4085 = vpop.f32.mrb[0].mxu0
        %v4086 = vadd.f32 %v3781, %v4085
        %v4087 = vpop.f32.mrb[0].mxu0
        %4088 = vmatprep.mubr.bf16.mxu0 %v2658
        %4089 = vmatmul.mubr.bf16.gmra.mrb[0].mxu0 %v2467
        %v4090 = vpop.f32.mrb[0].mxu0
        %v4091 = vadd.f32 %v3786, %v4090
        %v4092 = vpop.f32.mrb[0].mxu0
        %v4093 = vpop.f32.mrb[0].mxu0
        %v4094 = vadd.f32 %v3789, %v4093
        %v4095 = vpop.f32.mrb[0].mxu0
        %4096 = vmatprep.mubr.bf16.mxu0 %v2670
        %4097 = vmatmul.mubr.bf16.gmra.mrb[0].mxu0 %v2468
        %v4098 = vpop.f32.mrb[0].mxu0
        %v4099 = vadd.f32 %v3794, %v4098
        %v4100 = vpop.f32.mrb[0].mxu0
        %v4101 = vpop.f32.mrb[0].mxu0
        %v4102 = vadd.f32 %v3797, %v4101
        %v4103 = vpop.f32.mrb[0].mxu0
        %4104 = vmatprep.mubr.bf16.mxu0 %v2682
        %4105 = vmatmul.mubr.bf16.gmra.mrb[0].mxu0 %v2469
        %v4106 = vpop.f32.mrb[0].mxu0
        %v4107 = vadd.f32 %v3802, %v4106
        %v4108 = vpop.f32.mrb[0].mxu0
        %v4109 = vpop.f32.mrb[0].mxu0
        %v4110 = vadd.f32 %v3805, %v4109
        %v4111 = vpop.f32.mrb[0].mxu0
        %4112 = vmatprep.mubr.bf16.mxu0 %v2694
        %4113 = vmatmul.mubr.bf16.gmra.mrb[0].mxu0 %v2470
        %v4114 = vpop.f32.mrb[0].mxu0
        %v4115 = vadd.f32 %v3810, %v4114
        %v4116 = vpop.f32.mrb[0].mxu0
        %v4117 = vpop.f32.mrb[0].mxu0
        %v4118 = vadd.f32 %v3813, %v4117
        %v4119 = vpop.f32.mrb[0].mxu0
        %4120 = vmatprep.mubr.bf16.mxu0 %v2706
        %4121 = vmatmul.mubr.bf16.gmra.mrb[0].mxu0 %v2471
        %v4122 = vpop.f32.mrb[0].mxu0
        %v4123 = vadd.f32 %v3818, %v4122
        %v4124 = vpop.f32.mrb[0].mxu0
        %v4125 = vpop.f32.mrb[0].mxu0
        %v4126 = vadd.f32 %v3821, %v4125
        %v4127 = vpop.f32.mrb[0].mxu0
        %4128 = vmatprep.mubr.bf16.mxu0 %v2718
        %4129 = vmatmul.mubr.bf16.gmra.mrb[0].mxu0 %v2472
        %v4130 = vpop.f32.mrb[0].mxu0
        %v4131 = vadd.f32 %v3826, %v4130
        %v4132 = vpop.f32.mrb[0].mxu0
        %v4133 = vpop.f32.mrb[0].mxu0
        %v4134 = vadd.f32 %v3829, %v4133
        %v4135 = vpop.f32.mrb[0].mxu0
        %4136 = vmatprep.mubr.bf16.mxu0 %v2730
        %4137 = vmatmul.mubr.bf16.gmra.mrb[0].mxu0 %v2473
        %v4138 = vpop.f32.mrb[0].mxu0
        %v4139 = vadd.f32 %v3834, %v4138
        %v4140 = vpop.f32.mrb[0].mxu0
        %v4141 = vpop.f32.mrb[0].mxu0
        %v4142 = vadd.f32 %v3837, %v4141
        %v4143 = vpop.f32.mrb[0].mxu0
        %4144 = vdwg.mxu0
        %4145 = vmatprep.subr.bf16.mxu0 0
        %4146 = vmatpush1.bf16.msra.mxu0 %v3952
        %4147 = vmatprep.subr.bf16.mxu0 0
        %4148 = vmatpush1.bf16.msra.mxu0 %v3953
        %4149 = vmatprep.subr.bf16.mxu0 0
        %4150 = vmatpush1.bf16.msra.mxu0 %v3954
        %4151 = vmatprep.subr.bf16.mxu0 0
        %4152 = vmatpush1.bf16.msra.mxu0 %v3955
        %4153 = vmatprep.subr.bf16.mxu0 0
        %4154 = vmatpush1.bf16.msra.mxu0 %v3956
        %4155 = vmatprep.subr.bf16.mxu0 0
        %4156 = vmatpush1.bf16.msra.mxu0 %v3957
        %4157 = vmatprep.subr.bf16.mxu0 0
        %4158 = vmatpush1.bf16.msra.mxu0 %v3958
        %4159 = vmatprep.subr.bf16.mxu0 0
        %4160 = vmatpush1.bf16.msra.mxu0 %v3959
        %4161 = vmatprep.subr.bf16.mxu0 0
        %4162 = vmatpush1.bf16.msra.mxu0 0
        %4163 = vmatprep.subr.bf16.mxu0 0
        %4164 = vmatpush1.bf16.msra.mxu0 0
        %4165 = vmatprep.subr.bf16.mxu0 0
        %4166 = vmatpush1.bf16.msra.mxu0 0
        %4167 = vmatprep.subr.bf16.mxu0 0
        %4168 = vmatpush1.bf16.msra.mxu0 0
        %4169 = vmatprep.subr.bf16.mxu0 0
        %4170 = vmatpush1.bf16.msra.mxu0 0
        %4171 = vmatprep.subr.bf16.mxu0 0
        %4172 = vmatpush1.bf16.msra.mxu0 0
        %4173 = vmatprep.subr.bf16.mxu0 0
        %4174 = vmatpush1.bf16.msra.mxu0 0
        %4175 = vmatprep.subr.bf16.mxu0 0
        %4176 = vmatpush1.bf16.msra.mxu0 0
        %4177 = vmatprep.mubr.bf16.mxu0 0
        %4178 = vmatmul.mubr.bf16.gmra.mrb[0].mxu0 %v2750
        %v4179 = vpop.f32.mrb[0].mxu0
        %v4180 = vadd.f32 %v4019, %v4179
        %v4181 = vpop.f32.mrb[0].mxu0
        %v4182 = vpop.f32.mrb[0].mxu0
        %v4183 = vadd.f32 %v4022, %v4182
        %v4184 = vpop.f32.mrb[0].mxu0
        %4185 = vmatprep.mubr.bf16.mxu0 0
        %4186 = vmatmul.mubr.bf16.gmra.mrb[0].mxu0 %v2753
        %v4187 = vpop.f32.mrb[0].mxu0
        %v4188 = vadd.f32 %v4027, %v4187
        %v4189 = vpop.f32.mrb[0].mxu0
        %v4190 = vpop.f32.mrb[0].mxu0
        %v4191 = vadd.f32 %v4030, %v4190
        %v4192 = vpop.f32.mrb[0].mxu0
        %4193 = vmatprep.mubr.bf16.mxu0 0
        %4194 = vmatmul.mubr.bf16.gmra.mrb[0].mxu0 %v2756
        %v4195 = vpop.f32.mrb[0].mxu0
        %v4196 = vadd.f32 %v4035, %v4195
        %v4197 = vpop.f32.mrb[0].mxu0
        %v4198 = vpop.f32.mrb[0].mxu0
        %v4199 = vadd.f32 %v4038, %v4198
        %v4200 = vpop.f32.mrb[0].mxu0
        %4201 = vmatprep.mubr.bf16.mxu0 0
        %4202 = vmatmul.mubr.bf16.gmra.mrb[0].mxu0 %v2759
        %v4203 = vpop.f32.mrb[0].mxu0
        %v4204 = vadd.f32 %v4043, %v4203
        %v4205 = vpop.f32.mrb[0].mxu0
        %v4206 = vpop.f32.mrb[0].mxu0
        %v4207 = vadd.f32 %v4046, %v4206
        %v4208 = vpop.f32.mrb[0].mxu0
        %4209 = vmatprep.mubr.bf16.mxu0 0
        %4210 = vmatmul.mubr.bf16.gmra.mrb[0].mxu0 %v2762
        %v4211 = vpop.f32.mrb[0].mxu0
        %v4212 = vadd.f32 %v4051, %v4211
        %v4213 = vpop.f32.mrb[0].mxu0
        %v4214 = vpop.f32.mrb[0].mxu0
        %v4215 = vadd.f32 %v4054, %v4214
        %v4216 = vpop.f32.mrb[0].mxu0
        %4217 = vmatprep.mubr.bf16.mxu0 0
        %4218 = vmatmul.mubr.bf16.gmra.mrb[0].mxu0 %v2765
        %v4219 = vpop.f32.mrb[0].mxu0
        %v4220 = vadd.f32 %v4059, %v4219
        %v4221 = vpop.f32.mrb[0].mxu0
        %v4222 = vpop.f32.mrb[0].mxu0
        %v4223 = vadd.f32 %v4062, %v4222
        %v4224 = vpop.f32.mrb[0].mxu0
        %4225 = vmatprep.mubr.bf16.mxu0 0
        %4226 = vmatmul.mubr.bf16.gmra.mrb[0].mxu0 %v2768
        %v4227 = vpop.f32.mrb[0].mxu0
        %v4228 = vadd.f32 %v4067, %v4227
        %v4229 = vpop.f32.mrb[0].mxu0
        %v4230 = vpop.f32.mrb[0].mxu0
        %v4231 = vadd.f32 %v4070, %v4230
        %v4232 = vpop.f32.mrb[0].mxu0
        %4233 = vmatprep.mubr.bf16.mxu0 0
        %4234 = vmatmul.mubr.bf16.gmra.mrb[0].mxu0 %v2771
        %v4235 = vpop.f32.mrb[0].mxu0
        %v4236 = vadd.f32 %v4075, %v4235
        %v4237 = vpop.f32.mrb[0].mxu0
        %v4238 = vpop.f32.mrb[0].mxu0
        %v4239 = vadd.f32 %v4078, %v4238
        %v4240 = vpop.f32.mrb[0].mxu0
        %4241 = vmatprep.mubr.bf16.mxu0 0
        %4242 = vmatmul.mubr.bf16.gmra.mrb[0].mxu0 %v2774
        %v4243 = vpop.f32.mrb[0].mxu0
        %v4244 = vadd.f32 %v4083, %v4243
        %v4245 = vpop.f32.mrb[0].mxu0
        %v4246 = vpop.f32.mrb[0].mxu0
        %v4247 = vadd.f32 %v4086, %v4246
        %v4248 = vpop.f32.mrb[0].mxu0
        %4249 = vmatprep.mubr.bf16.mxu0 0
        %4250 = vmatmul.mubr.bf16.gmra.mrb[0].mxu0 %v2777
        %v4251 = vpop.f32.mrb[0].mxu0
        %v4252 = vadd.f32 %v4091, %v4251
        %v4253 = vpop.f32.mrb[0].mxu0
        %v4254 = vpop.f32.mrb[0].mxu0
        %v4255 = vadd.f32 %v4094, %v4254
        %v4256 = vpop.f32.mrb[0].mxu0
        %4257 = vmatprep.mubr.bf16.mxu0 0
        %4258 = vmatmul.mubr.bf16.gmra.mrb[0].mxu0 %v2780
        %v4259 = vpop.f32.mrb[0].mxu0
        %v4260 = vadd.f32 %v4099, %v4259
        %v4261 = vpop.f32.mrb[0].mxu0
        %v4262 = vpop.f32.mrb[0].mxu0
        %v4263 = vadd.f32 %v4102, %v4262
        %v4264 = vpop.f32.mrb[0].mxu0
        %4265 = vmatprep.mubr.bf16.mxu0 0
        %4266 = vmatmul.mubr.bf16.gmra.mrb[0].mxu0 %v2783
        %v4267 = vpop.f32.mrb[0].mxu0
        %v4268 = vadd.f32 %v4107, %v4267
        %v4269 = vpop.f32.mrb[0].mxu0
        %v4270 = vpop.f32.mrb[0].mxu0
        %v4271 = vadd.f32 %v4110, %v4270
        %v4272 = vpop.f32.mrb[0].mxu0
        %4273 = vmatprep.mubr.bf16.mxu0 0
        %4274 = vmatmul.mubr.bf16.gmra.mrb[0].mxu0 %v2786
        %v4275 = vpop.f32.mrb[0].mxu0
        %v4276 = vadd.f32 %v4115, %v4275
        %v4277 = vpop.f32.mrb[0].mxu0
        %v4278 = vpop.f32.mrb[0].mxu0
        %v4279 = vadd.f32 %v4118, %v4278
        %v4280 = vpop.f32.mrb[0].mxu0
        %4281 = vmatprep.mubr.bf16.mxu0 0
        %4282 = vmatmul.mubr.bf16.gmra.mrb[0].mxu0 %v2789
        %v4283 = vpop.f32.mrb[0].mxu0
        %v4284 = vadd.f32 %v4123, %v4283
        %v4285 = vpop.f32.mrb[0].mxu0
        %v4286 = vpop.f32.mrb[0].mxu0
        %v4287 = vadd.f32 %v4126, %v4286
        %v4288 = vpop.f32.mrb[0].mxu0
        %4289 = vmatprep.mubr.bf16.mxu0 0
        %4290 = vmatmul.mubr.bf16.gmra.mrb[0].mxu0 %v2792
        %v4291 = vpop.f32.mrb[0].mxu0
        %v4292 = vadd.f32 %v4131, %v4291
        %v4293 = vpop.f32.mrb[0].mxu0
        %v4294 = vpop.f32.mrb[0].mxu0
        %v4295 = vadd.f32 %v4134, %v4294
        %v4296 = vpop.f32.mrb[0].mxu0
        %4297 = vmatprep.mubr.bf16.mxu0 0
        %4298 = vmatmul.mubr.bf16.gmra.mrb[0].mxu0 %v2795
        %v4299 = vpop.f32.mrb[0].mxu0
        %v4300 = vadd.f32 %v4139, %v4299
        %v4301 = vpop.f32.mrb[0].mxu0
        %v4302 = vpop.f32.mrb[0].mxu0
        %v4303 = vadd.f32 %v4142, %v4302
        %v4304 = vpop.f32.mrb[0].mxu0
        %4305 = vdwg.mxu0
        %s4306 = scalar_lea.vmem [#allocation2], 24
        %v4307 = vld [vmem:[%s4306] sm:$0xf]
        %v4308 = vld [vmem:[%s4306 + $0x4] sm:$0xf]
        %v4309 = vld [vmem:[%s4306 + $0x8] sm:$0xf]
        %v4310 = vld [vmem:[%s4306 + $0xc] sm:$0xf]
        %v4311 = vld [vmem:[%s4306 + $0x10] sm:$0xf]
        %v4312 = vld [vmem:[%s4306 + $0x14] sm:$0xf]
        %v4313 = vld [vmem:[%s4306 + $0x18] sm:$0xf]
        %v4314 = vld [vmem:[%s4306 + $0x1c] sm:$0xf]
        %v4315 = vld [vmem:[%s4306 + $0x20] sm:$0xf]
        %v4316 = vld [vmem:[%s4306 + $0x24] sm:$0xf]
        %v4317 = vld [vmem:[%s4306 + $0x28] sm:$0xf]
        %v4318 = vld [vmem:[%s4306 + $0x2c] sm:$0xf]
        %v4319 = vld [vmem:[%s4306 + $0x30] sm:$0xf]
        %v4320 = vld [vmem:[%s4306 + $0x34] sm:$0xf]
        %v4321 = vld [vmem:[%s4306 + $0x38] sm:$0xf]
        %v4322 = vld [vmem:[%s4306 + $0x3c] sm:$0xf]
        %v4323 = vld [vmem:[%s4306 + $0x40] sm:$0xf]
        %v4324 = vld [vmem:[%s4306 + $0x44] sm:$0xf]
        %v4325 = vld [vmem:[%s4306 + $0x48] sm:$0xf]
        %v4326 = vld [vmem:[%s4306 + $0x4c] sm:$0xf]
        %v4327 = vld [vmem:[%s4306 + $0x50] sm:$0xf]
        %v4328 = vld [vmem:[%s4306 + $0x54] sm:$0xf]
        %v4329 = vld [vmem:[%s4306 + $0x58] sm:$0xf]
        %v4330 = vld [vmem:[%s4306 + $0x5c] sm:$0xf]
        %v4331 = vld [vmem:[%s4306 + $0x60] sm:$0xf]
        %v4332 = vld [vmem:[%s4306 + $0x64] sm:$0xf]
        %v4333 = vld [vmem:[%s4306 + $0x68] sm:$0xf]
        %v4334 = vld [vmem:[%s4306 + $0x6c] sm:$0xf]
        %v4335 = vld [vmem:[%s4306 + $0x70] sm:$0xf]
        %v4336 = vld [vmem:[%s4306 + $0x74] sm:$0xf]
        %v4337 = vld [vmem:[%s4306 + $0x78] sm:$0xf]
        %v4338 = vld [vmem:[%s4306 + $0x7c] sm:$0xf]
        %v4339 = vld [vmem:[%s4306 + $0x80] sm:$0xf]
        %v4340 = vld [vmem:[%s4306 + $0x84] sm:$0xf]
        %v4341 = vld [vmem:[%s4306 + $0x88] sm:$0xf]
        %v4342 = vld [vmem:[%s4306 + $0x8c] sm:$0xf]
        %v4343 = vld [vmem:[%s4306 + $0x90] sm:$0xf]
        %v4344 = vld [vmem:[%s4306 + $0x94] sm:$0xf]
        %v4345 = vld [vmem:[%s4306 + $0x98] sm:$0xf]
        %v4346 = vld [vmem:[%s4306 + $0x9c] sm:$0xf]
        %v4347 = vld [vmem:[%s4306 + $0xa0] sm:$0xf]
        %v4348 = vld [vmem:[%s4306 + $0xa4] sm:$0xf]
        %v4349 = vld [vmem:[%s4306 + $0xa8] sm:$0xf]
        %v4350 = vld [vmem:[%s4306 + $0xac] sm:$0xf]
        %v4351 = vld [vmem:[%s4306 + $0xb0] sm:$0xf]
        %v4352 = vld [vmem:[%s4306 + $0xb4] sm:$0xf]
        %v4353 = vld [vmem:[%s4306 + $0xb8] sm:$0xf]
        %v4354 = vld [vmem:[%s4306 + $0xbc] sm:$0xf]
        %v4387 = vunpack.c.l.b16 %v4307
        %v4388 = vunpack.c.l.b16 %v4308
        %v4389 = vunpack.c.l.b16 %v4310
        %v4390 = vunpack.c.l.b16 %v4311
        %v4391 = vunpack.c.l.b16 %v4313
        %v4392 = vunpack.c.l.b16 %v4314
        %v4393 = vunpack.c.l.b16 %v4316
        %v4394 = vunpack.c.l.b16 %v4317
        %v4395 = vunpack.c.l.b16 %v4319
        %v4396 = vunpack.c.l.b16 %v4320
        %v4397 = vunpack.c.l.b16 %v4322
        %v4398 = vunpack.c.l.b16 %v4323
        %v4399 = vunpack.c.l.b16 %v4325
        %v4400 = vunpack.c.l.b16 %v4326
        %v4401 = vunpack.c.l.b16 %v4328
        %v4402 = vunpack.c.l.b16 %v4329
        %v4403 = vunpack.c.l.b16 %v4331
        %v4404 = vunpack.c.l.b16 %v4332
        %v4405 = vunpack.c.l.b16 %v4334
        %v4406 = vunpack.c.l.b16 %v4335
        %v4407 = vunpack.c.l.b16 %v4337
        %v4408 = vunpack.c.l.b16 %v4338
        %v4409 = vunpack.c.l.b16 %v4340
        %v4410 = vunpack.c.l.b16 %v4341
        %v4411 = vunpack.c.l.b16 %v4343
        %v4412 = vunpack.c.l.b16 %v4344
        %v4413 = vunpack.c.l.b16 %v4346
        %v4414 = vunpack.c.l.b16 %v4347
        %v4415 = vunpack.c.l.b16 %v4349
        %v4416 = vunpack.c.l.b16 %v4350
        %v4417 = vunpack.c.l.b16 %v4352
        %v4418 = vunpack.c.l.b16 %v4353
        %v4419 = vpack.c.b16 %v4388, %v4387
        %v4420 = vpack.c.b16 %v4390, %v4389
        %v4421 = vpack.c.b16 %v4392, %v4391
        %v4422 = vpack.c.b16 %v4394, %v4393
        %v4423 = vpack.c.b16 %v4396, %v4395
        %v4424 = vpack.c.b16 %v4398, %v4397
        %v4425 = vpack.c.b16 %v4400, %v4399
        %v4426 = vpack.c.b16 %v4402, %v4401
        %v4427 = vpack.c.b16 %v4404, %v4403
        %v4428 = vpack.c.b16 %v4406, %v4405
        %v4429 = vpack.c.b16 %v4408, %v4407
        %v4430 = vpack.c.b16 %v4410, %v4409
        %v4431 = vpack.c.b16 %v4412, %v4411
        %v4432 = vpack.c.b16 %v4414, %v4413
        %v4433 = vpack.c.b16 %v4416, %v4415
        %v4434 = vpack.c.b16 %v4418, %v4417
        %v4467 = vunpack.c.l.b16 %v4309
        %v4468 = vunpack.c.l.b16 %v4312
        %v4469 = vunpack.c.l.b16 %v4315
        %v4470 = vunpack.c.l.b16 %v4318
        %v4471 = vunpack.c.l.b16 %v4321
        %v4472 = vunpack.c.l.b16 %v4324
        %v4473 = vunpack.c.l.b16 %v4327
        %v4474 = vunpack.c.l.b16 %v4330
        %v4475 = vunpack.c.l.b16 %v4333
        %v4476 = vunpack.c.l.b16 %v4336
        %v4477 = vunpack.c.l.b16 %v4339
        %v4478 = vunpack.c.l.b16 %v4342
        %v4479 = vunpack.c.l.b16 %v4345
        %v4480 = vunpack.c.l.b16 %v4348
        %v4481 = vunpack.c.l.b16 %v4351
        %v4482 = vunpack.c.l.b16 %v4354
        %v4483 = vpack.c.b16 %v4467, %v4467
        %v4484 = vpack.c.b16 %v4468, %v4468
        %v4485 = vpack.c.b16 %v4469, %v4469
        %v4486 = vpack.c.b16 %v4470, %v4470
        %v4487 = vpack.c.b16 %v4471, %v4471
        %v4488 = vpack.c.b16 %v4472, %v4472
        %v4489 = vpack.c.b16 %v4473, %v4473
        %v4490 = vpack.c.b16 %v4474, %v4474
        %v4491 = vpack.c.b16 %v4475, %v4475
        %v4492 = vpack.c.b16 %v4476, %v4476
        %v4493 = vpack.c.b16 %v4477, %v4477
        %v4494 = vpack.c.b16 %v4478, %v4478
        %v4495 = vpack.c.b16 %v4479, %v4479
        %v4496 = vpack.c.b16 %v4480, %v4480
        %v4497 = vpack.c.b16 %v4481, %v4481
        %v4498 = vpack.c.b16 %v4482, %v4482
        %v4500 = vshrl.u32 %v4419, 16
        %v4502 = vshll.u32 %v4419, 16
        %v4504 = vrot.slane %v4502, 1
        %v4505 = vor.u32 %v4500, %v4504
        %v4507 = vshll.u32 %v4483, 16
        %v4509 = vrot.slane %v4507, 1
        %v4510 = vsel %vm2538, %v4505, %v4509
        %v4512 = vshrl.u32 %v4420, 16
        %v4514 = vshll.u32 %v4420, 16
        %v4516 = vrot.slane %v4514, 1
        %v4517 = vor.u32 %v4512, %v4516
        %v4519 = vshll.u32 %v4484, 16
        %v4521 = vrot.slane %v4519, 1
        %v4522 = vsel %vm2538, %v4517, %v4521
        %v4524 = vshrl.u32 %v4421, 16
        %v4526 = vshll.u32 %v4421, 16
        %v4528 = vrot.slane %v4526, 1
        %v4529 = vor.u32 %v4524, %v4528
        %v4531 = vshll.u32 %v4485, 16
        %v4533 = vrot.slane %v4531, 1
        %v4534 = vsel %vm2538, %v4529, %v4533
        %v4536 = vshrl.u32 %v4422, 16
        %v4538 = vshll.u32 %v4422, 16
        %v4540 = vrot.slane %v4538, 1
        %v4541 = vor.u32 %v4536, %v4540
        %v4543 = vshll.u32 %v4486, 16
        %v4545 = vrot.slane %v4543, 1
        %v4546 = vsel %vm2538, %v4541, %v4545
        %v4548 = vshrl.u32 %v4423, 16
        %v4550 = vshll.u32 %v4423, 16
        %v4552 = vrot.slane %v4550, 1
        %v4553 = vor.u32 %v4548, %v4552
        %v4555 = vshll.u32 %v4487, 16
        %v4557 = vrot.slane %v4555, 1
        %v4558 = vsel %vm2538, %v4553, %v4557
        %v4560 = vshrl.u32 %v4424, 16
        %v4562 = vshll.u32 %v4424, 16
        %v4564 = vrot.slane %v4562, 1
        %v4565 = vor.u32 %v4560, %v4564
        %v4567 = vshll.u32 %v4488, 16
        %v4569 = vrot.slane %v4567, 1
        %v4570 = vsel %vm2538, %v4565, %v4569
        %v4572 = vshrl.u32 %v4425, 16
        %v4574 = vshll.u32 %v4425, 16
        %v4576 = vrot.slane %v4574, 1
        %v4577 = vor.u32 %v4572, %v4576
        %v4579 = vshll.u32 %v4489, 16
        %v4581 = vrot.slane %v4579, 1
        %v4582 = vsel %vm2538, %v4577, %v4581
        %v4584 = vshrl.u32 %v4426, 16
        %v4586 = vshll.u32 %v4426, 16
        %v4588 = vrot.slane %v4586, 1
        %v4589 = vor.u32 %v4584, %v4588
        %v4591 = vshll.u32 %v4490, 16
        %v4593 = vrot.slane %v4591, 1
        %v4594 = vsel %vm2538, %v4589, %v4593
        %v4596 = vshrl.u32 %v4427, 16
        %v4598 = vshll.u32 %v4427, 16
        %v4600 = vrot.slane %v4598, 1
        %v4601 = vor.u32 %v4596, %v4600
        %v4603 = vshll.u32 %v4491, 16
        %v4605 = vrot.slane %v4603, 1
        %v4606 = vsel %vm2538, %v4601, %v4605
        %v4608 = vshrl.u32 %v4428, 16
        %v4610 = vshll.u32 %v4428, 16
        %v4612 = vrot.slane %v4610, 1
        %v4613 = vor.u32 %v4608, %v4612
        %v4615 = vshll.u32 %v4492, 16
        %v4617 = vrot.slane %v4615, 1
        %v4618 = vsel %vm2538, %v4613, %v4617
        %v4620 = vshrl.u32 %v4429, 16
        %v4622 = vshll.u32 %v4429, 16
        %v4624 = vrot.slane %v4622, 1
        %v4625 = vor.u32 %v4620, %v4624
        %v4627 = vshll.u32 %v4493, 16
        %v4629 = vrot.slane %v4627, 1
        %v4630 = vsel %vm2538, %v4625, %v4629
        %v4632 = vshrl.u32 %v4430, 16
        %v4634 = vshll.u32 %v4430, 16
        %v4636 = vrot.slane %v4634, 1
        %v4637 = vor.u32 %v4632, %v4636
        %v4639 = vshll.u32 %v4494, 16
        %v4641 = vrot.slane %v4639, 1
        %v4642 = vsel %vm2538, %v4637, %v4641
        %v4644 = vshrl.u32 %v4431, 16
        %v4646 = vshll.u32 %v4431, 16
        %v4648 = vrot.slane %v4646, 1
        %v4649 = vor.u32 %v4644, %v4648
        %v4651 = vshll.u32 %v4495, 16
        %v4653 = vrot.slane %v4651, 1
        %v4654 = vsel %vm2538, %v4649, %v4653
        %v4656 = vshrl.u32 %v4432, 16
        %v4658 = vshll.u32 %v4432, 16
        %v4660 = vrot.slane %v4658, 1
        %v4661 = vor.u32 %v4656, %v4660
        %v4663 = vshll.u32 %v4496, 16
        %v4665 = vrot.slane %v4663, 1
        %v4666 = vsel %vm2538, %v4661, %v4665
        %v4668 = vshrl.u32 %v4433, 16
        %v4670 = vshll.u32 %v4433, 16
        %v4672 = vrot.slane %v4670, 1
        %v4673 = vor.u32 %v4668, %v4672
        %v4675 = vshll.u32 %v4497, 16
        %v4677 = vrot.slane %v4675, 1
        %v4678 = vsel %vm2538, %v4673, %v4677
        %v4680 = vshrl.u32 %v4434, 16
        %v4682 = vshll.u32 %v4434, 16
        %v4684 = vrot.slane %v4682, 1
        %v4685 = vor.u32 %v4680, %v4684
        %v4687 = vshll.u32 %v4498, 16
        %v4689 = vrot.slane %v4687, 1
        %v4690 = vsel %vm2538, %v4685, %v4689
        %v4707 = vrot.slane %v4419, 1
        %v4708 = vrot.slane %v4483, 1
        %v4709 = vsel %vm2747, %v4707, %v4708
        %v4710 = vrot.slane %v4420, 1
        %v4711 = vrot.slane %v4484, 1
        %v4712 = vsel %vm2747, %v4710, %v4711
        %v4713 = vrot.slane %v4421, 1
        %v4714 = vrot.slane %v4485, 1
        %v4715 = vsel %vm2747, %v4713, %v4714
        %v4716 = vrot.slane %v4422, 1
        %v4717 = vrot.slane %v4486, 1
        %v4718 = vsel %vm2747, %v4716, %v4717
        %v4719 = vrot.slane %v4423, 1
        %v4720 = vrot.slane %v4487, 1
        %v4721 = vsel %vm2747, %v4719, %v4720
        %v4722 = vrot.slane %v4424, 1
        %v4723 = vrot.slane %v4488, 1
        %v4724 = vsel %vm2747, %v4722, %v4723
        %v4725 = vrot.slane %v4425, 1
        %v4726 = vrot.slane %v4489, 1
        %v4727 = vsel %vm2747, %v4725, %v4726
        %v4728 = vrot.slane %v4426, 1
        %v4729 = vrot.slane %v4490, 1
        %v4730 = vsel %vm2747, %v4728, %v4729
        %v4731 = vrot.slane %v4427, 1
        %v4732 = vrot.slane %v4491, 1
        %v4733 = vsel %vm2747, %v4731, %v4732
        %v4734 = vrot.slane %v4428, 1
        %v4735 = vrot.slane %v4492, 1
        %v4736 = vsel %vm2747, %v4734, %v4735
        %v4737 = vrot.slane %v4429, 1
        %v4738 = vrot.slane %v4493, 1
        %v4739 = vsel %vm2747, %v4737, %v4738
        %v4740 = vrot.slane %v4430, 1
        %v4741 = vrot.slane %v4494, 1
        %v4742 = vsel %vm2747, %v4740, %v4741
        %v4743 = vrot.slane %v4431, 1
        %v4744 = vrot.slane %v4495, 1
        %v4745 = vsel %vm2747, %v4743, %v4744
        %v4746 = vrot.slane %v4432, 1
        %v4747 = vrot.slane %v4496, 1
        %v4748 = vsel %vm2747, %v4746, %v4747
        %v4749 = vrot.slane %v4433, 1
        %v4750 = vrot.slane %v4497, 1
        %v4751 = vsel %vm2747, %v4749, %v4750
        %v4752 = vrot.slane %v4434, 1
        %v4753 = vrot.slane %v4498, 1
        %v4754 = vsel %vm2747, %v4752, %v4753
        %s4771 = scalar_lea.vmem [#allocation11], 384
        %v4772 = vld [vmem:[%s4771] sm:$0xf]
        %v4773 = vld [vmem:[%s4771 + $0x4] sm:$0xf]
        %v4774 = vld [vmem:[%s4771 + $0x8] sm:$0xf]
        %v4775 = vld [vmem:[%s4771 + $0xc] sm:$0xf]
        %v4776 = vld [vmem:[%s4771 + $0x10] sm:$0xf]
        %v4777 = vld [vmem:[%s4771 + $0x14] sm:$0xf]
        %v4778 = vld [vmem:[%s4771 + $0x18] sm:$0xf]
        %v4779 = vld [vmem:[%s4771 + $0x1c] sm:$0xf]
        %v4780 = vld [vmem:[%s4771 + $0x20] sm:$0xf]
        %v4781 = vld [vmem:[%s4771 + $0x24] sm:$0xf]
        %v4782 = vld [vmem:[%s4771 + $0x28] sm:$0xf]
        %v4783 = vld [vmem:[%s4771 + $0x2c] sm:$0xf]
        %v4784 = vld [vmem:[%s4771 + $0x30] sm:$0xf]
        %v4785 = vld [vmem:[%s4771 + $0x34] sm:$0xf]
        %v4786 = vld [vmem:[%s4771 + $0x38] sm:$0xf]
        %v4787 = vld [vmem:[%s4771 + $0x3c] sm:$0xf]
        %v4788 = vld [vmem:[%s4771 + $0x40] sm:$0xf]
        %v4789 = vld [vmem:[%s4771 + $0x44] sm:$0xf]
        %v4790 = vld [vmem:[%s4771 + $0x48] sm:$0xf]
        %v4791 = vld [vmem:[%s4771 + $0x4c] sm:$0xf]
        %v4792 = vld [vmem:[%s4771 + $0x50] sm:$0xf]
        %v4793 = vld [vmem:[%s4771 + $0x54] sm:$0xf]
        %v4794 = vld [vmem:[%s4771 + $0x58] sm:$0xf]
        %v4795 = vld [vmem:[%s4771 + $0x5c] sm:$0xf]
        %v4796 = vld [vmem:[%s4771 + $0x60] sm:$0xf]
        %v4797 = vld [vmem:[%s4771 + $0x64] sm:$0xf]
        %v4798 = vld [vmem:[%s4771 + $0x68] sm:$0xf]
        %v4799 = vld [vmem:[%s4771 + $0x6c] sm:$0xf]
        %v4800 = vld [vmem:[%s4771 + $0x70] sm:$0xf]
        %v4801 = vld [vmem:[%s4771 + $0x74] sm:$0xf]
        %v4802 = vld [vmem:[%s4771 + $0x78] sm:$0xf]
        %v4803 = vld [vmem:[%s4771 + $0x7c] sm:$0xf]
        %v4804 = vld [vmem:[%s4771 + $0x80] sm:$0xf]
        %v4805 = vld [vmem:[%s4771 + $0x84] sm:$0xf]
        %v4806 = vld [vmem:[%s4771 + $0x88] sm:$0xf]
        %v4807 = vld [vmem:[%s4771 + $0x8c] sm:$0xf]
        %v4808 = vld [vmem:[%s4771 + $0x90] sm:$0xf]
        %v4809 = vld [vmem:[%s4771 + $0x94] sm:$0xf]
        %v4810 = vld [vmem:[%s4771 + $0x98] sm:$0xf]
        %v4811 = vld [vmem:[%s4771 + $0x9c] sm:$0xf]
        %v4812 = vld [vmem:[%s4771 + $0xa0] sm:$0xf]
        %v4813 = vld [vmem:[%s4771 + $0xa4] sm:$0xf]
        %v4814 = vld [vmem:[%s4771 + $0xa8] sm:$0xf]
        %v4815 = vld [vmem:[%s4771 + $0xac] sm:$0xf]
        %v4816 = vld [vmem:[%s4771 + $0xb0] sm:$0xf]
        %v4817 = vld [vmem:[%s4771 + $0xb4] sm:$0xf]
        %v4818 = vld [vmem:[%s4771 + $0xb8] sm:$0xf]
        %v4819 = vld [vmem:[%s4771 + $0xbc] sm:$0xf]
        %v4868 = vunpack.c.l.b16 %v4772
        %v4869 = vunpack.c.l.b16 %v4773
        %v4870 = vunpack.c.l.b16 %v4774
        %v4871 = vunpack.c.l.b16 %v4775
        %v4872 = vunpack.c.l.b16 %v4776
        %v4873 = vunpack.c.l.b16 %v4777
        %v4874 = vunpack.c.l.b16 %v4778
        %v4875 = vunpack.c.l.b16 %v4779
        %v4876 = vunpack.c.l.b16 %v4780
        %v4877 = vunpack.c.l.b16 %v4781
        %v4878 = vunpack.c.l.b16 %v4782
        %v4879 = vunpack.c.l.b16 %v4783
        %v4880 = vunpack.c.l.b16 %v4784
        %v4881 = vunpack.c.l.b16 %v4785
        %v4882 = vunpack.c.l.b16 %v4786
        %v4883 = vunpack.c.l.b16 %v4787
        %v4884 = vunpack.c.l.b16 %v4788
        %v4885 = vunpack.c.l.b16 %v4789
        %v4886 = vunpack.c.l.b16 %v4790
        %v4887 = vunpack.c.l.b16 %v4791
        %v4888 = vunpack.c.l.b16 %v4792
        %v4889 = vunpack.c.l.b16 %v4793
        %v4890 = vunpack.c.l.b16 %v4794
        %v4891 = vunpack.c.l.b16 %v4795
        %v4892 = vunpack.c.l.b16 %v4796
        %v4893 = vunpack.c.l.b16 %v4797
        %v4894 = vunpack.c.l.b16 %v4798
        %v4895 = vunpack.c.l.b16 %v4799
        %v4896 = vunpack.c.l.b16 %v4800
        %v4897 = vunpack.c.l.b16 %v4801
        %v4898 = vunpack.c.l.b16 %v4802
        %v4899 = vunpack.c.l.b16 %v4803
        %v4900 = vunpack.c.l.b16 %v4804
        %v4901 = vunpack.c.l.b16 %v4805
        %v4902 = vunpack.c.l.b16 %v4806
        %v4903 = vunpack.c.l.b16 %v4807
        %v4904 = vunpack.c.l.b16 %v4808
        %v4905 = vunpack.c.l.b16 %v4809
        %v4906 = vunpack.c.l.b16 %v4810
        %v4907 = vunpack.c.l.b16 %v4811
        %v4908 = vunpack.c.l.b16 %v4812
        %v4909 = vunpack.c.l.b16 %v4813
        %v4910 = vunpack.c.l.b16 %v4814
        %v4911 = vunpack.c.l.b16 %v4815
        %v4912 = vunpack.c.l.b16 %v4816
        %v4913 = vunpack.c.l.b16 %v4817
        %v4914 = vunpack.c.l.b16 %v4818
        %v4915 = vunpack.c.l.b16 %v4819
        %v4916 = vpack.c.b16 %v4869, %v4868
        %v4917 = vpack.c.b16 %v4871, %v4870
        %v4918 = vpack.c.b16 %v4873, %v4872
        %v4919 = vpack.c.b16 %v4875, %v4874
        %v4920 = vpack.c.b16 %v4877, %v4876
        %v4921 = vpack.c.b16 %v4879, %v4878
        %v4922 = vpack.c.b16 %v4881, %v4880
        %v4923 = vpack.c.b16 %v4883, %v4882
        %v4924 = vpack.c.b16 %v4885, %v4884
        %v4925 = vpack.c.b16 %v4887, %v4886
        %v4926 = vpack.c.b16 %v4889, %v4888
        %v4927 = vpack.c.b16 %v4891, %v4890
        %v4928 = vpack.c.b16 %v4893, %v4892
        %v4929 = vpack.c.b16 %v4895, %v4894
        %v4930 = vpack.c.b16 %v4897, %v4896
        %v4931 = vpack.c.b16 %v4899, %v4898
        %v4932 = vpack.c.b16 %v4901, %v4900
        %v4933 = vpack.c.b16 %v4903, %v4902
        %v4934 = vpack.c.b16 %v4905, %v4904
        %v4935 = vpack.c.b16 %v4907, %v4906
        %v4936 = vpack.c.b16 %v4909, %v4908
        %v4937 = vpack.c.b16 %v4911, %v4910
        %v4938 = vpack.c.b16 %v4913, %v4912
        %v4939 = vpack.c.b16 %v4915, %v4914
        %4964 = vmatprep.subr.bf16.mxu0 0
        %4965 = vmatpush1.bf16.msra.mxu0 %v4916
        %4966 = vmatprep.subr.bf16.mxu0 0
        %4967 = vmatpush1.bf16.msra.mxu0 %v4917
        %4968 = vmatprep.subr.bf16.mxu0 0
        %4969 = vmatpush1.bf16.msra.mxu0 %v4918
        %4970 = vmatprep.subr.bf16.mxu0 0
        %4971 = vmatpush1.bf16.msra.mxu0 %v4919
        %4972 = vmatprep.subr.bf16.mxu0 0
        %4973 = vmatpush1.bf16.msra.mxu0 %v4920
        %4974 = vmatprep.subr.bf16.mxu0 0
        %4975 = vmatpush1.bf16.msra.mxu0 %v4921
        %4976 = vmatprep.subr.bf16.mxu0 0
        %4977 = vmatpush1.bf16.msra.mxu0 %v4922
        %4978 = vmatprep.subr.bf16.mxu0 0
        %4979 = vmatpush1.bf16.msra.mxu0 %v4923
        %4980 = vmatprep.subr.bf16.mxu0 0
        %4981 = vmatpush1.bf16.msra.mxu0 %v4924
        %4982 = vmatprep.subr.bf16.mxu0 0
        %4983 = vmatpush1.bf16.msra.mxu0 %v4925
        %4984 = vmatprep.subr.bf16.mxu0 0
        %4985 = vmatpush1.bf16.msra.mxu0 %v4926
        %4986 = vmatprep.subr.bf16.mxu0 0
        %4987 = vmatpush1.bf16.msra.mxu0 %v4927
        %4988 = vmatprep.subr.bf16.mxu0 0
        %4989 = vmatpush1.bf16.msra.mxu0 %v4928
        %4990 = vmatprep.subr.bf16.mxu0 0
        %4991 = vmatpush1.bf16.msra.mxu0 %v4929
        %4992 = vmatprep.subr.bf16.mxu0 0
        %4993 = vmatpush1.bf16.msra.mxu0 %v4930
        %4994 = vmatprep.subr.bf16.mxu0 0
        %4995 = vmatpush1.bf16.msra.mxu0 %v4931
        %4996 = vmatprep.mubr.bf16.mxu0 %v4510
        %4997 = vmatmul.mubr.bf16.gmra.mrb[0].mxu0 %v4419
        %v4998 = vpop.f32.mrb[0].mxu0
        %v4999 = vadd.f32 0.0, %v4998
        %v5000 = vpop.f32.mrb[0].mxu0
        %v5001 = vpop.f32.mrb[0].mxu0
        %v5002 = vadd.f32 0.0, %v5001
        %v5003 = vpop.f32.mrb[0].mxu0
        %5004 = vmatprep.mubr.bf16.mxu0 %v4522
        %5005 = vmatmul.mubr.bf16.gmra.mrb[0].mxu0 %v4420
        %v5006 = vpop.f32.mrb[0].mxu0
        %v5007 = vadd.f32 0.0, %v5006
        %v5008 = vpop.f32.mrb[0].mxu0
        %v5009 = vpop.f32.mrb[0].mxu0
        %v5010 = vadd.f32 0.0, %v5009
        %v5011 = vpop.f32.mrb[0].mxu0
        %5012 = vmatprep.mubr.bf16.mxu0 %v4534
        %5013 = vmatmul.mubr.bf16.gmra.mrb[0].mxu0 %v4421
        %v5014 = vpop.f32.mrb[0].mxu0
        %v5015 = vadd.f32 0.0, %v5014
        %v5016 = vpop.f32.mrb[0].mxu0
        %v5017 = vpop.f32.mrb[0].mxu0
        %v5018 = vadd.f32 0.0, %v5017
        %v5019 = vpop.f32.mrb[0].mxu0
        %5020 = vmatprep.mubr.bf16.mxu0 %v4546
        %5021 = vmatmul.mubr.bf16.gmra.mrb[0].mxu0 %v4422
        %v5022 = vpop.f32.mrb[0].mxu0
        %v5023 = vadd.f32 0.0, %v5022
        %v5024 = vpop.f32.mrb[0].mxu0
        %v5025 = vpop.f32.mrb[0].mxu0
        %v5026 = vadd.f32 0.0, %v5025
        %v5027 = vpop.f32.mrb[0].mxu0
        %5028 = vmatprep.mubr.bf16.mxu0 %v4558
        %5029 = vmatmul.mubr.bf16.gmra.mrb[0].mxu0 %v4423
        %v5030 = vpop.f32.mrb[0].mxu0
        %v5031 = vadd.f32 0.0, %v5030
        %v5032 = vpop.f32.mrb[0].mxu0
        %v5033 = vpop.f32.mrb[0].mxu0
        %v5034 = vadd.f32 0.0, %v5033
        %v5035 = vpop.f32.mrb[0].mxu0
        %5036 = vmatprep.mubr.bf16.mxu0 %v4570
        %5037 = vmatmul.mubr.bf16.gmra.mrb[0].mxu0 %v4424
        %v5038 = vpop.f32.mrb[0].mxu0
        %v5039 = vadd.f32 0.0, %v5038
        %v5040 = vpop.f32.mrb[0].mxu0
        %v5041 = vpop.f32.mrb[0].mxu0
        %v5042 = vadd.f32 0.0, %v5041
        %v5043 = vpop.f32.mrb[0].mxu0
        %5044 = vmatprep.mubr.bf16.mxu0 %v4582
        %5045 = vmatmul.mubr.bf16.gmra.mrb[0].mxu0 %v4425
        %v5046 = vpop.f32.mrb[0].mxu0
        %v5047 = vadd.f32 0.0, %v5046
        %v5048 = vpop.f32.mrb[0].mxu0
        %v5049 = vpop.f32.mrb[0].mxu0
        %v5050 = vadd.f32 0.0, %v5049
        %v5051 = vpop.f32.mrb[0].mxu0
        %5052 = vmatprep.mubr.bf16.mxu0 %v4594
        %5053 = vmatmul.mubr.bf16.gmra.mrb[0].mxu0 %v4426
        %v5054 = vpop.f32.mrb[0].mxu0
        %v5055 = vadd.f32 0.0, %v5054
        %v5056 = vpop.f32.mrb[0].mxu0
        %v5057 = vpop.f32.mrb[0].mxu0
        %v5058 = vadd.f32 0.0, %v5057
        %v5059 = vpop.f32.mrb[0].mxu0
        %5060 = vmatprep.mubr.bf16.mxu0 %v4606
        %5061 = vmatmul.mubr.bf16.gmra.mrb[0].mxu0 %v4427
        %v5062 = vpop.f32.mrb[0].mxu0
        %v5063 = vadd.f32 0.0, %v5062
        %v5064 = vpop.f32.mrb[0].mxu0
        %v5065 = vpop.f32.mrb[0].mxu0
        %v5066 = vadd.f32 0.0, %v5065
        %v5067 = vpop.f32.mrb[0].mxu0
        %5068 = vmatprep.mubr.bf16.mxu0 %v4618
        %5069 = vmatmul.mubr.bf16.gmra.mrb[0].mxu0 %v4428
        %v5070 = vpop.f32.mrb[0].mxu0
        %v5071 = vadd.f32 0.0, %v5070
        %v5072 = vpop.f32.mrb[0].mxu0
        %v5073 = vpop.f32.mrb[0].mxu0
        %v5074 = vadd.f32 0.0, %v5073
        %v5075 = vpop.f32.mrb[0].mxu0
        %5076 = vmatprep.mubr.bf16.mxu0 %v4630
        %5077 = vmatmul.mubr.bf16.gmra.mrb[0].mxu0 %v4429
        %v5078 = vpop.f32.mrb[0].mxu0
        %v5079 = vadd.f32 0.0, %v5078
        %v5080 = vpop.f32.mrb[0].mxu0
        %v5081 = vpop.f32.mrb[0].mxu0
        %v5082 = vadd.f32 0.0, %v5081
        %v5083 = vpop.f32.mrb[0].mxu0
        %5084 = vmatprep.mubr.bf16.mxu0 %v4642
        %5085 = vmatmul.mubr.bf16.gmra.mrb[0].mxu0 %v4430
        %v5086 = vpop.f32.mrb[0].mxu0
        %v5087 = vadd.f32 0.0, %v5086
        %v5088 = vpop.f32.mrb[0].mxu0
        %v5089 = vpop.f32.mrb[0].mxu0
        %v5090 = vadd.f32 0.0, %v5089
        %v5091 = vpop.f32.mrb[0].mxu0
        %5092 = vmatprep.mubr.bf16.mxu0 %v4654
        %5093 = vmatmul.mubr.bf16.gmra.mrb[0].mxu0 %v4431
        %v5094 = vpop.f32.mrb[0].mxu0
        %v5095 = vadd.f32 0.0, %v5094
        %v5096 = vpop.f32.mrb[0].mxu0
        %v5097 = vpop.f32.mrb[0].mxu0
        %v5098 = vadd.f32 0.0, %v5097
        %v5099 = vpop.f32.mrb[0].mxu0
        %5100 = vmatprep.mubr.bf16.mxu0 %v4666
        %5101 = vmatmul.mubr.bf16.gmra.mrb[0].mxu0 %v4432
        %v5102 = vpop.f32.mrb[0].mxu0
        %v5103 = vadd.f32 0.0, %v5102
        %v5104 = vpop.f32.mrb[0].mxu0
        %v5105 = vpop.f32.mrb[0].mxu0
        %v5106 = vadd.f32 0.0, %v5105
        %v5107 = vpop.f32.mrb[0].mxu0
        %5108 = vmatprep.mubr.bf16.mxu0 %v4678
        %5109 = vmatmul.mubr.bf16.gmra.mrb[0].mxu0 %v4433
        %v5110 = vpop.f32.mrb[0].mxu0
        %v5111 = vadd.f32 0.0, %v5110
        %v5112 = vpop.f32.mrb[0].mxu0
        %v5113 = vpop.f32.mrb[0].mxu0
        %v5114 = vadd.f32 0.0, %v5113
        %v5115 = vpop.f32.mrb[0].mxu0
        %5116 = vmatprep.mubr.bf16.mxu0 %v4690
        %5117 = vmatmul.mubr.bf16.gmra.mrb[0].mxu0 %v4434
        %v5118 = vpop.f32.mrb[0].mxu0
        %v5119 = vadd.f32 0.0, %v5118
        %v5120 = vpop.f32.mrb[0].mxu0
        %v5121 = vpop.f32.mrb[0].mxu0
        %v5122 = vadd.f32 0.0, %v5121
        %v5123 = vpop.f32.mrb[0].mxu0
        %5124 = vdwg.mxu0
        %5125 = vmatprep.subr.bf16.mxu0 0
        %5126 = vmatpush1.bf16.msra.mxu0 %v4932
        %5127 = vmatprep.subr.bf16.mxu0 0
        %5128 = vmatpush1.bf16.msra.mxu0 %v4933
        %5129 = vmatprep.subr.bf16.mxu0 0
        %5130 = vmatpush1.bf16.msra.mxu0 %v4934
        %5131 = vmatprep.subr.bf16.mxu0 0
        %5132 = vmatpush1.bf16.msra.mxu0 %v4935
        %5133 = vmatprep.subr.bf16.mxu0 0
        %5134 = vmatpush1.bf16.msra.mxu0 %v4936
        %5135 = vmatprep.subr.bf16.mxu0 0
        %5136 = vmatpush1.bf16.msra.mxu0 %v4937
        %5137 = vmatprep.subr.bf16.mxu0 0
        %5138 = vmatpush1.bf16.msra.mxu0 %v4938
        %5139 = vmatprep.subr.bf16.mxu0 0
        %5140 = vmatpush1.bf16.msra.mxu0 %v4939
        %5141 = vmatprep.subr.bf16.mxu0 0
        %5142 = vmatpush1.bf16.msra.mxu0 0
        %5143 = vmatprep.subr.bf16.mxu0 0
        %5144 = vmatpush1.bf16.msra.mxu0 0
        %5145 = vmatprep.subr.bf16.mxu0 0
        %5146 = vmatpush1.bf16.msra.mxu0 0
        %5147 = vmatprep.subr.bf16.mxu0 0
        %5148 = vmatpush1.bf16.msra.mxu0 0
        %5149 = vmatprep.subr.bf16.mxu0 0
        %5150 = vmatpush1.bf16.msra.mxu0 0
        %5151 = vmatprep.subr.bf16.mxu0 0
        %5152 = vmatpush1.bf16.msra.mxu0 0
        %5153 = vmatprep.subr.bf16.mxu0 0
        %5154 = vmatpush1.bf16.msra.mxu0 0
        %5155 = vmatprep.subr.bf16.mxu0 0
        %5156 = vmatpush1.bf16.msra.mxu0 0
        %5157 = vmatprep.mubr.bf16.mxu0 0
        %5158 = vmatmul.mubr.bf16.gmra.mrb[0].mxu0 %v4709
        %v5159 = vpop.f32.mrb[0].mxu0
        %v5160 = vadd.f32 %v4999, %v5159
        %v5161 = vpop.f32.mrb[0].mxu0
        %v5162 = vpop.f32.mrb[0].mxu0
        %v5163 = vadd.f32 %v5002, %v5162
        %v5164 = vpop.f32.mrb[0].mxu0
        %5165 = vmatprep.mubr.bf16.mxu0 0
        %5166 = vmatmul.mubr.bf16.gmra.mrb[0].mxu0 %v4712
        %v5167 = vpop.f32.mrb[0].mxu0
        %v5168 = vadd.f32 %v5007, %v5167
        %v5169 = vpop.f32.mrb[0].mxu0
        %v5170 = vpop.f32.mrb[0].mxu0
        %v5171 = vadd.f32 %v5010, %v5170
        %v5172 = vpop.f32.mrb[0].mxu0
        %5173 = vmatprep.mubr.bf16.mxu0 0
        %5174 = vmatmul.mubr.bf16.gmra.mrb[0].mxu0 %v4715
        %v5175 = vpop.f32.mrb[0].mxu0
        %v5176 = vadd.f32 %v5015, %v5175
        %v5177 = vpop.f32.mrb[0].mxu0
        %v5178 = vpop.f32.mrb[0].mxu0
        %v5179 = vadd.f32 %v5018, %v5178
        %v5180 = vpop.f32.mrb[0].mxu0
        %5181 = vmatprep.mubr.bf16.mxu0 0
        %5182 = vmatmul.mubr.bf16.gmra.mrb[0].mxu0 %v4718
        %v5183 = vpop.f32.mrb[0].mxu0
        %v5184 = vadd.f32 %v5023, %v5183
        %v5185 = vpop.f32.mrb[0].mxu0
        %v5186 = vpop.f32.mrb[0].mxu0
        %v5187 = vadd.f32 %v5026, %v5186
        %v5188 = vpop.f32.mrb[0].mxu0
        %5189 = vmatprep.mubr.bf16.mxu0 0
        %5190 = vmatmul.mubr.bf16.gmra.mrb[0].mxu0 %v4721
        %v5191 = vpop.f32.mrb[0].mxu0
        %v5192 = vadd.f32 %v5031, %v5191
        %v5193 = vpop.f32.mrb[0].mxu0
        %v5194 = vpop.f32.mrb[0].mxu0
        %v5195 = vadd.f32 %v5034, %v5194
        %v5196 = vpop.f32.mrb[0].mxu0
        %5197 = vmatprep.mubr.bf16.mxu0 0
        %5198 = vmatmul.mubr.bf16.gmra.mrb[0].mxu0 %v4724
        %v5199 = vpop.f32.mrb[0].mxu0
        %v5200 = vadd.f32 %v5039, %v5199
        %v5201 = vpop.f32.mrb[0].mxu0
        %v5202 = vpop.f32.mrb[0].mxu0
        %v5203 = vadd.f32 %v5042, %v5202
        %v5204 = vpop.f32.mrb[0].mxu0
        %5205 = vmatprep.mubr.bf16.mxu0 0
        %5206 = vmatmul.mubr.bf16.gmra.mrb[0].mxu0 %v4727
        %v5207 = vpop.f32.mrb[0].mxu0
        %v5208 = vadd.f32 %v5047, %v5207
        %v5209 = vpop.f32.mrb[0].mxu0
        %v5210 = vpop.f32.mrb[0].mxu0
        %v5211 = vadd.f32 %v5050, %v5210
        %v5212 = vpop.f32.mrb[0].mxu0
        %5213 = vmatprep.mubr.bf16.mxu0 0
        %5214 = vmatmul.mubr.bf16.gmra.mrb[0].mxu0 %v4730
        %v5215 = vpop.f32.mrb[0].mxu0
        %v5216 = vadd.f32 %v5055, %v5215
        %v5217 = vpop.f32.mrb[0].mxu0
        %v5218 = vpop.f32.mrb[0].mxu0
        %v5219 = vadd.f32 %v5058, %v5218
        %v5220 = vpop.f32.mrb[0].mxu0
        %5221 = vmatprep.mubr.bf16.mxu0 0
        %5222 = vmatmul.mubr.bf16.gmra.mrb[0].mxu0 %v4733
        %v5223 = vpop.f32.mrb[0].mxu0
        %v5224 = vadd.f32 %v5063, %v5223
        %v5225 = vpop.f32.mrb[0].mxu0
        %v5226 = vpop.f32.mrb[0].mxu0
        %v5227 = vadd.f32 %v5066, %v5226
        %v5228 = vpop.f32.mrb[0].mxu0
        %5229 = vmatprep.mubr.bf16.mxu0 0
        %5230 = vmatmul.mubr.bf16.gmra.mrb[0].mxu0 %v4736
        %v5231 = vpop.f32.mrb[0].mxu0
        %v5232 = vadd.f32 %v5071, %v5231
        %v5233 = vpop.f32.mrb[0].mxu0
        %v5234 = vpop.f32.mrb[0].mxu0
        %v5235 = vadd.f32 %v5074, %v5234
        %v5236 = vpop.f32.mrb[0].mxu0
        %5237 = vmatprep.mubr.bf16.mxu0 0
        %5238 = vmatmul.mubr.bf16.gmra.mrb[0].mxu0 %v4739
        %v5239 = vpop.f32.mrb[0].mxu0
        %v5240 = vadd.f32 %v5079, %v5239
        %v5241 = vpop.f32.mrb[0].mxu0
        %v5242 = vpop.f32.mrb[0].mxu0
        %v5243 = vadd.f32 %v5082, %v5242
        %v5244 = vpop.f32.mrb[0].mxu0
        %5245 = vmatprep.mubr.bf16.mxu0 0
        %5246 = vmatmul.mubr.bf16.gmra.mrb[0].mxu0 %v4742
        %v5247 = vpop.f32.mrb[0].mxu0
        %v5248 = vadd.f32 %v5087, %v5247
        %v5249 = vpop.f32.mrb[0].mxu0
        %v5250 = vpop.f32.mrb[0].mxu0
        %v5251 = vadd.f32 %v5090, %v5250
        %v5252 = vpop.f32.mrb[0].mxu0
        %5253 = vmatprep.mubr.bf16.mxu0 0
        %5254 = vmatmul.mubr.bf16.gmra.mrb[0].mxu0 %v4745
        %v5255 = vpop.f32.mrb[0].mxu0
        %v5256 = vadd.f32 %v5095, %v5255
        %v5257 = vpop.f32.mrb[0].mxu0
        %v5258 = vpop.f32.mrb[0].mxu0
        %v5259 = vadd.f32 %v5098, %v5258
        %v5260 = vpop.f32.mrb[0].mxu0
        %5261 = vmatprep.mubr.bf16.mxu0 0
        %5262 = vmatmul.mubr.bf16.gmra.mrb[0].mxu0 %v4748
        %v5263 = vpop.f32.mrb[0].mxu0
        %v5264 = vadd.f32 %v5103, %v5263
        %v5265 = vpop.f32.mrb[0].mxu0
        %v5266 = vpop.f32.mrb[0].mxu0
        %v5267 = vadd.f32 %v5106, %v5266
        %v5268 = vpop.f32.mrb[0].mxu0
        %5269 = vmatprep.mubr.bf16.mxu0 0
        %5270 = vmatmul.mubr.bf16.gmra.mrb[0].mxu0 %v4751
        %v5271 = vpop.f32.mrb[0].mxu0
        %v5272 = vadd.f32 %v5111, %v5271
        %v5273 = vpop.f32.mrb[0].mxu0
        %v5274 = vpop.f32.mrb[0].mxu0
        %v5275 = vadd.f32 %v5114, %v5274
        %v5276 = vpop.f32.mrb[0].mxu0
        %5277 = vmatprep.mubr.bf16.mxu0 0
        %5278 = vmatmul.mubr.bf16.gmra.mrb[0].mxu0 %v4754
        %v5279 = vpop.f32.mrb[0].mxu0
        %v5280 = vadd.f32 %v5119, %v5279
        %v5281 = vpop.f32.mrb[0].mxu0
        %v5282 = vpop.f32.mrb[0].mxu0
        %v5283 = vadd.f32 %v5122, %v5282
        %v5284 = vpop.f32.mrb[0].mxu0
        %5285 = vdwg.mxu0
        %v5286 = vadd.f32 %v4180, %v5160
        %v5287 = vadd.f32 %v4183, %v5163
        %v5288 = vadd.f32 %v4188, %v5168
        %v5289 = vadd.f32 %v4191, %v5171
        %v5290 = vadd.f32 %v4196, %v5176
        %v5291 = vadd.f32 %v4199, %v5179
        %v5292 = vadd.f32 %v4204, %v5184
        %v5293 = vadd.f32 %v4207, %v5187
        %v5294 = vadd.f32 %v4212, %v5192
        %v5295 = vadd.f32 %v4215, %v5195
        %v5296 = vadd.f32 %v4220, %v5200
        %v5297 = vadd.f32 %v4223, %v5203
        %v5298 = vadd.f32 %v4228, %v5208
        %v5299 = vadd.f32 %v4231, %v5211
        %v5300 = vadd.f32 %v4236, %v5216
        %v5301 = vadd.f32 %v4239, %v5219
        %v5302 = vadd.f32 %v4244, %v5224
        %v5303 = vadd.f32 %v4247, %v5227
        %v5304 = vadd.f32 %v4252, %v5232
        %v5305 = vadd.f32 %v4255, %v5235
        %v5306 = vadd.f32 %v4260, %v5240
        %v5307 = vadd.f32 %v4263, %v5243
        %v5308 = vadd.f32 %v4268, %v5248
        %v5309 = vadd.f32 %v4271, %v5251
        %v5310 = vadd.f32 %v4276, %v5256
        %v5311 = vadd.f32 %v4279, %v5259
        %v5312 = vadd.f32 %v4284, %v5264
        %v5313 = vadd.f32 %v4287, %v5267
        %v5314 = vadd.f32 %v4292, %v5272
        %v5315 = vadd.f32 %v4295, %v5275
        %v5316 = vadd.f32 %v4300, %v5280
        %v5317 = vadd.f32 %v4303, %v5283
        %v5318 = vld [vmem:[#allocation12] sm:$0x1]
        %v5320 = vlaneseq
        %v5321 = vshrl.u32 %v5320, 7
        %v5322 = vsub.s32 0, %v5321
        %v5323 = vrot.slane %v5318, %v5322
        %v5325 = vadd.f32 %v5286, %v5323
        %v5326 = vadd.f32 %v5287, %v5323
        %v5327 = vadd.f32 %v5288, %v5323
        %v5328 = vadd.f32 %v5289, %v5323
        %v5329 = vadd.f32 %v5290, %v5323
        %v5330 = vadd.f32 %v5291, %v5323
        %v5331 = vadd.f32 %v5292, %v5323
        %v5332 = vadd.f32 %v5293, %v5323
        %v5333 = vadd.f32 %v5294, %v5323
        %v5334 = vadd.f32 %v5295, %v5323
        %v5335 = vadd.f32 %v5296, %v5323
        %v5336 = vadd.f32 %v5297, %v5323
        %v5337 = vadd.f32 %v5298, %v5323
        %v5338 = vadd.f32 %v5299, %v5323
        %v5339 = vadd.f32 %v5300, %v5323
        %v5340 = vadd.f32 %v5301, %v5323
        %v5341 = vadd.f32 %v5302, %v5323
        %v5342 = vadd.f32 %v5303, %v5323
        %v5343 = vadd.f32 %v5304, %v5323
        %v5344 = vadd.f32 %v5305, %v5323
        %v5345 = vadd.f32 %v5306, %v5323
        %v5346 = vadd.f32 %v5307, %v5323
        %v5347 = vadd.f32 %v5308, %v5323
        %v5348 = vadd.f32 %v5309, %v5323
        %v5349 = vadd.f32 %v5310, %v5323
        %v5350 = vadd.f32 %v5311, %v5323
        %v5351 = vadd.f32 %v5312, %v5323
        %v5352 = vadd.f32 %v5313, %v5323
        %v5353 = vadd.f32 %v5314, %v5323
        %v5354 = vadd.f32 %v5315, %v5323
        %v5355 = vadd.f32 %v5316, %v5323
        %v5356 = vadd.f32 %v5317, %v5323
        %v5357 = vmax.f32 %v5325, 0.0
        %v5358 = vmax.f32 %v5326, 0.0
        %v5359 = vmax.f32 %v5327, 0.0
        %v5360 = vmax.f32 %v5328, 0.0
        %v5361 = vmax.f32 %v5329, 0.0
        %v5362 = vmax.f32 %v5330, 0.0
        %v5363 = vmax.f32 %v5331, 0.0
        %v5364 = vmax.f32 %v5332, 0.0
        %v5365 = vmax.f32 %v5333, 0.0
        %v5366 = vmax.f32 %v5334, 0.0
        %v5367 = vmax.f32 %v5335, 0.0
        %v5368 = vmax.f32 %v5336, 0.0
        %v5369 = vmax.f32 %v5337, 0.0
        %v5370 = vmax.f32 %v5338, 0.0
        %v5371 = vmax.f32 %v5339, 0.0
        %v5372 = vmax.f32 %v5340, 0.0
        %v5373 = vmax.f32 %v5341, 0.0
        %v5374 = vmax.f32 %v5342, 0.0
        %v5375 = vmax.f32 %v5343, 0.0
        %v5376 = vmax.f32 %v5344, 0.0
        %v5377 = vmax.f32 %v5345, 0.0
        %v5378 = vmax.f32 %v5346, 0.0
        %v5379 = vmax.f32 %v5347, 0.0
        %v5380 = vmax.f32 %v5348, 0.0
        %v5381 = vmax.f32 %v5349, 0.0
        %v5382 = vmax.f32 %v5350, 0.0
        %v5383 = vmax.f32 %v5351, 0.0
        %v5384 = vmax.f32 %v5352, 0.0
        %v5385 = vmax.f32 %v5353, 0.0
        %v5386 = vmax.f32 %v5354, 0.0
        %v5387 = vmax.f32 %v5355, 0.0
        %v5388 = vmax.f32 %v5356, 0.0
        %v5389 = vpack.c.bf16 %v5358, %v5357
        %v5390 = vpack.c.bf16 %v5360, %v5359
        %v5391 = vpack.c.bf16 %v5362, %v5361
        %v5392 = vpack.c.bf16 %v5364, %v5363
        %v5393 = vpack.c.bf16 %v5366, %v5365
        %v5394 = vpack.c.bf16 %v5368, %v5367
        %v5395 = vpack.c.bf16 %v5370, %v5369
        %v5396 = vpack.c.bf16 %v5372, %v5371
        %v5397 = vpack.c.bf16 %v5374, %v5373
        %v5398 = vpack.c.bf16 %v5376, %v5375
        %v5399 = vpack.c.bf16 %v5378, %v5377
        %v5400 = vpack.c.bf16 %v5380, %v5379
        %v5401 = vpack.c.bf16 %v5382, %v5381
        %v5402 = vpack.c.bf16 %v5384, %v5383
        %v5403 = vpack.c.bf16 %v5386, %v5385
        %v5404 = vpack.c.bf16 %v5388, %v5387
        %v5405 = vld [vmem:[#allocation14] sm:$0xf]
        %v5406 = vld [vmem:[#allocation14 + $0x4] sm:$0xf]
        %v5407 = vld [vmem:[#allocation14 + $0x8] sm:$0xf]
        %v5408 = vld [vmem:[#allocation14 + $0xc] sm:$0xf]
        %v5409 = vld [vmem:[#allocation14 + $0x10] sm:$0xf]
        %v5410 = vld [vmem:[#allocation14 + $0x14] sm:$0xf]
        %v5411 = vld [vmem:[#allocation14 + $0x18] sm:$0xf]
        %v5412 = vld [vmem:[#allocation14 + $0x1c] sm:$0xf]
        %v5413 = vld [vmem:[#allocation14 + $0x20] sm:$0xf]
        %v5414 = vld [vmem:[#allocation14 + $0x24] sm:$0xf]
        %v5415 = vld [vmem:[#allocation14 + $0x28] sm:$0xf]
        %v5416 = vld [vmem:[#allocation14 + $0x2c] sm:$0xf]
        %v5417 = vld [vmem:[#allocation14 + $0x30] sm:$0xf]
        %v5418 = vld [vmem:[#allocation14 + $0x34] sm:$0xf]
        %v5419 = vld [vmem:[#allocation14 + $0x38] sm:$0xf]
        %v5420 = vld [vmem:[#allocation14 + $0x3c] sm:$0xf]
        %v5437 = vunpack.c.l.b16 %v5405
        %v5438 = vunpack.c.l.b16 %v5406
        %v5439 = vunpack.c.l.b16 %v5407
        %v5440 = vunpack.c.l.b16 %v5408
        %v5441 = vunpack.c.l.b16 %v5409
        %v5442 = vunpack.c.l.b16 %v5410
        %v5443 = vunpack.c.l.b16 %v5411
        %v5444 = vunpack.c.l.b16 %v5412
        %v5445 = vunpack.c.l.b16 %v5413
        %v5446 = vunpack.c.l.b16 %v5414
        %v5447 = vunpack.c.l.b16 %v5415
        %v5448 = vunpack.c.l.b16 %v5416
        %v5449 = vunpack.c.l.b16 %v5417
        %v5450 = vunpack.c.l.b16 %v5418
        %v5451 = vunpack.c.l.b16 %v5419
        %v5452 = vunpack.c.l.b16 %v5420
        %v5453 = vpack.c.b16 %v5438, %v5437
        %v5454 = vpack.c.b16 %v5440, %v5439
        %v5455 = vpack.c.b16 %v5442, %v5441
        %v5456 = vpack.c.b16 %v5444, %v5443
        %v5457 = vpack.c.b16 %v5446, %v5445
        %v5458 = vpack.c.b16 %v5448, %v5447
        %v5459 = vpack.c.b16 %v5450, %v5449
        %v5460 = vpack.c.b16 %v5452, %v5451
        %5469 = vmatprep.subr.bf16.mxu0 0
        %5470 = vmatpush1.bf16.msra.mxu0 %v5453
        %5471 = vmatprep.subr.bf16.mxu0 0
        %5472 = vmatpush1.bf16.msra.mxu0 %v5454
        %5473 = vmatprep.subr.bf16.mxu0 0
        %5474 = vmatpush1.bf16.msra.mxu0 %v5455
        %5475 = vmatprep.subr.bf16.mxu0 0
        %5476 = vmatpush1.bf16.msra.mxu0 %v5456
        %5477 = vmatprep.subr.bf16.mxu0 0
        %5478 = vmatpush1.bf16.msra.mxu0 %v5457
        %5479 = vmatprep.subr.bf16.mxu0 0
        %5480 = vmatpush1.bf16.msra.mxu0 %v5458
        %5481 = vmatprep.subr.bf16.mxu0 0
        %5482 = vmatpush1.bf16.msra.mxu0 %v5459
        %5483 = vmatprep.subr.bf16.mxu0 0
        %5484 = vmatpush1.bf16.msra.mxu0 %v5460
        %5485 = vmatprep.subr.bf16.mxu0 0
        %5486 = vmatpush1.bf16.msra.mxu0 0
        %5487 = vmatprep.subr.bf16.mxu0 0
        %5488 = vmatpush1.bf16.msra.mxu0 0
        %5489 = vmatprep.subr.bf16.mxu0 0
        %5490 = vmatpush1.bf16.msra.mxu0 0
        %5491 = vmatprep.subr.bf16.mxu0 0
        %5492 = vmatpush1.bf16.msra.mxu0 0
        %5493 = vmatprep.subr.bf16.mxu0 0
        %5494 = vmatpush1.bf16.msra.mxu0 0
        %5495 = vmatprep.subr.bf16.mxu0 0
        %5496 = vmatpush1.bf16.msra.mxu0 0
        %5497 = vmatprep.subr.bf16.mxu0 0
        %5498 = vmatpush1.bf16.msra.mxu0 0
        %5499 = vmatprep.subr.bf16.mxu0 0
        %5500 = vmatpush1.bf16.msra.mxu0 0
        %5501 = vmatprep.mubr.bf16.mxu0 0
        %5502 = vmatmul.mubr.bf16.gmra.mrb[0].mxu0 %v5389
        %v5503 = vpop.f32.mrb[0].mxu0
        %v5504 = vadd.f32 %v2220, %v5503
        %v5505 = vpop.f32.mrb[0].mxu0
        %v5506 = vpop.f32.mrb[0].mxu0
        %v5507 = vadd.f32 %v2223, %v5506
        %v5508 = vpop.f32.mrb[0].mxu0
        %5509 = vmatprep.mubr.bf16.mxu0 0
        %5510 = vmatmul.mubr.bf16.gmra.mrb[0].mxu0 %v5390
        %v5511 = vpop.f32.mrb[0].mxu0
        %v5512 = vadd.f32 %v2228, %v5511
        %v5513 = vpop.f32.mrb[0].mxu0
        %v5514 = vpop.f32.mrb[0].mxu0
        %v5515 = vadd.f32 %v2231, %v5514
        %v5516 = vpop.f32.mrb[0].mxu0
        %5517 = vmatprep.mubr.bf16.mxu0 0
        %5518 = vmatmul.mubr.bf16.gmra.mrb[0].mxu0 %v5391
        %v5519 = vpop.f32.mrb[0].mxu0
        %v5520 = vadd.f32 %v2236, %v5519
        %v5521 = vpop.f32.mrb[0].mxu0
        %v5522 = vpop.f32.mrb[0].mxu0
        %v5523 = vadd.f32 %v2239, %v5522
        %v5524 = vpop.f32.mrb[0].mxu0
        %5525 = vmatprep.mubr.bf16.mxu0 0
        %5526 = vmatmul.mubr.bf16.gmra.mrb[0].mxu0 %v5392
        %v5527 = vpop.f32.mrb[0].mxu0
        %v5528 = vadd.f32 %v2244, %v5527
        %v5529 = vpop.f32.mrb[0].mxu0
        %v5530 = vpop.f32.mrb[0].mxu0
        %v5531 = vadd.f32 %v2247, %v5530
        %v5532 = vpop.f32.mrb[0].mxu0
        %5533 = vmatprep.mubr.bf16.mxu0 0
        %5534 = vmatmul.mubr.bf16.gmra.mrb[0].mxu0 %v5393
        %v5535 = vpop.f32.mrb[0].mxu0
        %v5536 = vadd.f32 %v2252, %v5535
        %v5537 = vpop.f32.mrb[0].mxu0
        %v5538 = vpop.f32.mrb[0].mxu0
        %v5539 = vadd.f32 %v2255, %v5538
        %v5540 = vpop.f32.mrb[0].mxu0
        %5541 = vmatprep.mubr.bf16.mxu0 0
        %5542 = vmatmul.mubr.bf16.gmra.mrb[0].mxu0 %v5394
        %v5543 = vpop.f32.mrb[0].mxu0
        %v5544 = vadd.f32 %v2260, %v5543
        %v5545 = vpop.f32.mrb[0].mxu0
        %v5546 = vpop.f32.mrb[0].mxu0
        %v5547 = vadd.f32 %v2263, %v5546
        %v5548 = vpop.f32.mrb[0].mxu0
        %5549 = vmatprep.mubr.bf16.mxu0 0
        %5550 = vmatmul.mubr.bf16.gmra.mrb[0].mxu0 %v5395
        %v5551 = vpop.f32.mrb[0].mxu0
        %v5552 = vadd.f32 %v2268, %v5551
        %v5553 = vpop.f32.mrb[0].mxu0
        %v5554 = vpop.f32.mrb[0].mxu0
        %v5555 = vadd.f32 %v2271, %v5554
        %v5556 = vpop.f32.mrb[0].mxu0
        %5557 = vmatprep.mubr.bf16.mxu0 0
        %5558 = vmatmul.mubr.bf16.gmra.mrb[0].mxu0 %v5396
        %v5559 = vpop.f32.mrb[0].mxu0
        %v5560 = vadd.f32 %v2276, %v5559
        %v5561 = vpop.f32.mrb[0].mxu0
        %v5562 = vpop.f32.mrb[0].mxu0
        %v5563 = vadd.f32 %v2279, %v5562
        %v5564 = vpop.f32.mrb[0].mxu0
        %5565 = vmatprep.mubr.bf16.mxu0 0
        %5566 = vmatmul.mubr.bf16.gmra.mrb[0].mxu0 %v5397
        %v5567 = vpop.f32.mrb[0].mxu0
        %v5568 = vadd.f32 %v2284, %v5567
        %v5569 = vpop.f32.mrb[0].mxu0
        %v5570 = vpop.f32.mrb[0].mxu0
        %v5571 = vadd.f32 %v2287, %v5570
        %v5572 = vpop.f32.mrb[0].mxu0
        %5573 = vmatprep.mubr.bf16.mxu0 0
        %5574 = vmatmul.mubr.bf16.gmra.mrb[0].mxu0 %v5398
        %v5575 = vpop.f32.mrb[0].mxu0
        %v5576 = vadd.f32 %v2292, %v5575
        %v5577 = vpop.f32.mrb[0].mxu0
        %v5578 = vpop.f32.mrb[0].mxu0
        %v5579 = vadd.f32 %v2295, %v5578
        %v5580 = vpop.f32.mrb[0].mxu0
        %5581 = vmatprep.mubr.bf16.mxu0 0
        %5582 = vmatmul.mubr.bf16.gmra.mrb[0].mxu0 %v5399
        %v5583 = vpop.f32.mrb[0].mxu0
        %v5584 = vadd.f32 %v2300, %v5583
        %v5585 = vpop.f32.mrb[0].mxu0
        %v5586 = vpop.f32.mrb[0].mxu0
        %v5587 = vadd.f32 %v2303, %v5586
        %v5588 = vpop.f32.mrb[0].mxu0
        %5589 = vmatprep.mubr.bf16.mxu0 0
        %5590 = vmatmul.mubr.bf16.gmra.mrb[0].mxu0 %v5400
        %v5591 = vpop.f32.mrb[0].mxu0
        %v5592 = vadd.f32 %v2308, %v5591
        %v5593 = vpop.f32.mrb[0].mxu0
        %v5594 = vpop.f32.mrb[0].mxu0
        %v5595 = vadd.f32 %v2311, %v5594
        %v5596 = vpop.f32.mrb[0].mxu0
        %5597 = vmatprep.mubr.bf16.mxu0 0
        %5598 = vmatmul.mubr.bf16.gmra.mrb[0].mxu0 %v5401
        %v5599 = vpop.f32.mrb[0].mxu0
        %v5600 = vadd.f32 %v2316, %v5599
        %v5601 = vpop.f32.mrb[0].mxu0
        %v5602 = vpop.f32.mrb[0].mxu0
        %v5603 = vadd.f32 %v2319, %v5602
        %v5604 = vpop.f32.mrb[0].mxu0
        %5605 = vmatprep.mubr.bf16.mxu0 0
        %5606 = vmatmul.mubr.bf16.gmra.mrb[0].mxu0 %v5402
        %v5607 = vpop.f32.mrb[0].mxu0
        %v5608 = vadd.f32 %v2324, %v5607
        %v5609 = vpop.f32.mrb[0].mxu0
        %v5610 = vpop.f32.mrb[0].mxu0
        %v5611 = vadd.f32 %v2327, %v5610
        %v5612 = vpop.f32.mrb[0].mxu0
        %5613 = vmatprep.mubr.bf16.mxu0 0
        %5614 = vmatmul.mubr.bf16.gmra.mrb[0].mxu0 %v5403
        %v5615 = vpop.f32.mrb[0].mxu0
        %v5616 = vadd.f32 %v2332, %v5615
        %v5617 = vpop.f32.mrb[0].mxu0
        %v5618 = vpop.f32.mrb[0].mxu0
        %v5619 = vadd.f32 %v2335, %v5618
        %v5620 = vpop.f32.mrb[0].mxu0
        %5621 = vmatprep.mubr.bf16.mxu0 0
        %5622 = vmatmul.mubr.bf16.gmra.mrb[0].mxu0 %v5404
        %v5623 = vpop.f32.mrb[0].mxu0
        %v5624 = vadd.f32 %v2340, %v5623
        %v5625 = vpop.f32.mrb[0].mxu0
        %v5626 = vpop.f32.mrb[0].mxu0
        %v5627 = vadd.f32 %v2343, %v5626
        %v5628 = vpop.f32.mrb[0].mxu0
        %5629 = vdwg.mxu0
        %v5630 = vld [vmem:[#allocation15] sm:$0x1]
        %v5632 = vlaneseq
        %v5633 = vshrl.u32 %v5632, 7
        %v5634 = vsub.s32 0, %v5633
        %v5635 = vrot.slane %v5630, %v5634
        %v5637 = vadd.f32 %v5504, %v5635
        %v5638 = vadd.f32 %v5507, %v5635
        %v5639 = vadd.f32 %v5512, %v5635
        %v5640 = vadd.f32 %v5515, %v5635
        %v5641 = vadd.f32 %v5520, %v5635
        %v5642 = vadd.f32 %v5523, %v5635
        %v5643 = vadd.f32 %v5528, %v5635
        %v5644 = vadd.f32 %v5531, %v5635
        %v5645 = vadd.f32 %v5536, %v5635
        %v5646 = vadd.f32 %v5539, %v5635
        %v5647 = vadd.f32 %v5544, %v5635
        %v5648 = vadd.f32 %v5547, %v5635
        %v5649 = vadd.f32 %v5552, %v5635
        %v5650 = vadd.f32 %v5555, %v5635
        %v5651 = vadd.f32 %v5560, %v5635
        %v5652 = vadd.f32 %v5563, %v5635
        %v5653 = vadd.f32 %v5568, %v5635
        %v5654 = vadd.f32 %v5571, %v5635
        %v5655 = vadd.f32 %v5576, %v5635
        %v5656 = vadd.f32 %v5579, %v5635
        %v5657 = vadd.f32 %v5584, %v5635
        %v5658 = vadd.f32 %v5587, %v5635
        %v5659 = vadd.f32 %v5592, %v5635
        %v5660 = vadd.f32 %v5595, %v5635
        %v5661 = vadd.f32 %v5600, %v5635
        %v5662 = vadd.f32 %v5603, %v5635
        %v5663 = vadd.f32 %v5608, %v5635
        %v5664 = vadd.f32 %v5611, %v5635
        %v5665 = vadd.f32 %v5616, %v5635
        %v5666 = vadd.f32 %v5619, %v5635
        %v5667 = vadd.f32 %v5624, %v5635
        %v5668 = vadd.f32 %v5627, %v5635
        %v5669 = vmax.f32 %v5637, 0.0
        %v5670 = vmax.f32 %v5638, 0.0
        %v5671 = vmax.f32 %v5639, 0.0
        %v5672 = vmax.f32 %v5640, 0.0
        %v5673 = vmax.f32 %v5641, 0.0
        %v5674 = vmax.f32 %v5642, 0.0
        %v5675 = vmax.f32 %v5643, 0.0
        %v5676 = vmax.f32 %v5644, 0.0
        %v5677 = vmax.f32 %v5645, 0.0
        %v5678 = vmax.f32 %v5646, 0.0
        %v5679 = vmax.f32 %v5647, 0.0
        %v5680 = vmax.f32 %v5648, 0.0
        %v5681 = vmax.f32 %v5649, 0.0
        %v5682 = vmax.f32 %v5650, 0.0
        %v5683 = vmax.f32 %v5651, 0.0
        %v5684 = vmax.f32 %v5652, 0.0
        %v5685 = vmax.f32 %v5653, 0.0
        %v5686 = vmax.f32 %v5654, 0.0
        %v5687 = vmax.f32 %v5655, 0.0
        %v5688 = vmax.f32 %v5656, 0.0
        %v5689 = vmax.f32 %v5657, 0.0
        %v5690 = vmax.f32 %v5658, 0.0
        %v5691 = vmax.f32 %v5659, 0.0
        %v5692 = vmax.f32 %v5660, 0.0
        %v5693 = vmax.f32 %v5661, 0.0
        %v5694 = vmax.f32 %v5662, 0.0
        %v5695 = vmax.f32 %v5663, 0.0
        %v5696 = vmax.f32 %v5664, 0.0
        %v5697 = vmax.f32 %v5665, 0.0
        %v5698 = vmax.f32 %v5666, 0.0
        %v5699 = vmax.f32 %v5667, 0.0
        %v5700 = vmax.f32 %v5668, 0.0
        %v5701 = vpack.c.bf16 %v5670, %v5669
        %v5702 = vpack.c.bf16 %v5672, %v5671
        %v5703 = vpack.c.bf16 %v5674, %v5673
        %v5704 = vpack.c.bf16 %v5676, %v5675
        %v5705 = vpack.c.bf16 %v5678, %v5677
        %v5706 = vpack.c.bf16 %v5680, %v5679
        %v5707 = vpack.c.bf16 %v5682, %v5681
        %v5708 = vpack.c.bf16 %v5684, %v5683
        %v5709 = vpack.c.bf16 %v5686, %v5685
        %v5710 = vpack.c.bf16 %v5688, %v5687
        %v5711 = vpack.c.bf16 %v5690, %v5689
        %v5712 = vpack.c.bf16 %v5692, %v5691
        %v5713 = vpack.c.bf16 %v5694, %v5693
        %v5714 = vpack.c.bf16 %v5696, %v5695
        %v5715 = vpack.c.bf16 %v5698, %v5697
        %v5716 = vpack.c.bf16 %v5700, %v5699
        %v5733 = vunpack.c.l.b16 %v5701
        %v5734 = vunpack.c.h.b16 %v5701
        %v5735 = vunpack.c.l.b16 %v5702
        %v5736 = vunpack.c.h.b16 %v5702
        %v5737 = vunpack.c.l.b16 %v5703
        %v5738 = vunpack.c.h.b16 %v5703
        %v5739 = vunpack.c.l.b16 %v5704
        %v5740 = vunpack.c.h.b16 %v5704
        %v5741 = vunpack.c.l.b16 %v5705
        %v5742 = vunpack.c.h.b16 %v5705
        %v5743 = vunpack.c.l.b16 %v5706
        %v5744 = vunpack.c.h.b16 %v5706
        %v5745 = vunpack.c.l.b16 %v5707
        %v5746 = vunpack.c.h.b16 %v5707
        %v5747 = vunpack.c.l.b16 %v5708
        %v5748 = vunpack.c.h.b16 %v5708
        %v5749 = vunpack.c.l.b16 %v5709
        %v5750 = vunpack.c.h.b16 %v5709
        %v5751 = vunpack.c.l.b16 %v5710
        %v5752 = vunpack.c.h.b16 %v5710
        %v5753 = vunpack.c.l.b16 %v5711
        %v5754 = vunpack.c.h.b16 %v5711
        %v5755 = vunpack.c.l.b16 %v5712
        %v5756 = vunpack.c.h.b16 %v5712
        %v5757 = vunpack.c.l.b16 %v5713
        %v5758 = vunpack.c.h.b16 %v5713
        %v5759 = vunpack.c.l.b16 %v5714
        %v5760 = vunpack.c.h.b16 %v5714
        %v5761 = vunpack.c.l.b16 %v5715
        %v5762 = vunpack.c.h.b16 %v5715
        %v5763 = vunpack.c.l.b16 %v5716
        %v5764 = vunpack.c.h.b16 %v5716
        %v5765 = vpack.c.b16 %v5733, %v5733
        %v5766 = vpack.c.b16 %v5734, %v5734
        %v5767 = vpack.c.b16 %v5735, %v5735
        %v5768 = vpack.c.b16 %v5736, %v5736
        %v5769 = vpack.c.b16 %v5737, %v5737
        %v5770 = vpack.c.b16 %v5738, %v5738
        %v5771 = vpack.c.b16 %v5739, %v5739
        %v5772 = vpack.c.b16 %v5740, %v5740
        %v5773 = vpack.c.b16 %v5741, %v5741
        %v5774 = vpack.c.b16 %v5742, %v5742
        %v5775 = vpack.c.b16 %v5743, %v5743
        %v5776 = vpack.c.b16 %v5744, %v5744
        %v5777 = vpack.c.b16 %v5745, %v5745
        %v5778 = vpack.c.b16 %v5746, %v5746
        %v5779 = vpack.c.b16 %v5747, %v5747
        %v5780 = vpack.c.b16 %v5748, %v5748
        %v5781 = vpack.c.b16 %v5749, %v5749
        %v5782 = vpack.c.b16 %v5750, %v5750
        %v5783 = vpack.c.b16 %v5751, %v5751
        %v5784 = vpack.c.b16 %v5752, %v5752
        %v5785 = vpack.c.b16 %v5753, %v5753
        %v5786 = vpack.c.b16 %v5754, %v5754
        %v5787 = vpack.c.b16 %v5755, %v5755
        %v5788 = vpack.c.b16 %v5756, %v5756
        %v5789 = vpack.c.b16 %v5757, %v5757
        %v5790 = vpack.c.b16 %v5758, %v5758
        %v5791 = vpack.c.b16 %v5759, %v5759
        %v5792 = vpack.c.b16 %v5760, %v5760
        %v5793 = vpack.c.b16 %v5761, %v5761
        %v5794 = vpack.c.b16 %v5762, %v5762
        %v5795 = vpack.c.b16 %v5763, %v5763
        %v5796 = vpack.c.b16 %v5764, %v5764
        %5829 = vst [vmem:[%s433] sm:$0xf] %v5765
        %5830 = vst [vmem:[%s433 + $0x4] sm:$0xf] %v5766
        %5831 = vst [vmem:[%s433 + $0x8] sm:$0xf] %v5767
        %5832 = vst [vmem:[%s433 + $0xc] sm:$0xf] %v5768
        %5833 = vst [vmem:[%s433 + $0x10] sm:$0xf] %v5769
        %5834 = vst [vmem:[%s433 + $0x14] sm:$0xf] %v5770
        %5835 = vst [vmem:[%s433 + $0x18] sm:$0xf] %v5771
        %5836 = vst [vmem:[%s433 + $0x1c] sm:$0xf] %v5772
        %5837 = vst [vmem:[%s433 + $0x20] sm:$0xf] %v5773
        %5838 = vst [vmem:[%s433 + $0x24] sm:$0xf] %v5774
        %5839 = vst [vmem:[%s433 + $0x28] sm:$0xf] %v5775
        %5840 = vst [vmem:[%s433 + $0x2c] sm:$0xf] %v5776
        %5841 = vst [vmem:[%s433 + $0x30] sm:$0xf] %v5777
        %5842 = vst [vmem:[%s433 + $0x34] sm:$0xf] %v5778
        %5843 = vst [vmem:[%s433 + $0x38] sm:$0xf] %v5779
        %5844 = vst [vmem:[%s433 + $0x3c] sm:$0xf] %v5780
        %5845 = vst [vmem:[%s433 + $0x40] sm:$0xf] %v5781
        %5846 = vst [vmem:[%s433 + $0x44] sm:$0xf] %v5782
        %5847 = vst [vmem:[%s433 + $0x48] sm:$0xf] %v5783
        %5848 = vst [vmem:[%s433 + $0x4c] sm:$0xf] %v5784
        %5849 = vst [vmem:[%s433 + $0x50] sm:$0xf] %v5785
        %5850 = vst [vmem:[%s433 + $0x54] sm:$0xf] %v5786
        %5851 = vst [vmem:[%s433 + $0x58] sm:$0xf] %v5787
        %5852 = vst [vmem:[%s433 + $0x5c] sm:$0xf] %v5788
        %5853 = vst [vmem:[%s433 + $0x60] sm:$0xf] %v5789
        %5854 = vst [vmem:[%s433 + $0x64] sm:$0xf] %v5790
        %5855 = vst [vmem:[%s433 + $0x68] sm:$0xf] %v5791
        %5856 = vst [vmem:[%s433 + $0x6c] sm:$0xf] %v5792
        %5857 = vst [vmem:[%s433 + $0x70] sm:$0xf] %v5793
        %5858 = vst [vmem:[%s433 + $0x74] sm:$0xf] %v5794
        %5859 = vst [vmem:[%s433 + $0x78] sm:$0xf] %v5795
        %5860 = vst [vmem:[%s433 + $0x7c] sm:$0xf] %v5796
        %s5861 = sand.u32 %s224, 1
        %s5862 = scalar_lea.sflag [#allocation5], %s5861
        %s5863 = sand.u32 %s224, 1
        %s5864 = smul.addr %s5863, 128
        %s5865 = scalar_lea.vmem [#allocation17], %s5864
        // Predicated region
        $region85: #{bottleneck_forward.1} parent=51 // pred_check
          %p5866 = pneg %p234
        $region86: #{bottleneck_forward.1} parent=51 // pred_check_branch
          %5868 = sbr.rel (%p5866) target = $region88
        $region87: #{bottleneck_forward.1} parent=51 // pred_region
          %s5869 = smul.u32 16, %s34
          %s5871 = ssub.s32 2048, 2048
          %5872 = vsyncadd %s5862, %s5871
          %s5873 = smul.addr %s5869, 2
          %s5874 = smul.addr %s33, 32
          %s5875 = sadd.s32 %s5873, %s5874
          %s5876 = smul.addr %s5875, 64
          %s5877 = scalar_lea.hbm %s8, %s5876
          %s5878 = sshll.u32 %s5865, 4
          %s5879 = int_to_ptr.vmem [resolvable:$true] %s5878
          %5884 = dma.vmem_to_hbm [thread:$0]  %s5879, 2048, %s5877, %s5862, 64, 64, 4
        $region88: #{bottleneck_forward.1} parent=51 // pred_fallthru
          _
      $region52: #{bottleneck_forward.1} parent=5 // pred_fallthru
        _
      %p5885 = scmp.le.s32.totalorder 2, %s24
      // Predicated region
      $region89: #{bottleneck_forward.1} parent=5 // pred_check
        %p5886 = pneg %p5885
      $region90: #{bottleneck_forward.1} parent=5 // pred_check_branch
        %5888 = sbr.rel (%p5886) target = $region92
      $region91: #{bottleneck_forward.1} parent=5 // pred_region
        %s5889 = ssub.s32 %s24, 2
        // Predicated region
        $region93: #{bottleneck_forward.1} parent=91 // pred_check
          %p5890 = pneg %p240
        $region94: #{bottleneck_forward.1} parent=91 // pred_check_branch
          %5892 = sbr.rel (%p5890) target = $region96
        $region95: #{bottleneck_forward.1} parent=91 // pred_region
          %s5893 = sand.u32 %s225, 1
          %s5894 = scalar_lea.sflag [#allocation5], %s5893
          %s5895 = sand.u32 %s225, 1
          %s5896 = smul.addr %s5895, 128
          %s5897 = scalar_lea.vmem [#allocation17], %s5896
          %5898 = dma.done %s5894, 2048
        $region96: #{bottleneck_forward.1} parent=91 // pred_fallthru
          _
      $region92: #{bottleneck_forward.1} parent=5 // pred_fallthru
        _
    $region6: #{bottleneck_forward.1} parent=1 // loop_footer
      %s28 = sadd.s32 1, %s24
    $region7: #{bottleneck_forward.1} parent=1 // loop_footer_branch
      %23 = sbr.rel target = $region3
    $region8: #{bottleneck_forward.1} parent=1 // loop_exit
      _
    %5899 = vsyncpa [#allocation4], 1
    %s5900 = scalar_lea.sflag [#allocation4], 1
    %5901 = vsyncpa %s5900, 1
    %5902 = vsyncpa [#allocation7], 1
    %5903 = vsyncpa [#allocation10], 1
    %5904 = vsyncpa [#allocation13], 1
    %5905 = vsyncpa [#allocation16], 1
    %5906 = vsyncpa [#allocation5], 1
    %s5907 = scalar_lea.sflag [#allocation5], 1
    %5908 = vsyncpa %s5907, 1

</llo_original>
